<compile_context>
chip_gen: v7x
topology: tpu7x:2x2x1
jax: 0.10.0
libtpu: 0.0.40
codegen_flags: <defaults>
</compile_context>

<pallas_src>
from functools import partial

import jax
import jax.numpy as jnp
from jax.experimental import pallas as pl
from jax.experimental.pallas import tpu as pltpu

EPS = 1e-5  # nn.BatchNorm2d default eps


def _round_up(v, m):
    return ((v + m - 1) // m) * m


# ----------------------------- Pallas kernels ------------------------------ #

def _conv_matmul_stats_kernel(p_ref, w_ref, y_ref, s_ref):
    # p_ref : (TM, Kp) bf16 im2col patches tile
    # w_ref : (Kp, Cp) bf16 flattened conv weight (VMEM resident)
    # y_ref : (TM, Cp) f32 pre-BN conv output tile
    # s_ref : (1, 2, Cp) f32 per-tile [sum, sum-of-squares] per channel
    y = jnp.dot(p_ref[...], w_ref[...], preferred_element_type=jnp.float32)
    y_ref[...] = y
    ps = jnp.sum(y, axis=0, keepdims=True)          # (1, Cp)
    pss = jnp.sum(y * y, axis=0, keepdims=True)     # (1, Cp)
    s_ref[0] = jnp.concatenate([ps, pss], axis=0)   # (2, Cp)


def _bn_affine_relu_kernel(y_ref, a_ref, c_ref, o_ref):
    # Single-FMA BN epilogue + ReLU: out = max(y*a + c, 0)
    z = y_ref[...] * a_ref[...] + c_ref[...]
    o_ref[...] = jnp.maximum(z, 0.0).astype(o_ref.dtype)


def _conv1x1_bias_kernel(x_ref, w_ref, b_ref, o_ref):
    o_ref[...] = (
        jnp.dot(x_ref[...], w_ref[...], preferred_element_type=jnp.float32)
        + b_ref[...]
    )


# ------------------------------ layer wrappers ----------------------------- #

def conv_bn_relu(x, w, gamma, beta, stride, pad):
    """x: (N,H,W,Cin); w: (KH,KW,Cin,Cout). Returns bf16 (N,Ho,Wo,Cout).

    Conv (bias dropped - cancels under train-mode BN) -> batch-stat BN -> ReLU.
    """
    N, H, W, Cin = x.shape
    KH, KW, _, Cout = w.shape
    ph, pw = pad

    x_pad = jnp.pad(x.astype(jnp.bfloat16), ((0, 0), (ph, ph), (pw, pw), (0, 0)))
    Ho = (H + 2 * ph - KH) // stride + 1
    Wo = (W + 2 * pw - KW) // stride + 1

    # im2col in XLA glue (order (kh,kw,cin) matches weight flattening).
    cols = []
    for kh in range(KH):
        for kw in range(KW):
            cols.append(
                x_pad[:, kh:kh + stride * (Ho - 1) + 1:stride,
                      kw:kw + stride * (Wo - 1) + 1:stride, :])
    K = KH * KW * Cin
    M = N * Ho * Wo
    patches = jnp.concatenate(cols, axis=-1).reshape(M, K)

    # Padding: lane-dense K and Cout; M tiled with TM rows (multiple of 16 so
    # bf16-tiled blocks are always legal).
    Kp = _round_up(K, 128)
    Cp = _round_up(Cout, 128)
    TM = min(512, _round_up(M, 16))
    G = -(-M // TM)
    Mp = G * TM

    patches_p = jnp.pad(patches, ((0, Mp - M), (0, Kp - K)))
    w_p = jnp.pad(w.reshape(K, Cout).astype(jnp.bfloat16),
                  ((0, Kp - K), (0, Cp - Cout)))

    flops = 2 * Mp * Kp * Cp
    bytes_acc = Mp * Kp * 2 + Kp * Cp * 2 + Mp * Cp * 4 + G * 2 * Cp * 4

    # Pass 1: matmul + partial BN statistics, gridded over M tiles.
    y, stats = pl.pallas_call(
        _conv_matmul_stats_kernel,
        out_shape=(jax.ShapeDtypeStruct((Mp, Cp), jnp.float32),
                   jax.ShapeDtypeStruct((G, 2, Cp), jnp.float32)),
        grid_spec=pltpu.PrefetchScalarGridSpec(
            num_scalar_prefetch=0,
            grid=(G,),
            in_specs=[pl.BlockSpec((TM, Kp), lambda i: (i, 0)),
                      pl.BlockSpec((Kp, Cp), lambda i: (0, 0))],
            out_specs=(pl.BlockSpec((TM, Cp), lambda i: (i, 0)),
                       pl.BlockSpec((1, 2, Cp), lambda i: (i, 0, 0)))),
        compiler_params=pltpu.CompilerParams(
            dimension_semantics=("parallel",)),
        cost_estimate=pl.CostEstimate(
            flops=flops, transcendentals=0, bytes_accessed=bytes_acc),
    )(patches_p, w_p)

    # Tiny cross-tile reduction + BN fold (G x 2 x Cp elements) in plain JAX.
    ssum = jnp.sum(stats[:, 0, :], axis=0)
    ssq = jnp.sum(stats[:, 1, :], axis=0)
    mean = ssum / M                                           # true M, not Mp
    var = jnp.maximum(ssq / M - mean * mean, 0.0)
    gamma_p = jnp.pad(gamma.astype(jnp.float32), (0, Cp - Cout))
    beta_p = jnp.pad(beta.astype(jnp.float32), (0, Cp - Cout))
    scale = gamma_p * jax.lax.rsqrt(var + EPS)                # (Cp,)
    shift = beta_p - mean * scale                             # (Cp,)
    a = scale.reshape(1, Cp)
    c = shift.reshape(1, Cp)

    # Pass 2: normalize + affine + ReLU over the same M tiles (bf16 output).
    out = pl.pallas_call(
        _bn_affine_relu_kernel,
        out_shape=jax.ShapeDtypeStruct((Mp, Cp), jnp.bfloat16),
        grid_spec=pltpu.PrefetchScalarGridSpec(
            num_scalar_prefetch=0,
            grid=(G,),
            in_specs=[pl.BlockSpec((TM, Cp), lambda i: (i, 0)),
                      pl.BlockSpec((1, Cp), lambda i: (0, 0)),
                      pl.BlockSpec((1, Cp), lambda i: (0, 0))],
            out_specs=pl.BlockSpec((TM, Cp), lambda i: (i, 0))),
        compiler_params=pltpu.CompilerParams(
            dimension_semantics=("parallel",)),
    )(y, a, c)

    return out[:M, :Cout].reshape(N, Ho, Wo, Cout)


def conv1x1(x, wf, bf):
    """1x1 conv + bias (the `convf` head). x: (N,H,W,Cin) -> (N,H,W,nmaps) f32."""
    N, H, W, Cin = x.shape
    nmaps = wf.shape[-1]
    M = N * H * W
    Mp = _round_up(M, 8)
    Cp = _round_up(nmaps, 128)

    x2 = jnp.pad(x.reshape(M, Cin).astype(jnp.bfloat16), ((0, Mp - M), (0, 0)))
    w2 = jnp.pad(wf.reshape(Cin, nmaps).astype(jnp.bfloat16),
                 ((0, 0), (0, Cp - nmaps)))
    b2 = jnp.pad(bf.reshape(1, nmaps).astype(jnp.float32),
                 ((0, 0), (0, Cp - nmaps)))

    out = pl.pallas_call(
        _conv1x1_bias_kernel,
        out_shape=jax.ShapeDtypeStruct((Mp, Cp), jnp.float32),
        in_specs=[pl.BlockSpec(memory_space=pltpu.MemorySpace.VMEM)] * 3,
        out_specs=pl.BlockSpec(memory_space=pltpu.MemorySpace.VMEM),
    )(x2, w2, b2)
    return out[:M, :nmaps].reshape(N, H, W, nmaps)


# ----------------------- pose readout (plain JAX glue) --------------------- #

def get_coord(x, other_axis, axis_size):
    # x: (N, H, W, nmaps)
    g_c_prob = jnp.mean(x, axis=other_axis)                   # (N, axis_size, nmaps)
    g_c_prob = jax.nn.softmax(g_c_prob, axis=1)
    coord_pt = jnp.linspace(-1.0, 1.0, axis_size).reshape(1, axis_size, 1)
    g_c = jnp.sum(g_c_prob * coord_pt, axis=1)                # (N, nmaps)
    return g_c, g_c_prob


def get_gaussian_maps(mu, shape_hw, inv_std):
    # mode == 'gaus'
    mu_y, mu_x = mu[:, :, 0:1], mu[:, :, 1:2]
    y = jnp.linspace(-1.0, 1.0, shape_hw[0]).reshape(1, 1, shape_hw[0])
    x = jnp.linspace(-1.0, 1.0, shape_hw[1]).reshape(1, 1, shape_hw[1])
    g_y = jnp.exp(-jnp.sqrt(1e-4 + jnp.abs((mu_y - y) * inv_std)))  # (N,nmaps,H)
    g_x = jnp.exp(-jnp.sqrt(1e-4 + jnp.abs((mu_x - x) * inv_std)))  # (N,nmaps,W)
    return jnp.matmul(g_y[..., :, None], g_x[..., None, :])         # (N,nmaps,H,W)


# ------------------------------ full forward ------------------------------- #

def encoder_cfgs(num_filter):
    f = num_filter
    return (
        (3,     f,     7, 1, (3, 3)),
        (f,     f,     3, 1, (1, 1)),
        (f,     2 * f, 3, 2, (1, 1)),
        (2 * f, 2 * f, 3, 1, (1, 1)),
        (2 * f, 4 * f, 3, 2, (1, 1)),
        (4 * f, 4 * f, 3, 1, (1, 1)),
        (4 * f, 8 * f, 3, 2, (1, 1)),
        (8 * f, 8 * f, 3, 1, (1, 1)),
    )


@partial(jax.jit, static_argnames=("cfgs", "map_sizes"))
def pose_encoder_forward(x_nchw, params, convf_params, inv_std, cfgs, map_sizes):
    # PyTorch module I/O is NCHW; compute internally in NHWC.
    x = jnp.transpose(x_nchw, (0, 2, 3, 1)).astype(jnp.float32)
    for (w, _b, gamma, beta), (_, _, _, stride, pad) in zip(params, cfgs):
        # conv bias `_b` intentionally unused: train-mode BN cancels it exactly.
        x = conv_bn_relu(x, w, gamma, beta, stride, pad)
    wf, bf = convf_params
    x = conv1x1(x, wf, bf)                                    # (N, H, W, nmaps)
    gauss_y, _ = get_coord(x, 2, x.shape[1])
    gauss_x, _ = get_coord(x, 1, x.shape[2])
    gauss_mu = jnp.stack([gauss_y, gauss_x], axis=2)          # (N, nmaps, 2)
    gauss_xy = None
    for ms in map_sizes:
        gauss_xy = get_gaussian_maps(gauss_mu, (ms, ms), 1.0 / inv_std)
    return gauss_mu, gauss_xy


# ------------------------------- reference --------------------------------- #

def _bf16(v):
    # Emulate the kernel's bf16 MXU operands / bf16 activation storage.
    return v.astype(jnp.bfloat16).astype(jnp.float32)


def reference_forward(x_nchw, params, convf_params, inv_std, cfgs, map_sizes):
    x = x_nchw.astype(jnp.float32)
    for (w, b, g, bt), (_, _, _, s, (ph, pw)) in zip(params, cfgs):
        wt = jnp.transpose(_bf16(w), (3, 2, 0, 1))            # OIHW
        y = jax.lax.conv_general_dilated(
            _bf16(x), wt, (s, s), ((ph, ph), (pw, pw)),
            dimension_numbers=("NCHW", "OIHW", "NCHW"))
        y = y + b[None, :, None, None]                        # cancelled by BN
        mean = jnp.mean(y, axis=(0, 2, 3), keepdims=True)
        var = jnp.mean((y - mean) ** 2, axis=(0, 2, 3), keepdims=True)
        y = (y - mean) * jax.lax.rsqrt(var + EPS)
        y = y * g[None, :, None, None] + bt[None, :, None, None]
        x = _bf16(jnp.maximum(y, 0.0))
    wf, bf = convf_params
    xf = _bf16(jnp.transpose(x, (0, 2, 3, 1)))                # NHWC
    y = jnp.einsum("nhwc,cm->nhwm", xf, _bf16(wf)) + bf
    gauss_y, _ = get_coord(y, 2, y.shape[1])
    gauss_x, _ = get_coord(y, 1, y.shape[2])
    gauss_mu = jnp.stack([gauss_y, gauss_x], axis=2)
    gauss_xy = None
    for ms in map_sizes:
        gauss_xy = get_gaussian_maps(gauss_mu, (ms, ms), 1.0 / inv_std)
    return gauss_mu, gauss_xy


# --------------------------------- params ---------------------------------- #

def init_params(key, cfgs, nmaps):
    params = []
    for i, (ci, co, k, _s, _p) in enumerate(cfgs):
        kw_key, kb_key = jax.random.split(jax.random.fold_in(key, i))
        w = jax.random.normal(kw_key, (k, k, ci, co), jnp.float32) * 0.05
        b = jax.random.normal(kb_key, (co,), jnp.float32) * 0.01
        gamma = jnp.ones((co,), jnp.float32)
        beta = jnp.zeros((co,), jnp.float32)
        params.append((w, b, gamma, beta))
    kf1, kf2 = jax.random.split(jax.random.fold_in(key, 1000))
    fin = cfgs[-1][1]
    wf = jax.random.normal(kf1, (fin, nmaps), jnp.float32) * 0.1
    bf = jax.random.normal(kf2, (nmaps,), jnp.float32) * 0.01
    return tuple(params), (wf, bf)


if __name__ == "__main__":
    key = jax.random.PRNGKey(0)
    num_filter = 4
    nmaps = 1
    inv_std = 10.0
    map_sizes = (16,)
    cfgs = encoder_cfgs(num_filter)
    params, convf_params = init_params(key, cfgs, nmaps)

    x = jax.random.normal(jax.random.fold_in(key, 123), (2, 3, 16, 16), jnp.float32)

    gauss_mu, gauss_xy = pose_encoder_forward(
        x, params, convf_params, inv_std, cfgs, map_sizes)
    gauss_mu, gauss_xy = jax.block_until_ready((gauss_mu, gauss_xy))

    assert gauss_mu.shape == (2, nmaps, 2), gauss_mu.shape
    assert gauss_xy.shape == (2, nmaps, 16, 16), gauss_xy.shape

    mu_ref, xy_ref = reference_forward(
        x, params, convf_params, inv_std, cfgs, map_sizes)
    mu_ref, xy_ref = jax.block_until_ready((mu_ref, xy_ref))

    if not jnp.allclose(gauss_mu, mu_ref, atol=5e-3, rtol=5e-3):
        raise AssertionError(
            f"gauss_mu mismatch, max err {float(jnp.max(jnp.abs(gauss_mu - mu_ref)))}")
    if not jnp.allclose(gauss_xy, xy_ref, atol=5e-3, rtol=5e-3):
        raise AssertionError(
            f"gauss_xy mismatch, max err {float(jnp.max(jnp.abs(gauss_xy - xy_ref)))}")

    print("KERNEL_OK")
</pallas_src>

<mosaic_0001>
module attributes {stable_mosaic.version = 11 : i64} {
  func.func @_bn_affine_relu_kernel(%arg0: i32, %arg1: memref<512x128xf32, #tpu.memory_space<vmem>>, %arg2: memref<1x128xf32, #tpu.memory_space<vmem>>, %arg3: memref<1x128xf32, #tpu.memory_space<vmem>>, %arg4: memref<512x128xbf16, #tpu.memory_space<vmem>>) attributes {dimension_semantics = [#tpu.dimension_semantics<parallel>], iteration_bounds = array<i64: 1>, scalar_prefetch = 0 : i64, scratch_operands = 0 : i64, tpu.core_type = #tpu.core_type<tc>, window_params = [{transform_indices = @transform_0, window_bounds = array<i64: 512, 128>}, {pipeline_mode = #tpu.pipeline_mode<synchronous>, transform_indices = @transform_1, window_bounds = array<i64: 1, 128>}, {pipeline_mode = #tpu.pipeline_mode<synchronous>, transform_indices = @transform_2, window_bounds = array<i64: 1, 128>}, {transform_indices = @transform_3, window_bounds = array<i64: 512, 128>}]} {
    %c0 = arith.constant 0 : index
    %c0_0 = arith.constant 0 : index
    %0 = vector.load %arg1[%c0, %c0_0] : memref<512x128xf32, #tpu.memory_space<vmem>>, vector<512x128xf32>
    %c0_1 = arith.constant 0 : index
    %c0_2 = arith.constant 0 : index
    %1 = vector.load %arg2[%c0_1, %c0_2] : memref<1x128xf32, #tpu.memory_space<vmem>>, vector<1x128xf32>
    %2 = vector.broadcast %1 : vector<1x128xf32> to vector<512x128xf32>
    %3 = arith.mulf %0, %2 : vector<512x128xf32>
    %c0_3 = arith.constant 0 : index
    %c0_4 = arith.constant 0 : index
    %4 = vector.load %arg3[%c0_3, %c0_4] : memref<1x128xf32, #tpu.memory_space<vmem>>, vector<1x128xf32>
    %5 = vector.broadcast %4 : vector<1x128xf32> to vector<512x128xf32>
    %6 = arith.addf %3, %5 : vector<512x128xf32>
    %cst = arith.constant 0.000000e+00 : f32
    %7 = vector.broadcast %cst : f32 to vector<512x128xf32>
    %8 = arith.maximumf %6, %7 : vector<512x128xf32>
    %9 = arith.truncf %8 : vector<512x128xf32> to vector<512x128xbf16>
    %c0_5 = arith.constant 0 : index
    %c0_6 = arith.constant 0 : index
    %10 = vector.load %arg4[%c0_5, %c0_6] : memref<512x128xbf16, #tpu.memory_space<vmem>>, vector<512x128xbf16>
    tpu.vector_store %arg4[%c0_5, %c0_6], %9 {strides = array<i32>} : memref<512x128xbf16, #tpu.memory_space<vmem>>, vector<512x128xbf16>,
    return
  }
  func.func @transform_0(%arg0: i32) -> (i32, i32) {
    %c0_i32 = arith.constant 0 : i32
    %c0_i32_0 = arith.constant 0 : i32
    return %arg0, %c0_i32 : i32, i32
  }
  func.func @transform_1(%arg0: i32) -> (i32, i32) {
    %c0_i32 = arith.constant 0 : i32
    %c0_i32_0 = arith.constant 0 : i32
    %c0_i32_1 = arith.constant 0 : i32
    return %c0_i32, %c0_i32_0 : i32, i32
  }
  func.func @transform_2(%arg0: i32) -> (i32, i32) {
    %c0_i32 = arith.constant 0 : i32
    %c0_i32_0 = arith.constant 0 : i32
    %c0_i32_1 = arith.constant 0 : i32
    return %c0_i32, %c0_i32_0 : i32, i32
  }
  func.func @transform_3(%arg0: i32) -> (i32, i32) {
    %c0_i32 = arith.constant 0 : i32
    %c0_i32_0 = arith.constant 0 : i32
    return %arg0, %c0_i32 : i32, i32
  }
}

module attributes {stable_mosaic.version = 11 : i64} {
  func.func @_conv_matmul_stats_kernel(%arg0: i32, %arg1: memref<512x256xbf16, #tpu.memory_space<vmem>>, %arg2: memref<256x128xbf16, #tpu.memory_space<vmem>>, %arg3: memref<512x128xf32, #tpu.memory_space<vmem>>, %arg4: memref<1x2x128xf32, #tpu.memory_space<vmem>>) attributes {dimension_semantics = [#tpu.dimension_semantics<parallel>], iteration_bounds = array<i64: 1>, scalar_prefetch = 0 : i64, scratch_operands = 0 : i64, tpu.core_type = #tpu.core_type<tc>, window_params = [{transform_indices = @transform_0, window_bounds = array<i64: 512, 256>}, {pipeline_mode = #tpu.pipeline_mode<synchronous>, transform_indices = @transform_1, window_bounds = array<i64: 256, 128>}, {transform_indices = @transform_2, window_bounds = array<i64: 512, 128>}, {transform_indices = @transform_3, window_bounds = array<i64: 1, 2, 128>}]} {
    %c0 = arith.constant 0 : index
    %c0_0 = arith.constant 0 : index
    %0 = vector.load %arg1[%c0, %c0_0] : memref<512x256xbf16, #tpu.memory_space<vmem>>, vector<512x256xbf16>
    %c0_1 = arith.constant 0 : index
    %c0_2 = arith.constant 0 : index
    %1 = vector.load %arg2[%c0_1, %c0_2] : memref<256x128xbf16, #tpu.memory_space<vmem>>, vector<256x128xbf16>
    %cst = arith.constant dense<0.000000e+00> : vector<512x128xf32>
    %2 = tpu.matmul %0, %1, %cst {dimension_numbers = #tpu.dot_dimension_numbers<[1], [0], [0], [1], [0, 0, 1, 1], [], []>} : vector<512x256xbf16>, vector<256x128xbf16>, vector<512x128xf32> -> vector<512x128xf32>
    %c0_3 = arith.constant 0 : index
    %c0_4 = arith.constant 0 : index
    %3 = vector.load %arg3[%c0_3, %c0_4] : memref<512x128xf32, #tpu.memory_space<vmem>>, vector<512x128xf32>
    tpu.vector_store %arg3[%c0_3, %c0_4], %2 {strides = array<i32>} : memref<512x128xf32, #tpu.memory_space<vmem>>, vector<512x128xf32>,
    %cst_5 = arith.constant dense<0.000000e+00> : vector<128xf32>
    %4 = vector.multi_reduction <add>, %2, %cst_5 [0] : vector<512x128xf32> to vector<128xf32>
    %5 = vector.shape_cast %4 : vector<128xf32> to vector<1x128xf32>
    %6 = arith.mulf %2, %2 : vector<512x128xf32>
    %cst_6 = arith.constant dense<0.000000e+00> : vector<128xf32>
    %7 = vector.multi_reduction <add>, %6, %cst_6 [0] : vector<512x128xf32> to vector<128xf32>
    %8 = vector.shape_cast %7 : vector<128xf32> to vector<1x128xf32>
    %9 = tpu.concatenate %5, %8 in 0 : vector<1x128xf32>, vector<1x128xf32> -> vector<2x128xf32>
    %c0_7 = arith.constant 0 : index
    %c0_8 = arith.constant 0 : index
    %c0_9 = arith.constant 0 : index
    %10 = vector.load %arg4[%c0_7, %c0_8, %c0_9] : memref<1x2x128xf32, #tpu.memory_space<vmem>>, vector<1x2x128xf32>
    %11 = vector.shape_cast %10 : vector<1x2x128xf32> to vector<2x128xf32>
    %12 = vector.shape_cast %9 : vector<2x128xf32> to vector<1x2x128xf32>
    tpu.vector_store %arg4[%c0_7, %c0_8, %c0_9], %12 {strides = array<i32>} : memref<1x2x128xf32, #tpu.memory_space<vmem>>, vector<1x2x128xf32>,
    return
  }
  func.func @transform_0(%arg0: i32) -> (i32, i32) {
    %c0_i32 = arith.constant 0 : i32
    %c0_i32_0 = arith.constant 0 : i32
    return %arg0, %c0_i32 : i32, i32
  }
  func.func @transform_1(%arg0: i32) -> (i32, i32) {
    %c0_i32 = arith.constant 0 : i32
    %c0_i32_0 = arith.constant 0 : i32
    %c0_i32_1 = arith.constant 0 : i32
    return %c0_i32, %c0_i32_0 : i32, i32
  }
  func.func @transform_2(%arg0: i32) -> (i32, i32) {
    %c0_i32 = arith.constant 0 : i32
    %c0_i32_0 = arith.constant 0 : i32
    return %arg0, %c0_i32 : i32, i32
  }
  func.func @transform_3(%arg0: i32) -> (i32, i32, i32) {
    %c0_i32 = arith.constant 0 : i32
    %c0_i32_0 = arith.constant 0 : i32
    %c0_i32_1 = arith.constant 0 : i32
    return %arg0, %c0_i32, %c0_i32_0 : i32, i32, i32
  }
}

module attributes {stable_mosaic.version = 11 : i64} {
  func.func @_conv_matmul_stats_kernel(%arg0: i32, %arg1: memref<512x128xbf16, #tpu.memory_space<vmem>>, %arg2: memref<128x128xbf16, #tpu.memory_space<vmem>>, %arg3: memref<512x128xf32, #tpu.memory_space<vmem>>, %arg4: memref<1x2x128xf32, #tpu.memory_space<vmem>>) attributes {dimension_semantics = [#tpu.dimension_semantics<parallel>], iteration_bounds = array<i64: 1>, scalar_prefetch = 0 : i64, scratch_operands = 0 : i64, tpu.core_type = #tpu.core_type<tc>, window_params = [{transform_indices = @transform_0, window_bounds = array<i64: 512, 128>}, {pipeline_mode = #tpu.pipeline_mode<synchronous>, transform_indices = @transform_1, window_bounds = array<i64: 128, 128>}, {transform_indices = @transform_2, window_bounds = array<i64: 512, 128>}, {transform_indices = @transform_3, window_bounds = array<i64: 1, 2, 128>}]} {
    %c0 = arith.constant 0 : index
    %c0_0 = arith.constant 0 : index
    %0 = vector.load %arg1[%c0, %c0_0] : memref<512x128xbf16, #tpu.memory_space<vmem>>, vector<512x128xbf16>
    %c0_1 = arith.constant 0 : index
    %c0_2 = arith.constant 0 : index
    %1 = vector.load %arg2[%c0_1, %c0_2] : memref<128x128xbf16, #tpu.memory_space<vmem>>, vector<128x128xbf16>
    %cst = arith.constant dense<0.000000e+00> : vector<512x128xf32>
    %2 = tpu.matmul %0, %1, %cst {dimension_numbers = #tpu.dot_dimension_numbers<[1], [0], [0], [1], [0, 0, 1, 1], [], []>} : vector<512x128xbf16>, vector<128x128xbf16>, vector<512x128xf32> -> vector<512x128xf32>
    %c0_3 = arith.constant 0 : index
    %c0_4 = arith.constant 0 : index
    %3 = vector.load %arg3[%c0_3, %c0_4] : memref<512x128xf32, #tpu.memory_space<vmem>>, vector<512x128xf32>
    tpu.vector_store %arg3[%c0_3, %c0_4], %2 {strides = array<i32>} : memref<512x128xf32, #tpu.memory_space<vmem>>, vector<512x128xf32>,
    %cst_5 = arith.constant dense<0.000000e+00> : vector<128xf32>
    %4 = vector.multi_reduction <add>, %2, %cst_5 [0] : vector<512x128xf32> to vector<128xf32>
    %5 = vector.shape_cast %4 : vector<128xf32> to vector<1x128xf32>
    %6 = arith.mulf %2, %2 : vector<512x128xf32>
    %cst_6 = arith.constant dense<0.000000e+00> : vector<128xf32>
    %7 = vector.multi_reduction <add>, %6, %cst_6 [0] : vector<512x128xf32> to vector<128xf32>
    %8 = vector.shape_cast %7 : vector<128xf32> to vector<1x128xf32>
    %9 = tpu.concatenate %5, %8 in 0 : vector<1x128xf32>, vector<1x128xf32> -> vector<2x128xf32>
    %c0_7 = arith.constant 0 : index
    %c0_8 = arith.constant 0 : index
    %c0_9 = arith.constant 0 : index
    %10 = vector.load %arg4[%c0_7, %c0_8, %c0_9] : memref<1x2x128xf32, #tpu.memory_space<vmem>>, vector<1x2x128xf32>
    %11 = vector.shape_cast %10 : vector<1x2x128xf32> to vector<2x128xf32>
    %12 = vector.shape_cast %9 : vector<2x128xf32> to vector<1x2x128xf32>
    tpu.vector_store %arg4[%c0_7, %c0_8, %c0_9], %12 {strides = array<i32>} : memref<1x2x128xf32, #tpu.memory_space<vmem>>, vector<1x2x128xf32>,
    return
  }
  func.func @transform_0(%arg0: i32) -> (i32, i32) {
    %c0_i32 = arith.constant 0 : i32
    %c0_i32_0 = arith.constant 0 : i32
    return %arg0, %c0_i32 : i32, i32
  }
  func.func @transform_1(%arg0: i32) -> (i32, i32) {
    %c0_i32 = arith.constant 0 : i32
    %c0_i32_0 = arith.constant 0 : i32
    %c0_i32_1 = arith.constant 0 : i32
    return %c0_i32, %c0_i32_0 : i32, i32
  }
  func.func @transform_2(%arg0: i32) -> (i32, i32) {
    %c0_i32 = arith.constant 0 : i32
    %c0_i32_0 = arith.constant 0 : i32
    return %arg0, %c0_i32 : i32, i32
  }
  func.func @transform_3(%arg0: i32) -> (i32, i32, i32) {
    %c0_i32 = arith.constant 0 : i32
    %c0_i32_0 = arith.constant 0 : i32
    %c0_i32_1 = arith.constant 0 : i32
    return %arg0, %c0_i32, %c0_i32_0 : i32, i32, i32
  }
}

module attributes {stable_mosaic.version = 11 : i64} {
  func.func @_conv_matmul_stats_kernel(%arg0: i32, %arg1: memref<128x128xbf16, #tpu.memory_space<vmem>>, %arg2: memref<128x128xbf16, #tpu.memory_space<vmem>>, %arg3: memref<128x128xf32, #tpu.memory_space<vmem>>, %arg4: memref<1x2x128xf32, #tpu.memory_space<vmem>>) attributes {dimension_semantics = [#tpu.dimension_semantics<parallel>], iteration_bounds = array<i64: 1>, scalar_prefetch = 0 : i64, scratch_operands = 0 : i64, tpu.core_type = #tpu.core_type<tc>, window_params = [{transform_indices = @transform_0, window_bounds = array<i64: 128, 128>}, {pipeline_mode = #tpu.pipeline_mode<synchronous>, transform_indices = @transform_1, window_bounds = array<i64: 128, 128>}, {transform_indices = @transform_2, window_bounds = array<i64: 128, 128>}, {transform_indices = @transform_3, window_bounds = array<i64: 1, 2, 128>}]} {
    %c0 = arith.constant 0 : index
    %c0_0 = arith.constant 0 : index
    %0 = vector.load %arg1[%c0, %c0_0] : memref<128x128xbf16, #tpu.memory_space<vmem>>, vector<128x128xbf16>
    %c0_1 = arith.constant 0 : index
    %c0_2 = arith.constant 0 : index
    %1 = vector.load %arg2[%c0_1, %c0_2] : memref<128x128xbf16, #tpu.memory_space<vmem>>, vector<128x128xbf16>
    %cst = arith.constant dense<0.000000e+00> : vector<128x128xf32>
    %2 = tpu.matmul %0, %1, %cst {dimension_numbers = #tpu.dot_dimension_numbers<[1], [0], [0], [1], [0, 0, 1, 1], [], []>} : vector<128x128xbf16>, vector<128x128xbf16>, vector<128x128xf32> -> vector<128x128xf32>
    %c0_3 = arith.constant 0 : index
    %c0_4 = arith.constant 0 : index
    %3 = vector.load %arg3[%c0_3, %c0_4] : memref<128x128xf32, #tpu.memory_space<vmem>>, vector<128x128xf32>
    tpu.vector_store %arg3[%c0_3, %c0_4], %2 {strides = array<i32>} : memref<128x128xf32, #tpu.memory_space<vmem>>, vector<128x128xf32>,
    %cst_5 = arith.constant dense<0.000000e+00> : vector<128xf32>
    %4 = vector.multi_reduction <add>, %2, %cst_5 [0] : vector<128x128xf32> to vector<128xf32>
    %5 = vector.shape_cast %4 : vector<128xf32> to vector<1x128xf32>
    %6 = arith.mulf %2, %2 : vector<128x128xf32>
    %cst_6 = arith.constant dense<0.000000e+00> : vector<128xf32>
    %7 = vector.multi_reduction <add>, %6, %cst_6 [0] : vector<128x128xf32> to vector<128xf32>
    %8 = vector.shape_cast %7 : vector<128xf32> to vector<1x128xf32>
    %9 = tpu.concatenate %5, %8 in 0 : vector<1x128xf32>, vector<1x128xf32> -> vector<2x128xf32>
    %c0_7 = arith.constant 0 : index
    %c0_8 = arith.constant 0 : index
    %c0_9 = arith.constant 0 : index
    %10 = vector.load %arg4[%c0_7, %c0_8, %c0_9] : memref<1x2x128xf32, #tpu.memory_space<vmem>>, vector<1x2x128xf32>
    %11 = vector.shape_cast %10 : vector<1x2x128xf32> to vector<2x128xf32>
    %12 = vector.shape_cast %9 : vector<2x128xf32> to vector<1x2x128xf32>
    tpu.vector_store %arg4[%c0_7, %c0_8, %c0_9], %12 {strides = array<i32>} : memref<1x2x128xf32, #tpu.memory_space<vmem>>, vector<1x2x128xf32>,
    return
  }
  func.func @transform_0(%arg0: i32) -> (i32, i32) {
    %c0_i32 = arith.constant 0 : i32
    %c0_i32_0 = arith.constant 0 : i32
    return %arg0, %c0_i32 : i32, i32
  }
  func.func @transform_1(%arg0: i32) -> (i32, i32) {
    %c0_i32 = arith.constant 0 : i32
    %c0_i32_0 = arith.constant 0 : i32
    %c0_i32_1 = arith.constant 0 : i32
    return %c0_i32, %c0_i32_0 : i32, i32
  }
  func.func @transform_2(%arg0: i32) -> (i32, i32) {
    %c0_i32 = arith.constant 0 : i32
    %c0_i32_0 = arith.constant 0 : i32
    return %arg0, %c0_i32 : i32, i32
  }
  func.func @transform_3(%arg0: i32) -> (i32, i32, i32) {
    %c0_i32 = arith.constant 0 : i32
    %c0_i32_0 = arith.constant 0 : i32
    %c0_i32_1 = arith.constant 0 : i32
    return %arg0, %c0_i32, %c0_i32_0 : i32, i32, i32
  }
}

module attributes {stable_mosaic.version = 11 : i64} {
  func.func @_bn_affine_relu_kernel(%arg0: i32, %arg1: memref<128x128xf32, #tpu.memory_space<vmem>>, %arg2: memref<1x128xf32, #tpu.memory_space<vmem>>, %arg3: memref<1x128xf32, #tpu.memory_space<vmem>>, %arg4: memref<128x128xbf16, #tpu.memory_space<vmem>>) attributes {dimension_semantics = [#tpu.dimension_semantics<parallel>], iteration_bounds = array<i64: 1>, scalar_prefetch = 0 : i64, scratch_operands = 0 : i64, tpu.core_type = #tpu.core_type<tc>, window_params = [{transform_indices = @transform_0, window_bounds = array<i64: 128, 128>}, {pipeline_mode = #tpu.pipeline_mode<synchronous>, transform_indices = @transform_1, window_bounds = array<i64: 1, 128>}, {pipeline_mode = #tpu.pipeline_mode<synchronous>, transform_indices = @transform_2, window_bounds = array<i64: 1, 128>}, {transform_indices = @transform_3, window_bounds = array<i64: 128, 128>}]} {
    %c0 = arith.constant 0 : index
    %c0_0 = arith.constant 0 : index
    %0 = vector.load %arg1[%c0, %c0_0] : memref<128x128xf32, #tpu.memory_space<vmem>>, vector<128x128xf32>
    %c0_1 = arith.constant 0 : index
    %c0_2 = arith.constant 0 : index
    %1 = vector.load %arg2[%c0_1, %c0_2] : memref<1x128xf32, #tpu.memory_space<vmem>>, vector<1x128xf32>
    %2 = vector.broadcast %1 : vector<1x128xf32> to vector<128x128xf32>
    %3 = arith.mulf %0, %2 : vector<128x128xf32>
    %c0_3 = arith.constant 0 : index
    %c0_4 = arith.constant 0 : index
    %4 = vector.load %arg3[%c0_3, %c0_4] : memref<1x128xf32, #tpu.memory_space<vmem>>, vector<1x128xf32>
    %5 = vector.broadcast %4 : vector<1x128xf32> to vector<128x128xf32>
    %6 = arith.addf %3, %5 : vector<128x128xf32>
    %cst = arith.constant 0.000000e+00 : f32
    %7 = vector.broadcast %cst : f32 to vector<128x128xf32>
    %8 = arith.maximumf %6, %7 : vector<128x128xf32>
    %9 = arith.truncf %8 : vector<128x128xf32> to vector<128x128xbf16>
    %c0_5 = arith.constant 0 : index
    %c0_6 = arith.constant 0 : index
    %10 = vector.load %arg4[%c0_5, %c0_6] : memref<128x128xbf16, #tpu.memory_space<vmem>>, vector<128x128xbf16>
    tpu.vector_store %arg4[%c0_5, %c0_6], %9 {strides = array<i32>} : memref<128x128xbf16, #tpu.memory_space<vmem>>, vector<128x128xbf16>,
    return
  }
  func.func @transform_0(%arg0: i32) -> (i32, i32) {
    %c0_i32 = arith.constant 0 : i32
    %c0_i32_0 = arith.constant 0 : i32
    return %arg0, %c0_i32 : i32, i32
  }
  func.func @transform_1(%arg0: i32) -> (i32, i32) {
    %c0_i32 = arith.constant 0 : i32
    %c0_i32_0 = arith.constant 0 : i32
    %c0_i32_1 = arith.constant 0 : i32
    return %c0_i32, %c0_i32_0 : i32, i32
  }
  func.func @transform_2(%arg0: i32) -> (i32, i32) {
    %c0_i32 = arith.constant 0 : i32
    %c0_i32_0 = arith.constant 0 : i32
    %c0_i32_1 = arith.constant 0 : i32
    return %c0_i32, %c0_i32_0 : i32, i32
  }
  func.func @transform_3(%arg0: i32) -> (i32, i32) {
    %c0_i32 = arith.constant 0 : i32
    %c0_i32_0 = arith.constant 0 : i32
    return %arg0, %c0_i32 : i32, i32
  }
}

module attributes {stable_mosaic.version = 11 : i64} {
  func.func @_conv_matmul_stats_kernel(%arg0: i32, %arg1: memref<32x128xbf16, #tpu.memory_space<vmem>>, %arg2: memref<128x128xbf16, #tpu.memory_space<vmem>>, %arg3: memref<32x128xf32, #tpu.memory_space<vmem>>, %arg4: memref<1x2x128xf32, #tpu.memory_space<vmem>>) attributes {dimension_semantics = [#tpu.dimension_semantics<parallel>], iteration_bounds = array<i64: 1>, scalar_prefetch = 0 : i64, scratch_operands = 0 : i64, tpu.core_type = #tpu.core_type<tc>, window_params = [{transform_indices = @transform_0, window_bounds = array<i64: 32, 128>}, {pipeline_mode = #tpu.pipeline_mode<synchronous>, transform_indices = @transform_1, window_bounds = array<i64: 128, 128>}, {transform_indices = @transform_2, window_bounds = array<i64: 32, 128>}, {transform_indices = @transform_3, window_bounds = array<i64: 1, 2, 128>}]} {
    %c0 = arith.constant 0 : index
    %c0_0 = arith.constant 0 : index
    %0 = vector.load %arg1[%c0, %c0_0] : memref<32x128xbf16, #tpu.memory_space<vmem>>, vector<32x128xbf16>
    %c0_1 = arith.constant 0 : index
    %c0_2 = arith.constant 0 : index
    %1 = vector.load %arg2[%c0_1, %c0_2] : memref<128x128xbf16, #tpu.memory_space<vmem>>, vector<128x128xbf16>
    %cst = arith.constant dense<0.000000e+00> : vector<32x128xf32>
    %2 = tpu.matmul %0, %1, %cst {dimension_numbers = #tpu.dot_dimension_numbers<[1], [0], [0], [1], [0, 0, 1, 1], [], []>} : vector<32x128xbf16>, vector<128x128xbf16>, vector<32x128xf32> -> vector<32x128xf32>
    %c0_3 = arith.constant 0 : index
    %c0_4 = arith.constant 0 : index
    %3 = vector.load %arg3[%c0_3, %c0_4] : memref<32x128xf32, #tpu.memory_space<vmem>>, vector<32x128xf32>
    tpu.vector_store %arg3[%c0_3, %c0_4], %2 {strides = array<i32>} : memref<32x128xf32, #tpu.memory_space<vmem>>, vector<32x128xf32>,
    %cst_5 = arith.constant dense<0.000000e+00> : vector<128xf32>
    %4 = vector.multi_reduction <add>, %2, %cst_5 [0] : vector<32x128xf32> to vector<128xf32>
    %5 = vector.shape_cast %4 : vector<128xf32> to vector<1x128xf32>
    %6 = arith.mulf %2, %2 : vector<32x128xf32>
    %cst_6 = arith.constant dense<0.000000e+00> : vector<128xf32>
    %7 = vector.multi_reduction <add>, %6, %cst_6 [0] : vector<32x128xf32> to vector<128xf32>
    %8 = vector.shape_cast %7 : vector<128xf32> to vector<1x128xf32>
    %9 = tpu.concatenate %5, %8 in 0 : vector<1x128xf32>, vector<1x128xf32> -> vector<2x128xf32>
    %c0_7 = arith.constant 0 : index
    %c0_8 = arith.constant 0 : index
    %c0_9 = arith.constant 0 : index
    %10 = vector.load %arg4[%c0_7, %c0_8, %c0_9] : memref<1x2x128xf32, #tpu.memory_space<vmem>>, vector<1x2x128xf32>
    %11 = vector.shape_cast %10 : vector<1x2x128xf32> to vector<2x128xf32>
    %12 = vector.shape_cast %9 : vector<2x128xf32> to vector<1x2x128xf32>
    tpu.vector_store %arg4[%c0_7, %c0_8, %c0_9], %12 {strides = array<i32>} : memref<1x2x128xf32, #tpu.memory_space<vmem>>, vector<1x2x128xf32>,
    return
  }
  func.func @transform_0(%arg0: i32) -> (i32, i32) {
    %c0_i32 = arith.constant 0 : i32
    %c0_i32_0 = arith.constant 0 : i32
    return %arg0, %c0_i32 : i32, i32
  }
  func.func @transform_1(%arg0: i32) -> (i32, i32) {
    %c0_i32 = arith.constant 0 : i32
    %c0_i32_0 = arith.constant 0 : i32
    %c0_i32_1 = arith.constant 0 : i32
    return %c0_i32, %c0_i32_0 : i32, i32
  }
  func.func @transform_2(%arg0: i32) -> (i32, i32) {
    %c0_i32 = arith.constant 0 : i32
    %c0_i32_0 = arith.constant 0 : i32
    return %arg0, %c0_i32 : i32, i32
  }
  func.func @transform_3(%arg0: i32) -> (i32, i32, i32) {
    %c0_i32 = arith.constant 0 : i32
    %c0_i32_0 = arith.constant 0 : i32
    %c0_i32_1 = arith.constant 0 : i32
    return %arg0, %c0_i32, %c0_i32_0 : i32, i32, i32
  }
}

module attributes {stable_mosaic.version = 11 : i64} {
  func.func @_bn_affine_relu_kernel(%arg0: i32, %arg1: memref<32x128xf32, #tpu.memory_space<vmem>>, %arg2: memref<1x128xf32, #tpu.memory_space<vmem>>, %arg3: memref<1x128xf32, #tpu.memory_space<vmem>>, %arg4: memref<32x128xbf16, #tpu.memory_space<vmem>>) attributes {dimension_semantics = [#tpu.dimension_semantics<parallel>], iteration_bounds = array<i64: 1>, scalar_prefetch = 0 : i64, scratch_operands = 0 : i64, tpu.core_type = #tpu.core_type<tc>, window_params = [{transform_indices = @transform_0, window_bounds = array<i64: 32, 128>}, {pipeline_mode = #tpu.pipeline_mode<synchronous>, transform_indices = @transform_1, window_bounds = array<i64: 1, 128>}, {pipeline_mode = #tpu.pipeline_mode<synchronous>, transform_indices = @transform_2, window_bounds = array<i64: 1, 128>}, {transform_indices = @transform_3, window_bounds = array<i64: 32, 128>}]} {
    %c0 = arith.constant 0 : index
    %c0_0 = arith.constant 0 : index
    %0 = vector.load %arg1[%c0, %c0_0] : memref<32x128xf32, #tpu.memory_space<vmem>>, vector<32x128xf32>
    %c0_1 = arith.constant 0 : index
    %c0_2 = arith.constant 0 : index
    %1 = vector.load %arg2[%c0_1, %c0_2] : memref<1x128xf32, #tpu.memory_space<vmem>>, vector<1x128xf32>
    %2 = vector.broadcast %1 : vector<1x128xf32> to vector<32x128xf32>
    %3 = arith.mulf %0, %2 : vector<32x128xf32>
    %c0_3 = arith.constant 0 : index
    %c0_4 = arith.constant 0 : index
    %4 = vector.load %arg3[%c0_3, %c0_4] : memref<1x128xf32, #tpu.memory_space<vmem>>, vector<1x128xf32>
    %5 = vector.broadcast %4 : vector<1x128xf32> to vector<32x128xf32>
    %6 = arith.addf %3, %5 : vector<32x128xf32>
    %cst = arith.constant 0.000000e+00 : f32
    %7 = vector.broadcast %cst : f32 to vector<32x128xf32>
    %8 = arith.maximumf %6, %7 : vector<32x128xf32>
    %9 = arith.truncf %8 : vector<32x128xf32> to vector<32x128xbf16>
    %c0_5 = arith.constant 0 : index
    %c0_6 = arith.constant 0 : index
    %10 = vector.load %arg4[%c0_5, %c0_6] : memref<32x128xbf16, #tpu.memory_space<vmem>>, vector<32x128xbf16>
    tpu.vector_store %arg4[%c0_5, %c0_6], %9 {strides = array<i32>} : memref<32x128xbf16, #tpu.memory_space<vmem>>, vector<32x128xbf16>,
    return
  }
  func.func @transform_0(%arg0: i32) -> (i32, i32) {
    %c0_i32 = arith.constant 0 : i32
    %c0_i32_0 = arith.constant 0 : i32
    return %arg0, %c0_i32 : i32, i32
  }
  func.func @transform_1(%arg0: i32) -> (i32, i32) {
    %c0_i32 = arith.constant 0 : i32
    %c0_i32_0 = arith.constant 0 : i32
    %c0_i32_1 = arith.constant 0 : i32
    return %c0_i32, %c0_i32_0 : i32, i32
  }
  func.func @transform_2(%arg0: i32) -> (i32, i32) {
    %c0_i32 = arith.constant 0 : i32
    %c0_i32_0 = arith.constant 0 : i32
    %c0_i32_1 = arith.constant 0 : i32
    return %c0_i32, %c0_i32_0 : i32, i32
  }
  func.func @transform_3(%arg0: i32) -> (i32, i32) {
    %c0_i32 = arith.constant 0 : i32
    %c0_i32_0 = arith.constant 0 : i32
    return %arg0, %c0_i32 : i32, i32
  }
}

module attributes {stable_mosaic.version = 11 : i64} {
  func.func @_conv_matmul_stats_kernel(%arg0: i32, %arg1: memref<32x256xbf16, #tpu.memory_space<vmem>>, %arg2: memref<256x128xbf16, #tpu.memory_space<vmem>>, %arg3: memref<32x128xf32, #tpu.memory_space<vmem>>, %arg4: memref<1x2x128xf32, #tpu.memory_space<vmem>>) attributes {dimension_semantics = [#tpu.dimension_semantics<parallel>], iteration_bounds = array<i64: 1>, scalar_prefetch = 0 : i64, scratch_operands = 0 : i64, tpu.core_type = #tpu.core_type<tc>, window_params = [{transform_indices = @transform_0, window_bounds = array<i64: 32, 256>}, {pipeline_mode = #tpu.pipeline_mode<synchronous>, transform_indices = @transform_1, window_bounds = array<i64: 256, 128>}, {transform_indices = @transform_2, window_bounds = array<i64: 32, 128>}, {transform_indices = @transform_3, window_bounds = array<i64: 1, 2, 128>}]} {
    %c0 = arith.constant 0 : index
    %c0_0 = arith.constant 0 : index
    %0 = vector.load %arg1[%c0, %c0_0] : memref<32x256xbf16, #tpu.memory_space<vmem>>, vector<32x256xbf16>
    %c0_1 = arith.constant 0 : index
    %c0_2 = arith.constant 0 : index
    %1 = vector.load %arg2[%c0_1, %c0_2] : memref<256x128xbf16, #tpu.memory_space<vmem>>, vector<256x128xbf16>
    %cst = arith.constant dense<0.000000e+00> : vector<32x128xf32>
    %2 = tpu.matmul %0, %1, %cst {dimension_numbers = #tpu.dot_dimension_numbers<[1], [0], [0], [1], [0, 0, 1, 1], [], []>} : vector<32x256xbf16>, vector<256x128xbf16>, vector<32x128xf32> -> vector<32x128xf32>
    %c0_3 = arith.constant 0 : index
    %c0_4 = arith.constant 0 : index
    %3 = vector.load %arg3[%c0_3, %c0_4] : memref<32x128xf32, #tpu.memory_space<vmem>>, vector<32x128xf32>
    tpu.vector_store %arg3[%c0_3, %c0_4], %2 {strides = array<i32>} : memref<32x128xf32, #tpu.memory_space<vmem>>, vector<32x128xf32>,
    %cst_5 = arith.constant dense<0.000000e+00> : vector<128xf32>
    %4 = vector.multi_reduction <add>, %2, %cst_5 [0] : vector<32x128xf32> to vector<128xf32>
    %5 = vector.shape_cast %4 : vector<128xf32> to vector<1x128xf32>
    %6 = arith.mulf %2, %2 : vector<32x128xf32>
    %cst_6 = arith.constant dense<0.000000e+00> : vector<128xf32>
    %7 = vector.multi_reduction <add>, %6, %cst_6 [0] : vector<32x128xf32> to vector<128xf32>
    %8 = vector.shape_cast %7 : vector<128xf32> to vector<1x128xf32>
    %9 = tpu.concatenate %5, %8 in 0 : vector<1x128xf32>, vector<1x128xf32> -> vector<2x128xf32>
    %c0_7 = arith.constant 0 : index
    %c0_8 = arith.constant 0 : index
    %c0_9 = arith.constant 0 : index
    %10 = vector.load %arg4[%c0_7, %c0_8, %c0_9] : memref<1x2x128xf32, #tpu.memory_space<vmem>>, vector<1x2x128xf32>
    %11 = vector.shape_cast %10 : vector<1x2x128xf32> to vector<2x128xf32>
    %12 = vector.shape_cast %9 : vector<2x128xf32> to vector<1x2x128xf32>
    tpu.vector_store %arg4[%c0_7, %c0_8, %c0_9], %12 {strides = array<i32>} : memref<1x2x128xf32, #tpu.memory_space<vmem>>, vector<1x2x128xf32>,
    return
  }
  func.func @transform_0(%arg0: i32) -> (i32, i32) {
    %c0_i32 = arith.constant 0 : i32
    %c0_i32_0 = arith.constant 0 : i32
    return %arg0, %c0_i32 : i32, i32
  }
  func.func @transform_1(%arg0: i32) -> (i32, i32) {
    %c0_i32 = arith.constant 0 : i32
    %c0_i32_0 = arith.constant 0 : i32
    %c0_i32_1 = arith.constant 0 : i32
    return %c0_i32, %c0_i32_0 : i32, i32
  }
  func.func @transform_2(%arg0: i32) -> (i32, i32) {
    %c0_i32 = arith.constant 0 : i32
    %c0_i32_0 = arith.constant 0 : i32
    return %arg0, %c0_i32 : i32, i32
  }
  func.func @transform_3(%arg0: i32) -> (i32, i32, i32) {
    %c0_i32 = arith.constant 0 : i32
    %c0_i32_0 = arith.constant 0 : i32
    %c0_i32_1 = arith.constant 0 : i32
    return %arg0, %c0_i32, %c0_i32_0 : i32, i32, i32
  }
}

module attributes {stable_mosaic.version = 11 : i64} {
  func.func @_conv_matmul_stats_kernel(%arg0: i32, %arg1: memref<16x256xbf16, #tpu.memory_space<vmem>>, %arg2: memref<256x128xbf16, #tpu.memory_space<vmem>>, %arg3: memref<16x128xf32, #tpu.memory_space<vmem>>, %arg4: memref<1x2x128xf32, #tpu.memory_space<vmem>>) attributes {dimension_semantics = [#tpu.dimension_semantics<parallel>], iteration_bounds = array<i64: 1>, scalar_prefetch = 0 : i64, scratch_operands = 0 : i64, tpu.core_type = #tpu.core_type<tc>, window_params = [{transform_indices = @transform_0, window_bounds = array<i64: 16, 256>}, {pipeline_mode = #tpu.pipeline_mode<synchronous>, transform_indices = @transform_1, window_bounds = array<i64: 256, 128>}, {transform_indices = @transform_2, window_bounds = array<i64: 16, 128>}, {transform_indices = @transform_3, window_bounds = array<i64: 1, 2, 128>}]} {
    %c0 = arith.constant 0 : index
    %c0_0 = arith.constant 0 : index
    %0 = vector.load %arg1[%c0, %c0_0] : memref<16x256xbf16, #tpu.memory_space<vmem>>, vector<16x256xbf16>
    %c0_1 = arith.constant 0 : index
    %c0_2 = arith.constant 0 : index
    %1 = vector.load %arg2[%c0_1, %c0_2] : memref<256x128xbf16, #tpu.memory_space<vmem>>, vector<256x128xbf16>
    %cst = arith.constant dense<0.000000e+00> : vector<16x128xf32>
    %2 = tpu.matmul %0, %1, %cst {dimension_numbers = #tpu.dot_dimension_numbers<[1], [0], [0], [1], [0, 0, 1, 1], [], []>} : vector<16x256xbf16>, vector<256x128xbf16>, vector<16x128xf32> -> vector<16x128xf32>
    %c0_3 = arith.constant 0 : index
    %c0_4 = arith.constant 0 : index
    %3 = vector.load %arg3[%c0_3, %c0_4] : memref<16x128xf32, #tpu.memory_space<vmem>>, vector<16x128xf32>
    tpu.vector_store %arg3[%c0_3, %c0_4], %2 {strides = array<i32>} : memref<16x128xf32, #tpu.memory_space<vmem>>, vector<16x128xf32>,
    %cst_5 = arith.constant dense<0.000000e+00> : vector<128xf32>
    %4 = vector.multi_reduction <add>, %2, %cst_5 [0] : vector<16x128xf32> to vector<128xf32>
    %5 = vector.shape_cast %4 : vector<128xf32> to vector<1x128xf32>
    %6 = arith.mulf %2, %2 : vector<16x128xf32>
    %cst_6 = arith.constant dense<0.000000e+00> : vector<128xf32>
    %7 = vector.multi_reduction <add>, %6, %cst_6 [0] : vector<16x128xf32> to vector<128xf32>
    %8 = vector.shape_cast %7 : vector<128xf32> to vector<1x128xf32>
    %9 = tpu.concatenate %5, %8 in 0 : vector<1x128xf32>, vector<1x128xf32> -> vector<2x128xf32>
    %c0_7 = arith.constant 0 : index
    %c0_8 = arith.constant 0 : index
    %c0_9 = arith.constant 0 : index
    %10 = vector.load %arg4[%c0_7, %c0_8, %c0_9] : memref<1x2x128xf32, #tpu.memory_space<vmem>>, vector<1x2x128xf32>
    %11 = vector.shape_cast %10 : vector<1x2x128xf32> to vector<2x128xf32>
    %12 = vector.shape_cast %9 : vector<2x128xf32> to vector<1x2x128xf32>
    tpu.vector_store %arg4[%c0_7, %c0_8, %c0_9], %12 {strides = array<i32>} : memref<1x2x128xf32, #tpu.memory_space<vmem>>, vector<1x2x128xf32>,
    return
  }
  func.func @transform_0(%arg0: i32) -> (i32, i32) {
    %c0_i32 = arith.constant 0 : i32
    %c0_i32_0 = arith.constant 0 : i32
    return %arg0, %c0_i32 : i32, i32
  }
  func.func @transform_1(%arg0: i32) -> (i32, i32) {
    %c0_i32 = arith.constant 0 : i32
    %c0_i32_0 = arith.constant 0 : i32
    %c0_i32_1 = arith.constant 0 : i32
    return %c0_i32, %c0_i32_0 : i32, i32
  }
  func.func @transform_2(%arg0: i32) -> (i32, i32) {
    %c0_i32 = arith.constant 0 : i32
    %c0_i32_0 = arith.constant 0 : i32
    return %arg0, %c0_i32 : i32, i32
  }
  func.func @transform_3(%arg0: i32) -> (i32, i32, i32) {
    %c0_i32 = arith.constant 0 : i32
    %c0_i32_0 = arith.constant 0 : i32
    %c0_i32_1 = arith.constant 0 : i32
    return %arg0, %c0_i32, %c0_i32_0 : i32, i32, i32
  }
}

module attributes {stable_mosaic.version = 11 : i64} {
  func.func @_bn_affine_relu_kernel(%arg0: i32, %arg1: memref<16x128xf32, #tpu.memory_space<vmem>>, %arg2: memref<1x128xf32, #tpu.memory_space<vmem>>, %arg3: memref<1x128xf32, #tpu.memory_space<vmem>>, %arg4: memref<16x128xbf16, #tpu.memory_space<vmem>>) attributes {dimension_semantics = [#tpu.dimension_semantics<parallel>], iteration_bounds = array<i64: 1>, scalar_prefetch = 0 : i64, scratch_operands = 0 : i64, tpu.core_type = #tpu.core_type<tc>, window_params = [{transform_indices = @transform_0, window_bounds = array<i64: 16, 128>}, {pipeline_mode = #tpu.pipeline_mode<synchronous>, transform_indices = @transform_1, window_bounds = array<i64: 1, 128>}, {pipeline_mode = #tpu.pipeline_mode<synchronous>, transform_indices = @transform_2, window_bounds = array<i64: 1, 128>}, {transform_indices = @transform_3, window_bounds = array<i64: 16, 128>}]} {
    %c0 = arith.constant 0 : index
    %c0_0 = arith.constant 0 : index
    %0 = vector.load %arg1[%c0, %c0_0] : memref<16x128xf32, #tpu.memory_space<vmem>>, vector<16x128xf32>
    %c0_1 = arith.constant 0 : index
    %c0_2 = arith.constant 0 : index
    %1 = vector.load %arg2[%c0_1, %c0_2] : memref<1x128xf32, #tpu.memory_space<vmem>>, vector<1x128xf32>
    %2 = vector.broadcast %1 : vector<1x128xf32> to vector<16x128xf32>
    %3 = arith.mulf %0, %2 : vector<16x128xf32>
    %c0_3 = arith.constant 0 : index
    %c0_4 = arith.constant 0 : index
    %4 = vector.load %arg3[%c0_3, %c0_4] : memref<1x128xf32, #tpu.memory_space<vmem>>, vector<1x128xf32>
    %5 = vector.broadcast %4 : vector<1x128xf32> to vector<16x128xf32>
    %6 = arith.addf %3, %5 : vector<16x128xf32>
    %cst = arith.constant 0.000000e+00 : f32
    %7 = vector.broadcast %cst : f32 to vector<16x128xf32>
    %8 = arith.maximumf %6, %7 : vector<16x128xf32>
    %9 = arith.truncf %8 : vector<16x128xf32> to vector<16x128xbf16>
    %c0_5 = arith.constant 0 : index
    %c0_6 = arith.constant 0 : index
    %10 = vector.load %arg4[%c0_5, %c0_6] : memref<16x128xbf16, #tpu.memory_space<vmem>>, vector<16x128xbf16>
    tpu.vector_store %arg4[%c0_5, %c0_6], %9 {strides = array<i32>} : memref<16x128xbf16, #tpu.memory_space<vmem>>, vector<16x128xbf16>,
    return
  }
  func.func @transform_0(%arg0: i32) -> (i32, i32) {
    %c0_i32 = arith.constant 0 : i32
    %c0_i32_0 = arith.constant 0 : i32
    return %arg0, %c0_i32 : i32, i32
  }
  func.func @transform_1(%arg0: i32) -> (i32, i32) {
    %c0_i32 = arith.constant 0 : i32
    %c0_i32_0 = arith.constant 0 : i32
    %c0_i32_1 = arith.constant 0 : i32
    return %c0_i32, %c0_i32_0 : i32, i32
  }
  func.func @transform_2(%arg0: i32) -> (i32, i32) {
    %c0_i32 = arith.constant 0 : i32
    %c0_i32_0 = arith.constant 0 : i32
    %c0_i32_1 = arith.constant 0 : i32
    return %c0_i32, %c0_i32_0 : i32, i32
  }
  func.func @transform_3(%arg0: i32) -> (i32, i32) {
    %c0_i32 = arith.constant 0 : i32
    %c0_i32_0 = arith.constant 0 : i32
    return %arg0, %c0_i32 : i32, i32
  }
}

module attributes {stable_mosaic.version = 11 : i64} {
  func.func @_conv_matmul_stats_kernel(%arg0: i32, %arg1: memref<16x384xbf16, #tpu.memory_space<vmem>>, %arg2: memref<384x128xbf16, #tpu.memory_space<vmem>>, %arg3: memref<16x128xf32, #tpu.memory_space<vmem>>, %arg4: memref<1x2x128xf32, #tpu.memory_space<vmem>>) attributes {dimension_semantics = [#tpu.dimension_semantics<parallel>], iteration_bounds = array<i64: 1>, scalar_prefetch = 0 : i64, scratch_operands = 0 : i64, tpu.core_type = #tpu.core_type<tc>, window_params = [{transform_indices = @transform_0, window_bounds = array<i64: 16, 384>}, {pipeline_mode = #tpu.pipeline_mode<synchronous>, transform_indices = @transform_1, window_bounds = array<i64: 384, 128>}, {transform_indices = @transform_2, window_bounds = array<i64: 16, 128>}, {transform_indices = @transform_3, window_bounds = array<i64: 1, 2, 128>}]} {
    %c0 = arith.constant 0 : index
    %c0_0 = arith.constant 0 : index
    %0 = vector.load %arg1[%c0, %c0_0] : memref<16x384xbf16, #tpu.memory_space<vmem>>, vector<16x384xbf16>
    %c0_1 = arith.constant 0 : index
    %c0_2 = arith.constant 0 : index
    %1 = vector.load %arg2[%c0_1, %c0_2] : memref<384x128xbf16, #tpu.memory_space<vmem>>, vector<384x128xbf16>
    %cst = arith.constant dense<0.000000e+00> : vector<16x128xf32>
    %2 = tpu.matmul %0, %1, %cst {dimension_numbers = #tpu.dot_dimension_numbers<[1], [0], [0], [1], [0, 0, 1, 1], [], []>} : vector<16x384xbf16>, vector<384x128xbf16>, vector<16x128xf32> -> vector<16x128xf32>
    %c0_3 = arith.constant 0 : index
    %c0_4 = arith.constant 0 : index
    %3 = vector.load %arg3[%c0_3, %c0_4] : memref<16x128xf32, #tpu.memory_space<vmem>>, vector<16x128xf32>
    tpu.vector_store %arg3[%c0_3, %c0_4], %2 {strides = array<i32>} : memref<16x128xf32, #tpu.memory_space<vmem>>, vector<16x128xf32>,
    %cst_5 = arith.constant dense<0.000000e+00> : vector<128xf32>
    %4 = vector.multi_reduction <add>, %2, %cst_5 [0] : vector<16x128xf32> to vector<128xf32>
    %5 = vector.shape_cast %4 : vector<128xf32> to vector<1x128xf32>
    %6 = arith.mulf %2, %2 : vector<16x128xf32>
    %cst_6 = arith.constant dense<0.000000e+00> : vector<128xf32>
    %7 = vector.multi_reduction <add>, %6, %cst_6 [0] : vector<16x128xf32> to vector<128xf32>
    %8 = vector.shape_cast %7 : vector<128xf32> to vector<1x128xf32>
    %9 = tpu.concatenate %5, %8 in 0 : vector<1x128xf32>, vector<1x128xf32> -> vector<2x128xf32>
    %c0_7 = arith.constant 0 : index
    %c0_8 = arith.constant 0 : index
    %c0_9 = arith.constant 0 : index
    %10 = vector.load %arg4[%c0_7, %c0_8, %c0_9] : memref<1x2x128xf32, #tpu.memory_space<vmem>>, vector<1x2x128xf32>
    %11 = vector.shape_cast %10 : vector<1x2x128xf32> to vector<2x128xf32>
    %12 = vector.shape_cast %9 : vector<2x128xf32> to vector<1x2x128xf32>
    tpu.vector_store %arg4[%c0_7, %c0_8, %c0_9], %12 {strides = array<i32>} : memref<1x2x128xf32, #tpu.memory_space<vmem>>, vector<1x2x128xf32>,
    return
  }
  func.func @transform_0(%arg0: i32) -> (i32, i32) {
    %c0_i32 = arith.constant 0 : i32
    %c0_i32_0 = arith.constant 0 : i32
    return %arg0, %c0_i32 : i32, i32
  }
  func.func @transform_1(%arg0: i32) -> (i32, i32) {
    %c0_i32 = arith.constant 0 : i32
    %c0_i32_0 = arith.constant 0 : i32
    %c0_i32_1 = arith.constant 0 : i32
    return %c0_i32, %c0_i32_0 : i32, i32
  }
  func.func @transform_2(%arg0: i32) -> (i32, i32) {
    %c0_i32 = arith.constant 0 : i32
    %c0_i32_0 = arith.constant 0 : i32
    return %arg0, %c0_i32 : i32, i32
  }
  func.func @transform_3(%arg0: i32) -> (i32, i32, i32) {
    %c0_i32 = arith.constant 0 : i32
    %c0_i32_0 = arith.constant 0 : i32
    %c0_i32_1 = arith.constant 0 : i32
    return %arg0, %c0_i32, %c0_i32_0 : i32, i32, i32
  }
}

module attributes {stable_mosaic.version = 11 : i64} {
  func.func @_conv1x1_bias_kernel(%arg0: memref<8x32xbf16, #tpu.memory_space<vmem>>, %arg1: memref<32x128xbf16, #tpu.memory_space<vmem>>, %arg2: memref<1x128xf32, #tpu.memory_space<vmem>>, %arg3: memref<8x128xf32, #tpu.memory_space<vmem>>) attributes {dimension_semantics = [], scalar_prefetch = 0 : i64, scratch_operands = 0 : i64, tpu.core_type = #tpu.core_type<tc>} {
    %c0 = arith.constant 0 : index
    %c0_0 = arith.constant 0 : index
    %0 = vector.load %arg0[%c0, %c0_0] : memref<8x32xbf16, #tpu.memory_space<vmem>>, vector<8x32xbf16>
    %c0_1 = arith.constant 0 : index
    %c0_2 = arith.constant 0 : index
    %1 = vector.load %arg1[%c0_1, %c0_2] : memref<32x128xbf16, #tpu.memory_space<vmem>>, vector<32x128xbf16>
    %cst = arith.constant dense<0.000000e+00> : vector<8x128xf32>
    %2 = tpu.matmul %0, %1, %cst {dimension_numbers = #tpu.dot_dimension_numbers<[1], [0], [0], [1], [0, 0, 1, 1], [], []>} : vector<8x32xbf16>, vector<32x128xbf16>, vector<8x128xf32> -> vector<8x128xf32>
    %c0_3 = arith.constant 0 : index
    %c0_4 = arith.constant 0 : index
    %3 = vector.load %arg2[%c0_3, %c0_4] : memref<1x128xf32, #tpu.memory_space<vmem>>, vector<1x128xf32>
    %4 = vector.broadcast %3 : vector<1x128xf32> to vector<8x128xf32>
    %5 = arith.addf %2, %4 : vector<8x128xf32>
    %c0_5 = arith.constant 0 : index
    %c0_6 = arith.constant 0 : index
    %6 = vector.load %arg3[%c0_5, %c0_6] : memref<8x128xf32, #tpu.memory_space<vmem>>, vector<8x128xf32>
    tpu.vector_store %arg3[%c0_5, %c0_6], %5 {strides = array<i32>} : memref<8x128xf32, #tpu.memory_space<vmem>>, vector<8x128xf32>,
    return
  }
}

</mosaic_0001>

<llo_original>
// kernel: pose_encoder_forward.18
$region0: #{pose_encoder_forward.18}
  #allocation0 [shape = 'u32[]', space=smem, size = 0x4, offset = 0x4, fixed_abs, tag = 'smem constant byte address 0x4 - core index']
  #allocation1 [shape = 'u32[144,128]{1,0:T(1,128)}', space=vmem, size = 0x12000, scoped, tag = 'internal scratch']
  %s0 = inlined_call_operand.vmem [shape: f32[512,128], index: 0, kind: input, shape index: {}]
  %s1 = inlined_call_operand.vmem [shape: f32[1,128], index: 1, kind: input, shape index: {}]
  %s2 = inlined_call_operand.vmem [shape: f32[1,128], index: 2, kind: input, shape index: {}]
  %s3 = inlined_call_operand.vmem [shape: bf16[512,128], index: 3, kind: output, shape index: {}]
  %s4 = sld [smem:[#allocation0]]
  $region22: #{pose_encoder_forward.18} parent=0
    _
  %s6 = ssub.s32 1, %s4
  %s7 = scalar_select 0, %s6, %s4
  // Predicated region
  $region2: #{pose_encoder_forward.18} parent=0 // pred_check
    _
  $region3: #{pose_encoder_forward.18} parent=0 // pred_check_branch
    %9 = sbr.rel (0) target = $region5
  $region4: #{pose_encoder_forward.18} parent=0 // pred_region
    _
  $region5: #{pose_encoder_forward.18} parent=0 // pred_fallthru
    _
  // Predicated region
  $region6: #{pose_encoder_forward.18} parent=0 // pred_check
    _
  $region7: #{pose_encoder_forward.18} parent=0 // pred_check_branch
    %11 = sbr.rel (0) target = $region9
  $region8: #{pose_encoder_forward.18} parent=0 // pred_region
    _
  $region9: #{pose_encoder_forward.18} parent=0 // pred_fallthru
    _
  // Predicated region
  $region10: #{pose_encoder_forward.18} parent=0 // pred_check
    _
  $region11: #{pose_encoder_forward.18} parent=0 // pred_check_branch
    %13 = sbr.rel (0) target = $region13
  $region12: #{pose_encoder_forward.18} parent=0 // pred_region
    _
  $region13: #{pose_encoder_forward.18} parent=0 // pred_fallthru
    _
  %v14 = vld [vmem:[%s0] sm:$0xff]
  %v15 = vld [vmem:[%s0 + $0x8] sm:$0xff]
  %v16 = vld [vmem:[%s0 + $0x10] sm:$0xff]
  %v17 = vld [vmem:[%s0 + $0x18] sm:$0xff]
  %v18 = vld [vmem:[%s0 + $0x20] sm:$0xff]
  %v19 = vld [vmem:[%s0 + $0x28] sm:$0xff]
  %v20 = vld [vmem:[%s0 + $0x30] sm:$0xff]
  %v21 = vld [vmem:[%s0 + $0x38] sm:$0xff]
  %v22 = vld [vmem:[%s0 + $0x40] sm:$0xff]
  %v23 = vld [vmem:[%s0 + $0x48] sm:$0xff]
  %v24 = vld [vmem:[%s0 + $0x50] sm:$0xff]
  %v25 = vld [vmem:[%s0 + $0x58] sm:$0xff]
  %v26 = vld [vmem:[%s0 + $0x60] sm:$0xff]
  %v27 = vld [vmem:[%s0 + $0x68] sm:$0xff]
  %v28 = vld [vmem:[%s0 + $0x70] sm:$0xff]
  %v29 = vld [vmem:[%s0 + $0x78] sm:$0xff]
  %v30 = vld [vmem:[%s0 + $0x80] sm:$0xff]
  %v31 = vld [vmem:[%s0 + $0x88] sm:$0xff]
  %v32 = vld [vmem:[%s0 + $0x90] sm:$0xff]
  %v33 = vld [vmem:[%s0 + $0x98] sm:$0xff]
  %v34 = vld [vmem:[%s0 + $0xa0] sm:$0xff]
  %v35 = vld [vmem:[%s0 + $0xa8] sm:$0xff]
  %v36 = vld [vmem:[%s0 + $0xb0] sm:$0xff]
  %v37 = vld [vmem:[%s0 + $0xb8] sm:$0xff]
  %v38 = vld [vmem:[%s0 + $0xc0] sm:$0xff]
  %v39 = vld [vmem:[%s0 + $0xc8] sm:$0xff]
  %v40 = vld [vmem:[%s0 + $0xd0] sm:$0xff]
  %v41 = vld [vmem:[%s0 + $0xd8] sm:$0xff]
  %v42 = vld [vmem:[%s0 + $0xe0] sm:$0xff]
  %v43 = vld [vmem:[%s0 + $0xe8] sm:$0xff]
  %v44 = vld [vmem:[%s0 + $0xf0] sm:$0xff]
  %v45 = vld [vmem:[%s0 + $0xf8] sm:$0xff]
  %v46 = vld [vmem:[%s0 + $0x100] sm:$0xff]
  %v47 = vld [vmem:[%s0 + $0x108] sm:$0xff]
  %v48 = vld [vmem:[%s0 + $0x110] sm:$0xff]
  %v49 = vld [vmem:[%s0 + $0x118] sm:$0xff]
  %v50 = vld [vmem:[%s0 + $0x120] sm:$0xff]
  %v51 = vld [vmem:[%s0 + $0x128] sm:$0xff]
  %v52 = vld [vmem:[%s0 + $0x130] sm:$0xff]
  %v53 = vld [vmem:[%s0 + $0x138] sm:$0xff]
  %v54 = vld [vmem:[%s0 + $0x140] sm:$0xff]
  %v55 = vld [vmem:[%s0 + $0x148] sm:$0xff]
  %v56 = vld [vmem:[%s0 + $0x150] sm:$0xff]
  %v57 = vld [vmem:[%s0 + $0x158] sm:$0xff]
  %v58 = vld [vmem:[%s0 + $0x160] sm:$0xff]
  %v59 = vld [vmem:[%s0 + $0x168] sm:$0xff]
  %v60 = vld [vmem:[%s0 + $0x170] sm:$0xff]
  %v61 = vld [vmem:[%s0 + $0x178] sm:$0xff]
  %v62 = vld [vmem:[%s0 + $0x180] sm:$0xff]
  %v63 = vld [vmem:[%s0 + $0x188] sm:$0xff]
  %v64 = vld [vmem:[%s0 + $0x190] sm:$0xff]
  %v65 = vld [vmem:[%s0 + $0x198] sm:$0xff]
  %v66 = vld [vmem:[%s0 + $0x1a0] sm:$0xff]
  %v67 = vld [vmem:[%s0 + $0x1a8] sm:$0xff]
  %v68 = vld [vmem:[%s0 + $0x1b0] sm:$0xff]
  %v69 = vld [vmem:[%s0 + $0x1b8] sm:$0xff]
  %v70 = vld [vmem:[%s0 + $0x1c0] sm:$0xff]
  %v71 = vld [vmem:[%s0 + $0x1c8] sm:$0xff]
  %v72 = vld [vmem:[%s0 + $0x1d0] sm:$0xff]
  %v73 = vld [vmem:[%s0 + $0x1d8] sm:$0xff]
  %v74 = vld [vmem:[%s0 + $0x1e0] sm:$0xff]
  %v75 = vld [vmem:[%s0 + $0x1e8] sm:$0xff]
  %v76 = vld [vmem:[%s0 + $0x1f0] sm:$0xff]
  %v77 = vld [vmem:[%s0 + $0x1f8] sm:$0xff]
  %v78 = vld [vmem:[%s1] sm:$0x1]
  %v80 = vlaneseq
  %v81 = vshrl.u32 %v80, 7
  %v82 = vsub.s32 0, %v81
  %v83 = vrot.slane %v78, %v82
  %v85 = vmul.f32 %v14, %v83
  %v86 = vmul.f32 %v15, %v83
  %v87 = vmul.f32 %v16, %v83
  %v88 = vmul.f32 %v17, %v83
  %v89 = vmul.f32 %v18, %v83
  %v90 = vmul.f32 %v19, %v83
  %v91 = vmul.f32 %v20, %v83
  %v92 = vmul.f32 %v21, %v83
  %v93 = vmul.f32 %v22, %v83
  %v94 = vmul.f32 %v23, %v83
  %v95 = vmul.f32 %v24, %v83
  %v96 = vmul.f32 %v25, %v83
  %v97 = vmul.f32 %v26, %v83
  %v98 = vmul.f32 %v27, %v83
  %v99 = vmul.f32 %v28, %v83
  %v100 = vmul.f32 %v29, %v83
  %v101 = vmul.f32 %v30, %v83
  %v102 = vmul.f32 %v31, %v83
  %v103 = vmul.f32 %v32, %v83
  %v104 = vmul.f32 %v33, %v83
  %v105 = vmul.f32 %v34, %v83
  %v106 = vmul.f32 %v35, %v83
  %v107 = vmul.f32 %v36, %v83
  %v108 = vmul.f32 %v37, %v83
  %v109 = vmul.f32 %v38, %v83
  %v110 = vmul.f32 %v39, %v83
  %v111 = vmul.f32 %v40, %v83
  %v112 = vmul.f32 %v41, %v83
  %v113 = vmul.f32 %v42, %v83
  %v114 = vmul.f32 %v43, %v83
  %v115 = vmul.f32 %v44, %v83
  %v116 = vmul.f32 %v45, %v83
  %v117 = vmul.f32 %v46, %v83
  %v118 = vmul.f32 %v47, %v83
  %v119 = vmul.f32 %v48, %v83
  %v120 = vmul.f32 %v49, %v83
  %v121 = vmul.f32 %v50, %v83
  %v122 = vmul.f32 %v51, %v83
  %v123 = vmul.f32 %v52, %v83
  %v124 = vmul.f32 %v53, %v83
  %v125 = vmul.f32 %v54, %v83
  %v126 = vmul.f32 %v55, %v83
  %v127 = vmul.f32 %v56, %v83
  %v128 = vmul.f32 %v57, %v83
  %v129 = vmul.f32 %v58, %v83
  %v130 = vmul.f32 %v59, %v83
  %v131 = vmul.f32 %v60, %v83
  %v132 = vmul.f32 %v61, %v83
  %v133 = vmul.f32 %v62, %v83
  %v134 = vmul.f32 %v63, %v83
  %v135 = vmul.f32 %v64, %v83
  %v136 = vmul.f32 %v65, %v83
  %v137 = vmul.f32 %v66, %v83
  %v138 = vmul.f32 %v67, %v83
  %v139 = vmul.f32 %v68, %v83
  %v140 = vmul.f32 %v69, %v83
  %v141 = vmul.f32 %v70, %v83
  %v142 = vmul.f32 %v71, %v83
  %v143 = vmul.f32 %v72, %v83
  %v144 = vmul.f32 %v73, %v83
  %v145 = vmul.f32 %v74, %v83
  %v146 = vmul.f32 %v75, %v83
  %v147 = vmul.f32 %v76, %v83
  %v148 = vmul.f32 %v77, %v83
  %v149 = vld [vmem:[%s2] sm:$0x1]
  %v151 = vlaneseq
  %v152 = vshrl.u32 %v151, 7
  %v153 = vsub.s32 0, %v152
  %v154 = vrot.slane %v149, %v153
  %v156 = vadd.f32 %v85, %v154
  %v157 = vadd.f32 %v86, %v154
  %v158 = vadd.f32 %v87, %v154
  %v159 = vadd.f32 %v88, %v154
  %v160 = vadd.f32 %v89, %v154
  %v161 = vadd.f32 %v90, %v154
  %v162 = vadd.f32 %v91, %v154
  %v163 = vadd.f32 %v92, %v154
  %v164 = vadd.f32 %v93, %v154
  %v165 = vadd.f32 %v94, %v154
  %v166 = vadd.f32 %v95, %v154
  %v167 = vadd.f32 %v96, %v154
  %v168 = vadd.f32 %v97, %v154
  %v169 = vadd.f32 %v98, %v154
  %v170 = vadd.f32 %v99, %v154
  %v171 = vadd.f32 %v100, %v154
  %v172 = vadd.f32 %v101, %v154
  %v173 = vadd.f32 %v102, %v154
  %v174 = vadd.f32 %v103, %v154
  %v175 = vadd.f32 %v104, %v154
  %v176 = vadd.f32 %v105, %v154
  %v177 = vadd.f32 %v106, %v154
  %v178 = vadd.f32 %v107, %v154
  %v179 = vadd.f32 %v108, %v154
  %v180 = vadd.f32 %v109, %v154
  %v181 = vadd.f32 %v110, %v154
  %v182 = vadd.f32 %v111, %v154
  %v183 = vadd.f32 %v112, %v154
  %v184 = vadd.f32 %v113, %v154
  %v185 = vadd.f32 %v114, %v154
  %v186 = vadd.f32 %v115, %v154
  %v187 = vadd.f32 %v116, %v154
  %v188 = vadd.f32 %v117, %v154
  %v189 = vadd.f32 %v118, %v154
  %v190 = vadd.f32 %v119, %v154
  %v191 = vadd.f32 %v120, %v154
  %v192 = vadd.f32 %v121, %v154
  %v193 = vadd.f32 %v122, %v154
  %v194 = vadd.f32 %v123, %v154
  %v195 = vadd.f32 %v124, %v154
  %v196 = vadd.f32 %v125, %v154
  %v197 = vadd.f32 %v126, %v154
  %v198 = vadd.f32 %v127, %v154
  %v199 = vadd.f32 %v128, %v154
  %v200 = vadd.f32 %v129, %v154
  %v201 = vadd.f32 %v130, %v154
  %v202 = vadd.f32 %v131, %v154
  %v203 = vadd.f32 %v132, %v154
  %v204 = vadd.f32 %v133, %v154
  %v205 = vadd.f32 %v134, %v154
  %v206 = vadd.f32 %v135, %v154
  %v207 = vadd.f32 %v136, %v154
  %v208 = vadd.f32 %v137, %v154
  %v209 = vadd.f32 %v138, %v154
  %v210 = vadd.f32 %v139, %v154
  %v211 = vadd.f32 %v140, %v154
  %v212 = vadd.f32 %v141, %v154
  %v213 = vadd.f32 %v142, %v154
  %v214 = vadd.f32 %v143, %v154
  %v215 = vadd.f32 %v144, %v154
  %v216 = vadd.f32 %v145, %v154
  %v217 = vadd.f32 %v146, %v154
  %v218 = vadd.f32 %v147, %v154
  %v219 = vadd.f32 %v148, %v154
  %v220 = vmax.f32 %v156, 0.0
  %v221 = vmax.f32 %v157, 0.0
  %v222 = vmax.f32 %v158, 0.0
  %v223 = vmax.f32 %v159, 0.0
  %v224 = vmax.f32 %v160, 0.0
  %v225 = vmax.f32 %v161, 0.0
  %v226 = vmax.f32 %v162, 0.0
  %v227 = vmax.f32 %v163, 0.0
  %v228 = vmax.f32 %v164, 0.0
  %v229 = vmax.f32 %v165, 0.0
  %v230 = vmax.f32 %v166, 0.0
  %v231 = vmax.f32 %v167, 0.0
  %v232 = vmax.f32 %v168, 0.0
  %v233 = vmax.f32 %v169, 0.0
  %v234 = vmax.f32 %v170, 0.0
  %v235 = vmax.f32 %v171, 0.0
  %v236 = vmax.f32 %v172, 0.0
  %v237 = vmax.f32 %v173, 0.0
  %v238 = vmax.f32 %v174, 0.0
  %v239 = vmax.f32 %v175, 0.0
  %v240 = vmax.f32 %v176, 0.0
  %v241 = vmax.f32 %v177, 0.0
  %v242 = vmax.f32 %v178, 0.0
  %v243 = vmax.f32 %v179, 0.0
  %v244 = vmax.f32 %v180, 0.0
  %v245 = vmax.f32 %v181, 0.0
  %v246 = vmax.f32 %v182, 0.0
  %v247 = vmax.f32 %v183, 0.0
  %v248 = vmax.f32 %v184, 0.0
  %v249 = vmax.f32 %v185, 0.0
  %v250 = vmax.f32 %v186, 0.0
  %v251 = vmax.f32 %v187, 0.0
  %v252 = vmax.f32 %v188, 0.0
  %v253 = vmax.f32 %v189, 0.0
  %v254 = vmax.f32 %v190, 0.0
  %v255 = vmax.f32 %v191, 0.0
  %v256 = vmax.f32 %v192, 0.0
  %v257 = vmax.f32 %v193, 0.0
  %v258 = vmax.f32 %v194, 0.0
  %v259 = vmax.f32 %v195, 0.0
  %v260 = vmax.f32 %v196, 0.0
  %v261 = vmax.f32 %v197, 0.0
  %v262 = vmax.f32 %v198, 0.0
  %v263 = vmax.f32 %v199, 0.0
  %v264 = vmax.f32 %v200, 0.0
  %v265 = vmax.f32 %v201, 0.0
  %v266 = vmax.f32 %v202, 0.0
  %v267 = vmax.f32 %v203, 0.0
  %v268 = vmax.f32 %v204, 0.0
  %v269 = vmax.f32 %v205, 0.0
  %v270 = vmax.f32 %v206, 0.0
  %v271 = vmax.f32 %v207, 0.0
  %v272 = vmax.f32 %v208, 0.0
  %v273 = vmax.f32 %v209, 0.0
  %v274 = vmax.f32 %v210, 0.0
  %v275 = vmax.f32 %v211, 0.0
  %v276 = vmax.f32 %v212, 0.0
  %v277 = vmax.f32 %v213, 0.0
  %v278 = vmax.f32 %v214, 0.0
  %v279 = vmax.f32 %v215, 0.0
  %v280 = vmax.f32 %v216, 0.0
  %v281 = vmax.f32 %v217, 0.0
  %v282 = vmax.f32 %v218, 0.0
  %v283 = vmax.f32 %v219, 0.0
  %v284 = vpack.c.bf16 %v221, %v220
  %v285 = vpack.c.bf16 %v223, %v222
  %v286 = vpack.c.bf16 %v225, %v224
  %v287 = vpack.c.bf16 %v227, %v226
  %v288 = vpack.c.bf16 %v229, %v228
  %v289 = vpack.c.bf16 %v231, %v230
  %v290 = vpack.c.bf16 %v233, %v232
  %v291 = vpack.c.bf16 %v235, %v234
  %v292 = vpack.c.bf16 %v237, %v236
  %v293 = vpack.c.bf16 %v239, %v238
  %v294 = vpack.c.bf16 %v241, %v240
  %v295 = vpack.c.bf16 %v243, %v242
  %v296 = vpack.c.bf16 %v245, %v244
  %v297 = vpack.c.bf16 %v247, %v246
  %v298 = vpack.c.bf16 %v249, %v248
  %v299 = vpack.c.bf16 %v251, %v250
  %v300 = vpack.c.bf16 %v253, %v252
  %v301 = vpack.c.bf16 %v255, %v254
  %v302 = vpack.c.bf16 %v257, %v256
  %v303 = vpack.c.bf16 %v259, %v258
  %v304 = vpack.c.bf16 %v261, %v260
  %v305 = vpack.c.bf16 %v263, %v262
  %v306 = vpack.c.bf16 %v265, %v264
  %v307 = vpack.c.bf16 %v267, %v266
  %v308 = vpack.c.bf16 %v269, %v268
  %v309 = vpack.c.bf16 %v271, %v270
  %v310 = vpack.c.bf16 %v273, %v272
  %v311 = vpack.c.bf16 %v275, %v274
  %v312 = vpack.c.bf16 %v277, %v276
  %v313 = vpack.c.bf16 %v279, %v278
  %v314 = vpack.c.bf16 %v281, %v280
  %v315 = vpack.c.bf16 %v283, %v282
  %v348 = vunpack.c.l.b16 %v284
  %v349 = vunpack.c.h.b16 %v284
  %v350 = vunpack.c.l.b16 %v285
  %v351 = vunpack.c.h.b16 %v285
  %v352 = vunpack.c.l.b16 %v286
  %v353 = vunpack.c.h.b16 %v286
  %v354 = vunpack.c.l.b16 %v287
  %v355 = vunpack.c.h.b16 %v287
  %v356 = vunpack.c.l.b16 %v288
  %v357 = vunpack.c.h.b16 %v288
  %v358 = vunpack.c.l.b16 %v289
  %v359 = vunpack.c.h.b16 %v289
  %v360 = vunpack.c.l.b16 %v290
  %v361 = vunpack.c.h.b16 %v290
  %v362 = vunpack.c.l.b16 %v291
  %v363 = vunpack.c.h.b16 %v291
  %v364 = vunpack.c.l.b16 %v292
  %v365 = vunpack.c.h.b16 %v292
  %v366 = vunpack.c.l.b16 %v293
  %v367 = vunpack.c.h.b16 %v293
  %v368 = vunpack.c.l.b16 %v294
  %v369 = vunpack.c.h.b16 %v294
  %v370 = vunpack.c.l.b16 %v295
  %v371 = vunpack.c.h.b16 %v295
  %v372 = vunpack.c.l.b16 %v296
  %v373 = vunpack.c.h.b16 %v296
  %v374 = vunpack.c.l.b16 %v297
  %v375 = vunpack.c.h.b16 %v297
  %v376 = vunpack.c.l.b16 %v298
  %v377 = vunpack.c.h.b16 %v298
  %v378 = vunpack.c.l.b16 %v299
  %v379 = vunpack.c.h.b16 %v299
  %v380 = vunpack.c.l.b16 %v300
  %v381 = vunpack.c.h.b16 %v300
  %v382 = vunpack.c.l.b16 %v301
  %v383 = vunpack.c.h.b16 %v301
  %v384 = vunpack.c.l.b16 %v302
  %v385 = vunpack.c.h.b16 %v302
  %v386 = vunpack.c.l.b16 %v303
  %v387 = vunpack.c.h.b16 %v303
  %v388 = vunpack.c.l.b16 %v304
  %v389 = vunpack.c.h.b16 %v304
  %v390 = vunpack.c.l.b16 %v305
  %v391 = vunpack.c.h.b16 %v305
  %v392 = vunpack.c.l.b16 %v306
  %v393 = vunpack.c.h.b16 %v306
  %v394 = vunpack.c.l.b16 %v307
  %v395 = vunpack.c.h.b16 %v307
  %v396 = vunpack.c.l.b16 %v308
  %v397 = vunpack.c.h.b16 %v308
  %v398 = vunpack.c.l.b16 %v309
  %v399 = vunpack.c.h.b16 %v309
  %v400 = vunpack.c.l.b16 %v310
  %v401 = vunpack.c.h.b16 %v310
  %v402 = vunpack.c.l.b16 %v311
  %v403 = vunpack.c.h.b16 %v311
  %v404 = vunpack.c.l.b16 %v312
  %v405 = vunpack.c.h.b16 %v312
  %v406 = vunpack.c.l.b16 %v313
  %v407 = vunpack.c.h.b16 %v313
  %v408 = vunpack.c.l.b16 %v314
  %v409 = vunpack.c.h.b16 %v314
  %v410 = vunpack.c.l.b16 %v315
  %v411 = vunpack.c.h.b16 %v315
  %v412 = vpack.c.b16 %v348, %v348
  %v413 = vpack.c.b16 %v349, %v349
  %v414 = vpack.c.b16 %v350, %v350
  %v415 = vpack.c.b16 %v351, %v351
  %v416 = vpack.c.b16 %v352, %v352
  %v417 = vpack.c.b16 %v353, %v353
  %v418 = vpack.c.b16 %v354, %v354
  %v419 = vpack.c.b16 %v355, %v355
  %v420 = vpack.c.b16 %v356, %v356
  %v421 = vpack.c.b16 %v357, %v357
  %v422 = vpack.c.b16 %v358, %v358
  %v423 = vpack.c.b16 %v359, %v359
  %v424 = vpack.c.b16 %v360, %v360
  %v425 = vpack.c.b16 %v361, %v361
  %v426 = vpack.c.b16 %v362, %v362
  %v427 = vpack.c.b16 %v363, %v363
  %v428 = vpack.c.b16 %v364, %v364
  %v429 = vpack.c.b16 %v365, %v365
  %v430 = vpack.c.b16 %v366, %v366
  %v431 = vpack.c.b16 %v367, %v367
  %v432 = vpack.c.b16 %v368, %v368
  %v433 = vpack.c.b16 %v369, %v369
  %v434 = vpack.c.b16 %v370, %v370
  %v435 = vpack.c.b16 %v371, %v371
  %v436 = vpack.c.b16 %v372, %v372
  %v437 = vpack.c.b16 %v373, %v373
  %v438 = vpack.c.b16 %v374, %v374
  %v439 = vpack.c.b16 %v375, %v375
  %v440 = vpack.c.b16 %v376, %v376
  %v441 = vpack.c.b16 %v377, %v377
  %v442 = vpack.c.b16 %v378, %v378
  %v443 = vpack.c.b16 %v379, %v379
  %v444 = vpack.c.b16 %v380, %v380
  %v445 = vpack.c.b16 %v381, %v381
  %v446 = vpack.c.b16 %v382, %v382
  %v447 = vpack.c.b16 %v383, %v383
  %v448 = vpack.c.b16 %v384, %v384
  %v449 = vpack.c.b16 %v385, %v385
  %v450 = vpack.c.b16 %v386, %v386
  %v451 = vpack.c.b16 %v387, %v387
  %v452 = vpack.c.b16 %v388, %v388
  %v453 = vpack.c.b16 %v389, %v389
  %v454 = vpack.c.b16 %v390, %v390
  %v455 = vpack.c.b16 %v391, %v391
  %v456 = vpack.c.b16 %v392, %v392
  %v457 = vpack.c.b16 %v393, %v393
  %v458 = vpack.c.b16 %v394, %v394
  %v459 = vpack.c.b16 %v395, %v395
  %v460 = vpack.c.b16 %v396, %v396
  %v461 = vpack.c.b16 %v397, %v397
  %v462 = vpack.c.b16 %v398, %v398
  %v463 = vpack.c.b16 %v399, %v399
  %v464 = vpack.c.b16 %v400, %v400
  %v465 = vpack.c.b16 %v401, %v401
  %v466 = vpack.c.b16 %v402, %v402
  %v467 = vpack.c.b16 %v403, %v403
  %v468 = vpack.c.b16 %v404, %v404
  %v469 = vpack.c.b16 %v405, %v405
  %v470 = vpack.c.b16 %v406, %v406
  %v471 = vpack.c.b16 %v407, %v407
  %v472 = vpack.c.b16 %v408, %v408
  %v473 = vpack.c.b16 %v409, %v409
  %v474 = vpack.c.b16 %v410, %v410
  %v475 = vpack.c.b16 %v411, %v411
  %540 = vst [vmem:[%s3] sm:$0xf] %v412
  %541 = vst [vmem:[%s3 + $0x4] sm:$0xf] %v413
  %542 = vst [vmem:[%s3 + $0x8] sm:$0xf] %v414
  %543 = vst [vmem:[%s3 + $0xc] sm:$0xf] %v415
  %544 = vst [vmem:[%s3 + $0x10] sm:$0xf] %v416
  %545 = vst [vmem:[%s3 + $0x14] sm:$0xf] %v417
  %546 = vst [vmem:[%s3 + $0x18] sm:$0xf] %v418
  %547 = vst [vmem:[%s3 + $0x1c] sm:$0xf] %v419
  %548 = vst [vmem:[%s3 + $0x20] sm:$0xf] %v420
  %549 = vst [vmem:[%s3 + $0x24] sm:$0xf] %v421
  %550 = vst [vmem:[%s3 + $0x28] sm:$0xf] %v422
  %551 = vst [vmem:[%s3 + $0x2c] sm:$0xf] %v423
  %552 = vst [vmem:[%s3 + $0x30] sm:$0xf] %v424
  %553 = vst [vmem:[%s3 + $0x34] sm:$0xf] %v425
  %554 = vst [vmem:[%s3 + $0x38] sm:$0xf] %v426
  %555 = vst [vmem:[%s3 + $0x3c] sm:$0xf] %v427
  %556 = vst [vmem:[%s3 + $0x40] sm:$0xf] %v428
  %557 = vst [vmem:[%s3 + $0x44] sm:$0xf] %v429
  %558 = vst [vmem:[%s3 + $0x48] sm:$0xf] %v430
  %559 = vst [vmem:[%s3 + $0x4c] sm:$0xf] %v431
  %560 = vst [vmem:[%s3 + $0x50] sm:$0xf] %v432
  %561 = vst [vmem:[%s3 + $0x54] sm:$0xf] %v433
  %562 = vst [vmem:[%s3 + $0x58] sm:$0xf] %v434
  %563 = vst [vmem:[%s3 + $0x5c] sm:$0xf] %v435
  %564 = vst [vmem:[%s3 + $0x60] sm:$0xf] %v436
  %565 = vst [vmem:[%s3 + $0x64] sm:$0xf] %v437
  %566 = vst [vmem:[%s3 + $0x68] sm:$0xf] %v438
  %567 = vst [vmem:[%s3 + $0x6c] sm:$0xf] %v439
  %568 = vst [vmem:[%s3 + $0x70] sm:$0xf] %v440
  %569 = vst [vmem:[%s3 + $0x74] sm:$0xf] %v441
  %570 = vst [vmem:[%s3 + $0x78] sm:$0xf] %v442
  %571 = vst [vmem:[%s3 + $0x7c] sm:$0xf] %v443
  %572 = vst [vmem:[%s3 + $0x80] sm:$0xf] %v444
  %573 = vst [vmem:[%s3 + $0x84] sm:$0xf] %v445
  %574 = vst [vmem:[%s3 + $0x88] sm:$0xf] %v446
  %575 = vst [vmem:[%s3 + $0x8c] sm:$0xf] %v447
  %576 = vst [vmem:[%s3 + $0x90] sm:$0xf] %v448
  %577 = vst [vmem:[%s3 + $0x94] sm:$0xf] %v449
  %578 = vst [vmem:[%s3 + $0x98] sm:$0xf] %v450
  %579 = vst [vmem:[%s3 + $0x9c] sm:$0xf] %v451
  %580 = vst [vmem:[%s3 + $0xa0] sm:$0xf] %v452
  %581 = vst [vmem:[%s3 + $0xa4] sm:$0xf] %v453
  %582 = vst [vmem:[%s3 + $0xa8] sm:$0xf] %v454
  %583 = vst [vmem:[%s3 + $0xac] sm:$0xf] %v455
  %584 = vst [vmem:[%s3 + $0xb0] sm:$0xf] %v456
  %585 = vst [vmem:[%s3 + $0xb4] sm:$0xf] %v457
  %586 = vst [vmem:[%s3 + $0xb8] sm:$0xf] %v458
  %587 = vst [vmem:[%s3 + $0xbc] sm:$0xf] %v459
  %588 = vst [vmem:[%s3 + $0xc0] sm:$0xf] %v460
  %589 = vst [vmem:[%s3 + $0xc4] sm:$0xf] %v461
  %590 = vst [vmem:[%s3 + $0xc8] sm:$0xf] %v462
  %591 = vst [vmem:[%s3 + $0xcc] sm:$0xf] %v463
  %592 = vst [vmem:[%s3 + $0xd0] sm:$0xf] %v464
  %593 = vst [vmem:[%s3 + $0xd4] sm:$0xf] %v465
  %594 = vst [vmem:[%s3 + $0xd8] sm:$0xf] %v466
  %595 = vst [vmem:[%s3 + $0xdc] sm:$0xf] %v467
  %596 = vst [vmem:[%s3 + $0xe0] sm:$0xf] %v468
  %597 = vst [vmem:[%s3 + $0xe4] sm:$0xf] %v469
  %598 = vst [vmem:[%s3 + $0xe8] sm:$0xf] %v470
  %599 = vst [vmem:[%s3 + $0xec] sm:$0xf] %v471
  %600 = vst [vmem:[%s3 + $0xf0] sm:$0xf] %v472
  %601 = vst [vmem:[%s3 + $0xf4] sm:$0xf] %v473
  %602 = vst [vmem:[%s3 + $0xf8] sm:$0xf] %v474
  %603 = vst [vmem:[%s3 + $0xfc] sm:$0xf] %v475
  // Predicated region
  $region14: #{pose_encoder_forward.18} parent=0 // pred_check
    _
  $region15: #{pose_encoder_forward.18} parent=0 // pred_check_branch
    %605 = sbr.rel (0) target = $region17
  $region16: #{pose_encoder_forward.18} parent=0 // pred_region
    _
  $region17: #{pose_encoder_forward.18} parent=0 // pred_fallthru
    _
  // Predicated region
  $region18: #{pose_encoder_forward.18} parent=0 // pred_check
    _
  $region19: #{pose_encoder_forward.18} parent=0 // pred_check_branch
    %607 = sbr.rel (0) target = $region21
  $region20: #{pose_encoder_forward.18} parent=0 // pred_region
    _
  $region21: #{pose_encoder_forward.18} parent=0 // pred_fallthru
    _

// kernel: pose_encoder_forward.17
$region0: #{pose_encoder_forward.17}
  #allocation0 [shape = 'u32[]', space=smem, size = 0x4, offset = 0x4, fixed_abs, tag = 'smem constant byte address 0x4 - core index']
  #allocation1 [shape = 'u32[144,128]{1,0:T(1,128)}', space=vmem, size = 0x12000, scoped, tag = 'internal scratch']
  %s0 = inlined_call_operand.vmem [shape: bf16[512,256], index: 0, kind: input, shape index: {}]
  %s1 = inlined_call_operand.vmem [shape: bf16[256,128], index: 1, kind: input, shape index: {}]
  %s2 = inlined_call_operand.vmem [shape: f32[512,128], index: 2, kind: output, shape index: {0}]
  %s3 = inlined_call_operand.vmem [shape: f32[1,2,128], index: 3, kind: output, shape index: {1}]
  %4 = xla_tuple %s2, %s3
  %s5 = sld [smem:[#allocation0]]
  $region26: #{pose_encoder_forward.17} parent=0
    _
  %s7 = ssub.s32 1, %s5
  %s8 = scalar_select 0, %s7, %s5
  // Predicated region
  $region2: #{pose_encoder_forward.17} parent=0 // pred_check
    _
  $region3: #{pose_encoder_forward.17} parent=0 // pred_check_branch
    %10 = sbr.rel (0) target = $region5
  $region4: #{pose_encoder_forward.17} parent=0 // pred_region
    _
  $region5: #{pose_encoder_forward.17} parent=0 // pred_fallthru
    _
  // Predicated region
  $region6: #{pose_encoder_forward.17} parent=0 // pred_check
    _
  $region7: #{pose_encoder_forward.17} parent=0 // pred_check_branch
    %12 = sbr.rel (0) target = $region9
  $region8: #{pose_encoder_forward.17} parent=0 // pred_region
    _
  $region9: #{pose_encoder_forward.17} parent=0 // pred_fallthru
    _
  %v14 = vld [vmem:[%s0] sm:$0xff]
  %v15 = vld [vmem:[%s0 + $0x8] sm:$0xff]
  %v16 = vld [vmem:[%s0 + $0x10] sm:$0xff]
  %v17 = vld [vmem:[%s0 + $0x18] sm:$0xff]
  %v18 = vld [vmem:[%s0 + $0x20] sm:$0xff]
  %v19 = vld [vmem:[%s0 + $0x28] sm:$0xff]
  %v20 = vld [vmem:[%s0 + $0x30] sm:$0xff]
  %v21 = vld [vmem:[%s0 + $0x38] sm:$0xff]
  %v22 = vld [vmem:[%s0 + $0x40] sm:$0xff]
  %v23 = vld [vmem:[%s0 + $0x48] sm:$0xff]
  %v24 = vld [vmem:[%s0 + $0x50] sm:$0xff]
  %v25 = vld [vmem:[%s0 + $0x58] sm:$0xff]
  %v26 = vld [vmem:[%s0 + $0x60] sm:$0xff]
  %v27 = vld [vmem:[%s0 + $0x68] sm:$0xff]
  %v28 = vld [vmem:[%s0 + $0x70] sm:$0xff]
  %v29 = vld [vmem:[%s0 + $0x78] sm:$0xff]
  %v30 = vld [vmem:[%s0 + $0x80] sm:$0xff]
  %v31 = vld [vmem:[%s0 + $0x88] sm:$0xff]
  %v32 = vld [vmem:[%s0 + $0x90] sm:$0xff]
  %v33 = vld [vmem:[%s0 + $0x98] sm:$0xff]
  %v34 = vld [vmem:[%s0 + $0xa0] sm:$0xff]
  %v35 = vld [vmem:[%s0 + $0xa8] sm:$0xff]
  %v36 = vld [vmem:[%s0 + $0xb0] sm:$0xff]
  %v37 = vld [vmem:[%s0 + $0xb8] sm:$0xff]
  %v38 = vld [vmem:[%s0 + $0xc0] sm:$0xff]
  %v39 = vld [vmem:[%s0 + $0xc8] sm:$0xff]
  %v40 = vld [vmem:[%s0 + $0xd0] sm:$0xff]
  %v41 = vld [vmem:[%s0 + $0xd8] sm:$0xff]
  %v42 = vld [vmem:[%s0 + $0xe0] sm:$0xff]
  %v43 = vld [vmem:[%s0 + $0xe8] sm:$0xff]
  %v44 = vld [vmem:[%s0 + $0xf0] sm:$0xff]
  %v45 = vld [vmem:[%s0 + $0xf8] sm:$0xff]
  %v46 = vld [vmem:[%s0 + $0x100] sm:$0xff]
  %v47 = vld [vmem:[%s0 + $0x108] sm:$0xff]
  %v48 = vld [vmem:[%s0 + $0x110] sm:$0xff]
  %v49 = vld [vmem:[%s0 + $0x118] sm:$0xff]
  %v50 = vld [vmem:[%s0 + $0x120] sm:$0xff]
  %v51 = vld [vmem:[%s0 + $0x128] sm:$0xff]
  %v52 = vld [vmem:[%s0 + $0x130] sm:$0xff]
  %v53 = vld [vmem:[%s0 + $0x138] sm:$0xff]
  %v54 = vld [vmem:[%s0 + $0x140] sm:$0xff]
  %v55 = vld [vmem:[%s0 + $0x148] sm:$0xff]
  %v56 = vld [vmem:[%s0 + $0x150] sm:$0xff]
  %v57 = vld [vmem:[%s0 + $0x158] sm:$0xff]
  %v58 = vld [vmem:[%s0 + $0x160] sm:$0xff]
  %v59 = vld [vmem:[%s0 + $0x168] sm:$0xff]
  %v60 = vld [vmem:[%s0 + $0x170] sm:$0xff]
  %v61 = vld [vmem:[%s0 + $0x178] sm:$0xff]
  %v62 = vld [vmem:[%s0 + $0x180] sm:$0xff]
  %v63 = vld [vmem:[%s0 + $0x188] sm:$0xff]
  %v64 = vld [vmem:[%s0 + $0x190] sm:$0xff]
  %v65 = vld [vmem:[%s0 + $0x198] sm:$0xff]
  %v66 = vld [vmem:[%s0 + $0x1a0] sm:$0xff]
  %v67 = vld [vmem:[%s0 + $0x1a8] sm:$0xff]
  %v68 = vld [vmem:[%s0 + $0x1b0] sm:$0xff]
  %v69 = vld [vmem:[%s0 + $0x1b8] sm:$0xff]
  %v70 = vld [vmem:[%s0 + $0x1c0] sm:$0xff]
  %v71 = vld [vmem:[%s0 + $0x1c8] sm:$0xff]
  %v72 = vld [vmem:[%s0 + $0x1d0] sm:$0xff]
  %v73 = vld [vmem:[%s0 + $0x1d8] sm:$0xff]
  %v74 = vld [vmem:[%s0 + $0x1e0] sm:$0xff]
  %v75 = vld [vmem:[%s0 + $0x1e8] sm:$0xff]
  %v76 = vld [vmem:[%s0 + $0x1f0] sm:$0xff]
  %v77 = vld [vmem:[%s0 + $0x1f8] sm:$0xff]
  %v78 = vld [vmem:[%s1] sm:$0xf]
  %v79 = vld [vmem:[%s1 + $0x4] sm:$0xf]
  %v80 = vld [vmem:[%s1 + $0x8] sm:$0xf]
  %v81 = vld [vmem:[%s1 + $0xc] sm:$0xf]
  %v82 = vld [vmem:[%s1 + $0x10] sm:$0xf]
  %v83 = vld [vmem:[%s1 + $0x14] sm:$0xf]
  %v84 = vld [vmem:[%s1 + $0x18] sm:$0xf]
  %v85 = vld [vmem:[%s1 + $0x1c] sm:$0xf]
  %v86 = vld [vmem:[%s1 + $0x20] sm:$0xf]
  %v87 = vld [vmem:[%s1 + $0x24] sm:$0xf]
  %v88 = vld [vmem:[%s1 + $0x28] sm:$0xf]
  %v89 = vld [vmem:[%s1 + $0x2c] sm:$0xf]
  %v90 = vld [vmem:[%s1 + $0x30] sm:$0xf]
  %v91 = vld [vmem:[%s1 + $0x34] sm:$0xf]
  %v92 = vld [vmem:[%s1 + $0x38] sm:$0xf]
  %v93 = vld [vmem:[%s1 + $0x3c] sm:$0xf]
  %v94 = vld [vmem:[%s1 + $0x40] sm:$0xf]
  %v95 = vld [vmem:[%s1 + $0x44] sm:$0xf]
  %v96 = vld [vmem:[%s1 + $0x48] sm:$0xf]
  %v97 = vld [vmem:[%s1 + $0x4c] sm:$0xf]
  %v98 = vld [vmem:[%s1 + $0x50] sm:$0xf]
  %v99 = vld [vmem:[%s1 + $0x54] sm:$0xf]
  %v100 = vld [vmem:[%s1 + $0x58] sm:$0xf]
  %v101 = vld [vmem:[%s1 + $0x5c] sm:$0xf]
  %v102 = vld [vmem:[%s1 + $0x60] sm:$0xf]
  %v103 = vld [vmem:[%s1 + $0x64] sm:$0xf]
  %v104 = vld [vmem:[%s1 + $0x68] sm:$0xf]
  %v105 = vld [vmem:[%s1 + $0x6c] sm:$0xf]
  %v106 = vld [vmem:[%s1 + $0x70] sm:$0xf]
  %v107 = vld [vmem:[%s1 + $0x74] sm:$0xf]
  %v108 = vld [vmem:[%s1 + $0x78] sm:$0xf]
  %v109 = vld [vmem:[%s1 + $0x7c] sm:$0xf]
  %v174 = vunpack.c.l.b16 %v14
  %v175 = vunpack.c.h.b16 %v14
  %v176 = vunpack.c.l.b16 %v15
  %v177 = vunpack.c.h.b16 %v15
  %v178 = vunpack.c.l.b16 %v16
  %v179 = vunpack.c.h.b16 %v16
  %v180 = vunpack.c.l.b16 %v17
  %v181 = vunpack.c.h.b16 %v17
  %v182 = vunpack.c.l.b16 %v18
  %v183 = vunpack.c.h.b16 %v18
  %v184 = vunpack.c.l.b16 %v19
  %v185 = vunpack.c.h.b16 %v19
  %v186 = vunpack.c.l.b16 %v20
  %v187 = vunpack.c.h.b16 %v20
  %v188 = vunpack.c.l.b16 %v21
  %v189 = vunpack.c.h.b16 %v21
  %v190 = vunpack.c.l.b16 %v22
  %v191 = vunpack.c.h.b16 %v22
  %v192 = vunpack.c.l.b16 %v23
  %v193 = vunpack.c.h.b16 %v23
  %v194 = vunpack.c.l.b16 %v24
  %v195 = vunpack.c.h.b16 %v24
  %v196 = vunpack.c.l.b16 %v25
  %v197 = vunpack.c.h.b16 %v25
  %v198 = vunpack.c.l.b16 %v26
  %v199 = vunpack.c.h.b16 %v26
  %v200 = vunpack.c.l.b16 %v27
  %v201 = vunpack.c.h.b16 %v27
  %v202 = vunpack.c.l.b16 %v28
  %v203 = vunpack.c.h.b16 %v28
  %v204 = vunpack.c.l.b16 %v29
  %v205 = vunpack.c.h.b16 %v29
  %v206 = vunpack.c.l.b16 %v30
  %v207 = vunpack.c.h.b16 %v30
  %v208 = vunpack.c.l.b16 %v31
  %v209 = vunpack.c.h.b16 %v31
  %v210 = vunpack.c.l.b16 %v32
  %v211 = vunpack.c.h.b16 %v32
  %v212 = vunpack.c.l.b16 %v33
  %v213 = vunpack.c.h.b16 %v33
  %v214 = vunpack.c.l.b16 %v34
  %v215 = vunpack.c.h.b16 %v34
  %v216 = vunpack.c.l.b16 %v35
  %v217 = vunpack.c.h.b16 %v35
  %v218 = vunpack.c.l.b16 %v36
  %v219 = vunpack.c.h.b16 %v36
  %v220 = vunpack.c.l.b16 %v37
  %v221 = vunpack.c.h.b16 %v37
  %v222 = vunpack.c.l.b16 %v38
  %v223 = vunpack.c.h.b16 %v38
  %v224 = vunpack.c.l.b16 %v39
  %v225 = vunpack.c.h.b16 %v39
  %v226 = vunpack.c.l.b16 %v40
  %v227 = vunpack.c.h.b16 %v40
  %v228 = vunpack.c.l.b16 %v41
  %v229 = vunpack.c.h.b16 %v41
  %v230 = vunpack.c.l.b16 %v42
  %v231 = vunpack.c.h.b16 %v42
  %v232 = vunpack.c.l.b16 %v43
  %v233 = vunpack.c.h.b16 %v43
  %v234 = vunpack.c.l.b16 %v44
  %v235 = vunpack.c.h.b16 %v44
  %v236 = vunpack.c.l.b16 %v45
  %v237 = vunpack.c.h.b16 %v45
  %v238 = vunpack.c.l.b16 %v46
  %v239 = vunpack.c.h.b16 %v46
  %v240 = vunpack.c.l.b16 %v47
  %v241 = vunpack.c.h.b16 %v47
  %v242 = vunpack.c.l.b16 %v48
  %v243 = vunpack.c.h.b16 %v48
  %v244 = vunpack.c.l.b16 %v49
  %v245 = vunpack.c.h.b16 %v49
  %v246 = vunpack.c.l.b16 %v50
  %v247 = vunpack.c.h.b16 %v50
  %v248 = vunpack.c.l.b16 %v51
  %v249 = vunpack.c.h.b16 %v51
  %v250 = vunpack.c.l.b16 %v52
  %v251 = vunpack.c.h.b16 %v52
  %v252 = vunpack.c.l.b16 %v53
  %v253 = vunpack.c.h.b16 %v53
  %v254 = vunpack.c.l.b16 %v54
  %v255 = vunpack.c.h.b16 %v54
  %v256 = vunpack.c.l.b16 %v55
  %v257 = vunpack.c.h.b16 %v55
  %v258 = vunpack.c.l.b16 %v56
  %v259 = vunpack.c.h.b16 %v56
  %v260 = vunpack.c.l.b16 %v57
  %v261 = vunpack.c.h.b16 %v57
  %v262 = vunpack.c.l.b16 %v58
  %v263 = vunpack.c.h.b16 %v58
  %v264 = vunpack.c.l.b16 %v59
  %v265 = vunpack.c.h.b16 %v59
  %v266 = vunpack.c.l.b16 %v60
  %v267 = vunpack.c.h.b16 %v60
  %v268 = vunpack.c.l.b16 %v61
  %v269 = vunpack.c.h.b16 %v61
  %v270 = vunpack.c.l.b16 %v62
  %v271 = vunpack.c.h.b16 %v62
  %v272 = vunpack.c.l.b16 %v63
  %v273 = vunpack.c.h.b16 %v63
  %v274 = vunpack.c.l.b16 %v64
  %v275 = vunpack.c.h.b16 %v64
  %v276 = vunpack.c.l.b16 %v65
  %v277 = vunpack.c.h.b16 %v65
  %v278 = vunpack.c.l.b16 %v66
  %v279 = vunpack.c.h.b16 %v66
  %v280 = vunpack.c.l.b16 %v67
  %v281 = vunpack.c.h.b16 %v67
  %v282 = vunpack.c.l.b16 %v68
  %v283 = vunpack.c.h.b16 %v68
  %v284 = vunpack.c.l.b16 %v69
  %v285 = vunpack.c.h.b16 %v69
  %v286 = vunpack.c.l.b16 %v70
  %v287 = vunpack.c.h.b16 %v70
  %v288 = vunpack.c.l.b16 %v71
  %v289 = vunpack.c.h.b16 %v71
  %v290 = vunpack.c.l.b16 %v72
  %v291 = vunpack.c.h.b16 %v72
  %v292 = vunpack.c.l.b16 %v73
  %v293 = vunpack.c.h.b16 %v73
  %v294 = vunpack.c.l.b16 %v74
  %v295 = vunpack.c.h.b16 %v74
  %v296 = vunpack.c.l.b16 %v75
  %v297 = vunpack.c.h.b16 %v75
  %v298 = vunpack.c.l.b16 %v76
  %v299 = vunpack.c.h.b16 %v76
  %v300 = vunpack.c.l.b16 %v77
  %v301 = vunpack.c.h.b16 %v77
  %v302 = vpack.c.b16 %v176, %v174
  %v303 = vpack.c.b16 %v177, %v175
  %v304 = vpack.c.b16 %v180, %v178
  %v305 = vpack.c.b16 %v181, %v179
  %v306 = vpack.c.b16 %v184, %v182
  %v307 = vpack.c.b16 %v185, %v183
  %v308 = vpack.c.b16 %v188, %v186
  %v309 = vpack.c.b16 %v189, %v187
  %v310 = vpack.c.b16 %v192, %v190
  %v311 = vpack.c.b16 %v193, %v191
  %v312 = vpack.c.b16 %v196, %v194
  %v313 = vpack.c.b16 %v197, %v195
  %v314 = vpack.c.b16 %v200, %v198
  %v315 = vpack.c.b16 %v201, %v199
  %v316 = vpack.c.b16 %v204, %v202
  %v317 = vpack.c.b16 %v205, %v203
  %v318 = vpack.c.b16 %v208, %v206
  %v319 = vpack.c.b16 %v209, %v207
  %v320 = vpack.c.b16 %v212, %v210
  %v321 = vpack.c.b16 %v213, %v211
  %v322 = vpack.c.b16 %v216, %v214
  %v323 = vpack.c.b16 %v217, %v215
  %v324 = vpack.c.b16 %v220, %v218
  %v325 = vpack.c.b16 %v221, %v219
  %v326 = vpack.c.b16 %v224, %v222
  %v327 = vpack.c.b16 %v225, %v223
  %v328 = vpack.c.b16 %v228, %v226
  %v329 = vpack.c.b16 %v229, %v227
  %v330 = vpack.c.b16 %v232, %v230
  %v331 = vpack.c.b16 %v233, %v231
  %v332 = vpack.c.b16 %v236, %v234
  %v333 = vpack.c.b16 %v237, %v235
  %v334 = vpack.c.b16 %v240, %v238
  %v335 = vpack.c.b16 %v241, %v239
  %v336 = vpack.c.b16 %v244, %v242
  %v337 = vpack.c.b16 %v245, %v243
  %v338 = vpack.c.b16 %v248, %v246
  %v339 = vpack.c.b16 %v249, %v247
  %v340 = vpack.c.b16 %v252, %v250
  %v341 = vpack.c.b16 %v253, %v251
  %v342 = vpack.c.b16 %v256, %v254
  %v343 = vpack.c.b16 %v257, %v255
  %v344 = vpack.c.b16 %v260, %v258
  %v345 = vpack.c.b16 %v261, %v259
  %v346 = vpack.c.b16 %v264, %v262
  %v347 = vpack.c.b16 %v265, %v263
  %v348 = vpack.c.b16 %v268, %v266
  %v349 = vpack.c.b16 %v269, %v267
  %v350 = vpack.c.b16 %v272, %v270
  %v351 = vpack.c.b16 %v273, %v271
  %v352 = vpack.c.b16 %v276, %v274
  %v353 = vpack.c.b16 %v277, %v275
  %v354 = vpack.c.b16 %v280, %v278
  %v355 = vpack.c.b16 %v281, %v279
  %v356 = vpack.c.b16 %v284, %v282
  %v357 = vpack.c.b16 %v285, %v283
  %v358 = vpack.c.b16 %v288, %v286
  %v359 = vpack.c.b16 %v289, %v287
  %v360 = vpack.c.b16 %v292, %v290
  %v361 = vpack.c.b16 %v293, %v291
  %v362 = vpack.c.b16 %v296, %v294
  %v363 = vpack.c.b16 %v297, %v295
  %v364 = vpack.c.b16 %v300, %v298
  %v365 = vpack.c.b16 %v301, %v299
  %v462 = vunpack.c.l.b16 %v78
  %v463 = vunpack.c.l.b16 %v79
  %v464 = vunpack.c.l.b16 %v80
  %v465 = vunpack.c.l.b16 %v81
  %v466 = vunpack.c.l.b16 %v82
  %v467 = vunpack.c.l.b16 %v83
  %v468 = vunpack.c.l.b16 %v84
  %v469 = vunpack.c.l.b16 %v85
  %v470 = vunpack.c.l.b16 %v86
  %v471 = vunpack.c.l.b16 %v87
  %v472 = vunpack.c.l.b16 %v88
  %v473 = vunpack.c.l.b16 %v89
  %v474 = vunpack.c.l.b16 %v90
  %v475 = vunpack.c.l.b16 %v91
  %v476 = vunpack.c.l.b16 %v92
  %v477 = vunpack.c.l.b16 %v93
  %v478 = vunpack.c.l.b16 %v94
  %v479 = vunpack.c.l.b16 %v95
  %v480 = vunpack.c.l.b16 %v96
  %v481 = vunpack.c.l.b16 %v97
  %v482 = vunpack.c.l.b16 %v98
  %v483 = vunpack.c.l.b16 %v99
  %v484 = vunpack.c.l.b16 %v100
  %v485 = vunpack.c.l.b16 %v101
  %v486 = vunpack.c.l.b16 %v102
  %v487 = vunpack.c.l.b16 %v103
  %v488 = vunpack.c.l.b16 %v104
  %v489 = vunpack.c.l.b16 %v105
  %v490 = vunpack.c.l.b16 %v106
  %v491 = vunpack.c.l.b16 %v107
  %v492 = vunpack.c.l.b16 %v108
  %v493 = vunpack.c.l.b16 %v109
  %v494 = vpack.c.b16 %v463, %v462
  %v495 = vpack.c.b16 %v465, %v464
  %v496 = vpack.c.b16 %v467, %v466
  %v497 = vpack.c.b16 %v469, %v468
  %v498 = vpack.c.b16 %v471, %v470
  %v499 = vpack.c.b16 %v473, %v472
  %v500 = vpack.c.b16 %v475, %v474
  %v501 = vpack.c.b16 %v477, %v476
  %v502 = vpack.c.b16 %v479, %v478
  %v503 = vpack.c.b16 %v481, %v480
  %v504 = vpack.c.b16 %v483, %v482
  %v505 = vpack.c.b16 %v485, %v484
  %v506 = vpack.c.b16 %v487, %v486
  %v507 = vpack.c.b16 %v489, %v488
  %v508 = vpack.c.b16 %v491, %v490
  %v509 = vpack.c.b16 %v493, %v492
  %526 = vmatprep.subr.bf16.mxu0 0
  %527 = vmatpush1.bf16.msra.mxu0 %v494
  %528 = vmatprep.subr.bf16.mxu0 0
  %529 = vmatpush1.bf16.msra.mxu0 %v495
  %530 = vmatprep.subr.bf16.mxu0 0
  %531 = vmatpush1.bf16.msra.mxu0 %v496
  %532 = vmatprep.subr.bf16.mxu0 0
  %533 = vmatpush1.bf16.msra.mxu0 %v497
  %534 = vmatprep.subr.bf16.mxu0 0
  %535 = vmatpush1.bf16.msra.mxu0 %v498
  %536 = vmatprep.subr.bf16.mxu0 0
  %537 = vmatpush1.bf16.msra.mxu0 %v499
  %538 = vmatprep.subr.bf16.mxu0 0
  %539 = vmatpush1.bf16.msra.mxu0 %v500
  %540 = vmatprep.subr.bf16.mxu0 0
  %541 = vmatpush1.bf16.msra.mxu0 %v501
  %542 = vmatprep.subr.bf16.mxu0 0
  %543 = vmatpush1.bf16.msra.mxu0 %v502
  %544 = vmatprep.subr.bf16.mxu0 0
  %545 = vmatpush1.bf16.msra.mxu0 %v503
  %546 = vmatprep.subr.bf16.mxu0 0
  %547 = vmatpush1.bf16.msra.mxu0 %v504
  %548 = vmatprep.subr.bf16.mxu0 0
  %549 = vmatpush1.bf16.msra.mxu0 %v505
  %550 = vmatprep.subr.bf16.mxu0 0
  %551 = vmatpush1.bf16.msra.mxu0 %v506
  %552 = vmatprep.subr.bf16.mxu0 0
  %553 = vmatpush1.bf16.msra.mxu0 %v507
  %554 = vmatprep.subr.bf16.mxu0 0
  %555 = vmatpush1.bf16.msra.mxu0 %v508
  %556 = vmatprep.subr.bf16.mxu0 0
  %557 = vmatpush1.bf16.msra.mxu0 %v509
  %558 = vmatprep.mubr.bf16.mxu0 %v303
  %559 = vmatmul.mubr.bf16.gmra.mrb[0].mxu0 %v302
  %v560 = vpop.f32.mrb[0].mxu0
  %v561 = vadd.f32 0.0, %v560
  %v562 = vpop.f32.mrb[0].mxu0
  %v563 = vpop.f32.mrb[0].mxu0
  %v564 = vadd.f32 0.0, %v563
  %v565 = vpop.f32.mrb[0].mxu0
  %566 = vmatprep.mubr.bf16.mxu0 %v305
  %567 = vmatmul.mubr.bf16.gmra.mrb[0].mxu0 %v304
  %v568 = vpop.f32.mrb[0].mxu0
  %v569 = vadd.f32 0.0, %v568
  %v570 = vpop.f32.mrb[0].mxu0
  %v571 = vpop.f32.mrb[0].mxu0
  %v572 = vadd.f32 0.0, %v571
  %v573 = vpop.f32.mrb[0].mxu0
  %574 = vmatprep.mubr.bf16.mxu0 %v307
  %575 = vmatmul.mubr.bf16.gmra.mrb[0].mxu0 %v306
  %v576 = vpop.f32.mrb[0].mxu0
  %v577 = vadd.f32 0.0, %v576
  %v578 = vpop.f32.mrb[0].mxu0
  %v579 = vpop.f32.mrb[0].mxu0
  %v580 = vadd.f32 0.0, %v579
  %v581 = vpop.f32.mrb[0].mxu0
  %582 = vmatprep.mubr.bf16.mxu0 %v309
  %583 = vmatmul.mubr.bf16.gmra.mrb[0].mxu0 %v308
  %v584 = vpop.f32.mrb[0].mxu0
  %v585 = vadd.f32 0.0, %v584
  %v586 = vpop.f32.mrb[0].mxu0
  %v587 = vpop.f32.mrb[0].mxu0
  %v588 = vadd.f32 0.0, %v587
  %v589 = vpop.f32.mrb[0].mxu0
  %590 = vmatprep.mubr.bf16.mxu0 %v311
  %591 = vmatmul.mubr.bf16.gmra.mrb[0].mxu0 %v310
  %v592 = vpop.f32.mrb[0].mxu0
  %v593 = vadd.f32 0.0, %v592
  %v594 = vpop.f32.mrb[0].mxu0
  %v595 = vpop.f32.mrb[0].mxu0
  %v596 = vadd.f32 0.0, %v595
  %v597 = vpop.f32.mrb[0].mxu0
  %598 = vmatprep.mubr.bf16.mxu0 %v313
  %599 = vmatmul.mubr.bf16.gmra.mrb[0].mxu0 %v312
  %v600 = vpop.f32.mrb[0].mxu0
  %v601 = vadd.f32 0.0, %v600
  %v602 = vpop.f32.mrb[0].mxu0
  %v603 = vpop.f32.mrb[0].mxu0
  %v604 = vadd.f32 0.0, %v603
  %v605 = vpop.f32.mrb[0].mxu0
  %606 = vmatprep.mubr.bf16.mxu0 %v315
  %607 = vmatmul.mubr.bf16.gmra.mrb[0].mxu0 %v314
  %v608 = vpop.f32.mrb[0].mxu0
  %v609 = vadd.f32 0.0, %v608
  %v610 = vpop.f32.mrb[0].mxu0
  %v611 = vpop.f32.mrb[0].mxu0
  %v612 = vadd.f32 0.0, %v611
  %v613 = vpop.f32.mrb[0].mxu0
  %614 = vmatprep.mubr.bf16.mxu0 %v317
  %615 = vmatmul.mubr.bf16.gmra.mrb[0].mxu0 %v316
  %v616 = vpop.f32.mrb[0].mxu0
  %v617 = vadd.f32 0.0, %v616
  %v618 = vpop.f32.mrb[0].mxu0
  %v619 = vpop.f32.mrb[0].mxu0
  %v620 = vadd.f32 0.0, %v619
  %v621 = vpop.f32.mrb[0].mxu0
  %622 = vmatprep.mubr.bf16.mxu0 %v319
  %623 = vmatmul.mubr.bf16.gmra.mrb[0].mxu0 %v318
  %v624 = vpop.f32.mrb[0].mxu0
  %v625 = vadd.f32 0.0, %v624
  %v626 = vpop.f32.mrb[0].mxu0
  %v627 = vpop.f32.mrb[0].mxu0
  %v628 = vadd.f32 0.0, %v627
  %v629 = vpop.f32.mrb[0].mxu0
  %630 = vmatprep.mubr.bf16.mxu0 %v321
  %631 = vmatmul.mubr.bf16.gmra.mrb[0].mxu0 %v320
  %v632 = vpop.f32.mrb[0].mxu0
  %v633 = vadd.f32 0.0, %v632
  %v634 = vpop.f32.mrb[0].mxu0
  %v635 = vpop.f32.mrb[0].mxu0
  %v636 = vadd.f32 0.0, %v635
  %v637 = vpop.f32.mrb[0].mxu0
  %638 = vmatprep.mubr.bf16.mxu0 %v323
  %639 = vmatmul.mubr.bf16.gmra.mrb[0].mxu0 %v322
  %v640 = vpop.f32.mrb[0].mxu0
  %v641 = vadd.f32 0.0, %v640
  %v642 = vpop.f32.mrb[0].mxu0
  %v643 = vpop.f32.mrb[0].mxu0
  %v644 = vadd.f32 0.0, %v643
  %v645 = vpop.f32.mrb[0].mxu0
  %646 = vmatprep.mubr.bf16.mxu0 %v325
  %647 = vmatmul.mubr.bf16.gmra.mrb[0].mxu0 %v324
  %v648 = vpop.f32.mrb[0].mxu0
  %v649 = vadd.f32 0.0, %v648
  %v650 = vpop.f32.mrb[0].mxu0
  %v651 = vpop.f32.mrb[0].mxu0
  %v652 = vadd.f32 0.0, %v651
  %v653 = vpop.f32.mrb[0].mxu0
  %654 = vmatprep.mubr.bf16.mxu0 %v327
  %655 = vmatmul.mubr.bf16.gmra.mrb[0].mxu0 %v326
  %v656 = vpop.f32.mrb[0].mxu0
  %v657 = vadd.f32 0.0, %v656
  %v658 = vpop.f32.mrb[0].mxu0
  %v659 = vpop.f32.mrb[0].mxu0
  %v660 = vadd.f32 0.0, %v659
  %v661 = vpop.f32.mrb[0].mxu0
  %662 = vmatprep.mubr.bf16.mxu0 %v329
  %663 = vmatmul.mubr.bf16.gmra.mrb[0].mxu0 %v328
  %v664 = vpop.f32.mrb[0].mxu0
  %v665 = vadd.f32 0.0, %v664
  %v666 = vpop.f32.mrb[0].mxu0
  %v667 = vpop.f32.mrb[0].mxu0
  %v668 = vadd.f32 0.0, %v667
  %v669 = vpop.f32.mrb[0].mxu0
  %670 = vmatprep.mubr.bf16.mxu0 %v331
  %671 = vmatmul.mubr.bf16.gmra.mrb[0].mxu0 %v330
  %v672 = vpop.f32.mrb[0].mxu0
  %v673 = vadd.f32 0.0, %v672
  %v674 = vpop.f32.mrb[0].mxu0
  %v675 = vpop.f32.mrb[0].mxu0
  %v676 = vadd.f32 0.0, %v675
  %v677 = vpop.f32.mrb[0].mxu0
  %678 = vmatprep.mubr.bf16.mxu0 %v333
  %679 = vmatmul.mubr.bf16.gmra.mrb[0].mxu0 %v332
  %v680 = vpop.f32.mrb[0].mxu0
  %v681 = vadd.f32 0.0, %v680
  %v682 = vpop.f32.mrb[0].mxu0
  %v683 = vpop.f32.mrb[0].mxu0
  %v684 = vadd.f32 0.0, %v683
  %v685 = vpop.f32.mrb[0].mxu0
  %686 = vmatprep.mubr.bf16.mxu0 %v335
  %687 = vmatmul.mubr.bf16.gmra.mrb[0].mxu0 %v334
  %v688 = vpop.f32.mrb[0].mxu0
  %v689 = vadd.f32 0.0, %v688
  %v690 = vpop.f32.mrb[0].mxu0
  %v691 = vpop.f32.mrb[0].mxu0
  %v692 = vadd.f32 0.0, %v691
  %v693 = vpop.f32.mrb[0].mxu0
  %694 = vmatprep.mubr.bf16.mxu0 %v337
  %695 = vmatmul.mubr.bf16.gmra.mrb[0].mxu0 %v336
  %v696 = vpop.f32.mrb[0].mxu0
  %v697 = vadd.f32 0.0, %v696
  %v698 = vpop.f32.mrb[0].mxu0
  %v699 = vpop.f32.mrb[0].mxu0
  %v700 = vadd.f32 0.0, %v699
  %v701 = vpop.f32.mrb[0].mxu0
  %702 = vmatprep.mubr.bf16.mxu0 %v339
  %703 = vmatmul.mubr.bf16.gmra.mrb[0].mxu0 %v338
  %v704 = vpop.f32.mrb[0].mxu0
  %v705 = vadd.f32 0.0, %v704
  %v706 = vpop.f32.mrb[0].mxu0
  %v707 = vpop.f32.mrb[0].mxu0
  %v708 = vadd.f32 0.0, %v707
  %v709 = vpop.f32.mrb[0].mxu0
  %710 = vmatprep.mubr.bf16.mxu0 %v341
  %711 = vmatmul.mubr.bf16.gmra.mrb[0].mxu0 %v340
  %v712 = vpop.f32.mrb[0].mxu0
  %v713 = vadd.f32 0.0, %v712
  %v714 = vpop.f32.mrb[0].mxu0
  %v715 = vpop.f32.mrb[0].mxu0
  %v716 = vadd.f32 0.0, %v715
  %v717 = vpop.f32.mrb[0].mxu0
  %718 = vmatprep.mubr.bf16.mxu0 %v343
  %719 = vmatmul.mubr.bf16.gmra.mrb[0].mxu0 %v342
  %v720 = vpop.f32.mrb[0].mxu0
  %v721 = vadd.f32 0.0, %v720
  %v722 = vpop.f32.mrb[0].mxu0
  %v723 = vpop.f32.mrb[0].mxu0
  %v724 = vadd.f32 0.0, %v723
  %v725 = vpop.f32.mrb[0].mxu0
  %726 = vmatprep.mubr.bf16.mxu0 %v345
  %727 = vmatmul.mubr.bf16.gmra.mrb[0].mxu0 %v344
  %v728 = vpop.f32.mrb[0].mxu0
  %v729 = vadd.f32 0.0, %v728
  %v730 = vpop.f32.mrb[0].mxu0
  %v731 = vpop.f32.mrb[0].mxu0
  %v732 = vadd.f32 0.0, %v731
  %v733 = vpop.f32.mrb[0].mxu0
  %734 = vmatprep.mubr.bf16.mxu0 %v347
  %735 = vmatmul.mubr.bf16.gmra.mrb[0].mxu0 %v346
  %v736 = vpop.f32.mrb[0].mxu0
  %v737 = vadd.f32 0.0, %v736
  %v738 = vpop.f32.mrb[0].mxu0
  %v739 = vpop.f32.mrb[0].mxu0
  %v740 = vadd.f32 0.0, %v739
  %v741 = vpop.f32.mrb[0].mxu0
  %742 = vmatprep.mubr.bf16.mxu0 %v349
  %743 = vmatmul.mubr.bf16.gmra.mrb[0].mxu0 %v348
  %v744 = vpop.f32.mrb[0].mxu0
  %v745 = vadd.f32 0.0, %v744
  %v746 = vpop.f32.mrb[0].mxu0
  %v747 = vpop.f32.mrb[0].mxu0
  %v748 = vadd.f32 0.0, %v747
  %v749 = vpop.f32.mrb[0].mxu0
  %750 = vmatprep.mubr.bf16.mxu0 %v351
  %751 = vmatmul.mubr.bf16.gmra.mrb[0].mxu0 %v350
  %v752 = vpop.f32.mrb[0].mxu0
  %v753 = vadd.f32 0.0, %v752
  %v754 = vpop.f32.mrb[0].mxu0
  %v755 = vpop.f32.mrb[0].mxu0
  %v756 = vadd.f32 0.0, %v755
  %v757 = vpop.f32.mrb[0].mxu0
  %758 = vmatprep.mubr.bf16.mxu0 %v353
  %759 = vmatmul.mubr.bf16.gmra.mrb[0].mxu0 %v352
  %v760 = vpop.f32.mrb[0].mxu0
  %v761 = vadd.f32 0.0, %v760
  %v762 = vpop.f32.mrb[0].mxu0
  %v763 = vpop.f32.mrb[0].mxu0
  %v764 = vadd.f32 0.0, %v763
  %v765 = vpop.f32.mrb[0].mxu0
  %766 = vmatprep.mubr.bf16.mxu0 %v355
  %767 = vmatmul.mubr.bf16.gmra.mrb[0].mxu0 %v354
  %v768 = vpop.f32.mrb[0].mxu0
  %v769 = vadd.f32 0.0, %v768
  %v770 = vpop.f32.mrb[0].mxu0
  %v771 = vpop.f32.mrb[0].mxu0
  %v772 = vadd.f32 0.0, %v771
  %v773 = vpop.f32.mrb[0].mxu0
  %774 = vmatprep.mubr.bf16.mxu0 %v357
  %775 = vmatmul.mubr.bf16.gmra.mrb[0].mxu0 %v356
  %v776 = vpop.f32.mrb[0].mxu0
  %v777 = vadd.f32 0.0, %v776
  %v778 = vpop.f32.mrb[0].mxu0
  %v779 = vpop.f32.mrb[0].mxu0
  %v780 = vadd.f32 0.0, %v779
  %v781 = vpop.f32.mrb[0].mxu0
  %782 = vmatprep.mubr.bf16.mxu0 %v359
  %783 = vmatmul.mubr.bf16.gmra.mrb[0].mxu0 %v358
  %v784 = vpop.f32.mrb[0].mxu0
  %v785 = vadd.f32 0.0, %v784
  %v786 = vpop.f32.mrb[0].mxu0
  %v787 = vpop.f32.mrb[0].mxu0
  %v788 = vadd.f32 0.0, %v787
  %v789 = vpop.f32.mrb[0].mxu0
  %790 = vmatprep.mubr.bf16.mxu0 %v361
  %791 = vmatmul.mubr.bf16.gmra.mrb[0].mxu0 %v360
  %v792 = vpop.f32.mrb[0].mxu0
  %v793 = vadd.f32 0.0, %v792
  %v794 = vpop.f32.mrb[0].mxu0
  %v795 = vpop.f32.mrb[0].mxu0
  %v796 = vadd.f32 0.0, %v795
  %v797 = vpop.f32.mrb[0].mxu0
  %798 = vmatprep.mubr.bf16.mxu0 %v363
  %799 = vmatmul.mubr.bf16.gmra.mrb[0].mxu0 %v362
  %v800 = vpop.f32.mrb[0].mxu0
  %v801 = vadd.f32 0.0, %v800
  %v802 = vpop.f32.mrb[0].mxu0
  %v803 = vpop.f32.mrb[0].mxu0
  %v804 = vadd.f32 0.0, %v803
  %v805 = vpop.f32.mrb[0].mxu0
  %806 = vmatprep.mubr.bf16.mxu0 %v365
  %807 = vmatmul.mubr.bf16.gmra.mrb[0].mxu0 %v364
  %v808 = vpop.f32.mrb[0].mxu0
  %v809 = vadd.f32 0.0, %v808
  %v810 = vpop.f32.mrb[0].mxu0
  %v811 = vpop.f32.mrb[0].mxu0
  %v812 = vadd.f32 0.0, %v811
  %v813 = vpop.f32.mrb[0].mxu0
  %814 = vdwg.mxu0
  %815 = vst [vmem:[%s2] sm:$0xff] %v561
  %816 = vst [vmem:[%s2 + $0x8] sm:$0xff] %v564
  %817 = vst [vmem:[%s2 + $0x10] sm:$0xff] %v569
  %818 = vst [vmem:[%s2 + $0x18] sm:$0xff] %v572
  %819 = vst [vmem:[%s2 + $0x20] sm:$0xff] %v577
  %820 = vst [vmem:[%s2 + $0x28] sm:$0xff] %v580
  %821 = vst [vmem:[%s2 + $0x30] sm:$0xff] %v585
  %822 = vst [vmem:[%s2 + $0x38] sm:$0xff] %v588
  %823 = vst [vmem:[%s2 + $0x40] sm:$0xff] %v593
  %824 = vst [vmem:[%s2 + $0x48] sm:$0xff] %v596
  %825 = vst [vmem:[%s2 + $0x50] sm:$0xff] %v601
  %826 = vst [vmem:[%s2 + $0x58] sm:$0xff] %v604
  %827 = vst [vmem:[%s2 + $0x60] sm:$0xff] %v609
  %828 = vst [vmem:[%s2 + $0x68] sm:$0xff] %v612
  %829 = vst [vmem:[%s2 + $0x70] sm:$0xff] %v617
  %830 = vst [vmem:[%s2 + $0x78] sm:$0xff] %v620
  %831 = vst [vmem:[%s2 + $0x80] sm:$0xff] %v625
  %832 = vst [vmem:[%s2 + $0x88] sm:$0xff] %v628
  %833 = vst [vmem:[%s2 + $0x90] sm:$0xff] %v633
  %834 = vst [vmem:[%s2 + $0x98] sm:$0xff] %v636
  %835 = vst [vmem:[%s2 + $0xa0] sm:$0xff] %v641
  %836 = vst [vmem:[%s2 + $0xa8] sm:$0xff] %v644
  %837 = vst [vmem:[%s2 + $0xb0] sm:$0xff] %v649
  %838 = vst [vmem:[%s2 + $0xb8] sm:$0xff] %v652
  %839 = vst [vmem:[%s2 + $0xc0] sm:$0xff] %v657
  %840 = vst [vmem:[%s2 + $0xc8] sm:$0xff] %v660
  %841 = vst [vmem:[%s2 + $0xd0] sm:$0xff] %v665
  %842 = vst [vmem:[%s2 + $0xd8] sm:$0xff] %v668
  %843 = vst [vmem:[%s2 + $0xe0] sm:$0xff] %v673
  %844 = vst [vmem:[%s2 + $0xe8] sm:$0xff] %v676
  %845 = vst [vmem:[%s2 + $0xf0] sm:$0xff] %v681
  %846 = vst [vmem:[%s2 + $0xf8] sm:$0xff] %v684
  %847 = vst [vmem:[%s2 + $0x100] sm:$0xff] %v689
  %848 = vst [vmem:[%s2 + $0x108] sm:$0xff] %v692
  %849 = vst [vmem:[%s2 + $0x110] sm:$0xff] %v697
  %850 = vst [vmem:[%s2 + $0x118] sm:$0xff] %v700
  %851 = vst [vmem:[%s2 + $0x120] sm:$0xff] %v705
  %852 = vst [vmem:[%s2 + $0x128] sm:$0xff] %v708
  %853 = vst [vmem:[%s2 + $0x130] sm:$0xff] %v713
  %854 = vst [vmem:[%s2 + $0x138] sm:$0xff] %v716
  %855 = vst [vmem:[%s2 + $0x140] sm:$0xff] %v721
  %856 = vst [vmem:[%s2 + $0x148] sm:$0xff] %v724
  %857 = vst [vmem:[%s2 + $0x150] sm:$0xff] %v729
  %858 = vst [vmem:[%s2 + $0x158] sm:$0xff] %v732
  %859 = vst [vmem:[%s2 + $0x160] sm:$0xff] %v737
  %860 = vst [vmem:[%s2 + $0x168] sm:$0xff] %v740
  %861 = vst [vmem:[%s2 + $0x170] sm:$0xff] %v745
  %862 = vst [vmem:[%s2 + $0x178] sm:$0xff] %v748
  %863 = vst [vmem:[%s2 + $0x180] sm:$0xff] %v753
  %864 = vst [vmem:[%s2 + $0x188] sm:$0xff] %v756
  %865 = vst [vmem:[%s2 + $0x190] sm:$0xff] %v761
  %866 = vst [vmem:[%s2 + $0x198] sm:$0xff] %v764
  %867 = vst [vmem:[%s2 + $0x1a0] sm:$0xff] %v769
  %868 = vst [vmem:[%s2 + $0x1a8] sm:$0xff] %v772
  %869 = vst [vmem:[%s2 + $0x1b0] sm:$0xff] %v777
  %870 = vst [vmem:[%s2 + $0x1b8] sm:$0xff] %v780
  %871 = vst [vmem:[%s2 + $0x1c0] sm:$0xff] %v785
  %872 = vst [vmem:[%s2 + $0x1c8] sm:$0xff] %v788
  %873 = vst [vmem:[%s2 + $0x1d0] sm:$0xff] %v793
  %874 = vst [vmem:[%s2 + $0x1d8] sm:$0xff] %v796
  %875 = vst [vmem:[%s2 + $0x1e0] sm:$0xff] %v801
  %876 = vst [vmem:[%s2 + $0x1e8] sm:$0xff] %v804
  %877 = vst [vmem:[%s2 + $0x1f0] sm:$0xff] %v809
  %878 = vst [vmem:[%s2 + $0x1f8] sm:$0xff] %v812
  %v879 = vadd.f32 %v561, %v564
  %v880 = vadd.f32 %v879, %v569
  %v881 = vadd.f32 %v880, %v572
  %v882 = vadd.f32 %v881, %v577
  %v883 = vadd.f32 %v882, %v580
  %v884 = vadd.f32 %v883, %v585
  %v885 = vadd.f32 %v884, %v588
  %v886 = vadd.f32 %v885, %v593
  %v887 = vadd.f32 %v886, %v596
  %v888 = vadd.f32 %v887, %v601
  %v889 = vadd.f32 %v888, %v604
  %v890 = vadd.f32 %v889, %v609
  %v891 = vadd.f32 %v890, %v612
  %v892 = vadd.f32 %v891, %v617
  %v893 = vadd.f32 %v892, %v620
  %v894 = vadd.f32 %v893, %v625
  %v895 = vadd.f32 %v894, %v628
  %v896 = vadd.f32 %v895, %v633
  %v897 = vadd.f32 %v896, %v636
  %v898 = vadd.f32 %v897, %v641
  %v899 = vadd.f32 %v898, %v644
  %v900 = vadd.f32 %v899, %v649
  %v901 = vadd.f32 %v900, %v652
  %v902 = vadd.f32 %v901, %v657
  %v903 = vadd.f32 %v902, %v660
  %v904 = vadd.f32 %v903, %v665
  %v905 = vadd.f32 %v904, %v668
  %v906 = vadd.f32 %v905, %v673
  %v907 = vadd.f32 %v906, %v676
  %v908 = vadd.f32 %v907, %v681
  %v909 = vadd.f32 %v908, %v684
  %v910 = vadd.f32 %v909, %v689
  %v911 = vadd.f32 %v910, %v692
  %v912 = vadd.f32 %v911, %v697
  %v913 = vadd.f32 %v912, %v700
  %v914 = vadd.f32 %v913, %v705
  %v915 = vadd.f32 %v914, %v708
  %v916 = vadd.f32 %v915, %v713
  %v917 = vadd.f32 %v916, %v716
  %v918 = vadd.f32 %v917, %v721
  %v919 = vadd.f32 %v918, %v724
  %v920 = vadd.f32 %v919, %v729
  %v921 = vadd.f32 %v920, %v732
  %v922 = vadd.f32 %v921, %v737
  %v923 = vadd.f32 %v922, %v740
  %v924 = vadd.f32 %v923, %v745
  %v925 = vadd.f32 %v924, %v748
  %v926 = vadd.f32 %v925, %v753
  %v927 = vadd.f32 %v926, %v756
  %v928 = vadd.f32 %v927, %v761
  %v929 = vadd.f32 %v928, %v764
  %v930 = vadd.f32 %v929, %v769
  %v931 = vadd.f32 %v930, %v772
  %v932 = vadd.f32 %v931, %v777
  %v933 = vadd.f32 %v932, %v780
  %v934 = vadd.f32 %v933, %v785
  %v935 = vadd.f32 %v934, %v788
  %v936 = vadd.f32 %v935, %v793
  %v937 = vadd.f32 %v936, %v796
  %v938 = vadd.f32 %v937, %v801
  %v939 = vadd.f32 %v938, %v804
  %v940 = vadd.f32 %v939, %v809
  %v941 = vadd.f32 %v940, %v812
  %v942 = vrot.slane %v941, 4
  %v943 = vadd.f32 %v941, %v942
  %v944 = vrot.slane %v943, 2
  %v945 = vadd.f32 %v943, %v944
  %v946 = vrot.slane %v945, 1
  %v947 = vadd.f32 %v945, %v946
  %v948 = vmul.f32 %v561, %v561
  %v949 = vmul.f32 %v564, %v564
  %v950 = vmul.f32 %v569, %v569
  %v951 = vmul.f32 %v572, %v572
  %v952 = vmul.f32 %v577, %v577
  %v953 = vmul.f32 %v580, %v580
  %v954 = vmul.f32 %v585, %v585
  %v955 = vmul.f32 %v588, %v588
  %v956 = vmul.f32 %v593, %v593
  %v957 = vmul.f32 %v596, %v596
  %v958 = vmul.f32 %v601, %v601
  %v959 = vmul.f32 %v604, %v604
  %v960 = vmul.f32 %v609, %v609
  %v961 = vmul.f32 %v612, %v612
  %v962 = vmul.f32 %v617, %v617
  %v963 = vmul.f32 %v620, %v620
  %v964 = vmul.f32 %v625, %v625
  %v965 = vmul.f32 %v628, %v628
  %v966 = vmul.f32 %v633, %v633
  %v967 = vmul.f32 %v636, %v636
  %v968 = vmul.f32 %v641, %v641
  %v969 = vmul.f32 %v644, %v644
  %v970 = vmul.f32 %v649, %v649
  %v971 = vmul.f32 %v652, %v652
  %v972 = vmul.f32 %v657, %v657
  %v973 = vmul.f32 %v660, %v660
  %v974 = vmul.f32 %v665, %v665
  %v975 = vmul.f32 %v668, %v668
  %v976 = vmul.f32 %v673, %v673
  %v977 = vmul.f32 %v676, %v676
  %v978 = vmul.f32 %v681, %v681
  %v979 = vmul.f32 %v684, %v684
  %v980 = vmul.f32 %v689, %v689
  %v981 = vmul.f32 %v692, %v692
  %v982 = vmul.f32 %v697, %v697
  %v983 = vmul.f32 %v700, %v700
  %v984 = vmul.f32 %v705, %v705
  %v985 = vmul.f32 %v708, %v708
  %v986 = vmul.f32 %v713, %v713
  %v987 = vmul.f32 %v716, %v716
  %v988 = vmul.f32 %v721, %v721
  %v989 = vmul.f32 %v724, %v724
  %v990 = vmul.f32 %v729, %v729
  %v991 = vmul.f32 %v732, %v732
  %v992 = vmul.f32 %v737, %v737
  %v993 = vmul.f32 %v740, %v740
  %v994 = vmul.f32 %v745, %v745
  %v995 = vmul.f32 %v748, %v748
  %v996 = vmul.f32 %v753, %v753
  %v997 = vmul.f32 %v756, %v756
  %v998 = vmul.f32 %v761, %v761
  %v999 = vmul.f32 %v764, %v764
  %v1000 = vmul.f32 %v769, %v769
  %v1001 = vmul.f32 %v772, %v772
  %v1002 = vmul.f32 %v777, %v777
  %v1003 = vmul.f32 %v780, %v780
  %v1004 = vmul.f32 %v785, %v785
  %v1005 = vmul.f32 %v788, %v788
  %v1006 = vmul.f32 %v793, %v793
  %v1007 = vmul.f32 %v796, %v796
  %v1008 = vmul.f32 %v801, %v801
  %v1009 = vmul.f32 %v804, %v804
  %v1010 = vmul.f32 %v809, %v809
  %v1011 = vmul.f32 %v812, %v812
  %v1012 = vadd.f32 %v948, %v949
  %v1013 = vadd.f32 %v1012, %v950
  %v1014 = vadd.f32 %v1013, %v951
  %v1015 = vadd.f32 %v1014, %v952
  %v1016 = vadd.f32 %v1015, %v953
  %v1017 = vadd.f32 %v1016, %v954
  %v1018 = vadd.f32 %v1017, %v955
  %v1019 = vadd.f32 %v1018, %v956
  %v1020 = vadd.f32 %v1019, %v957
  %v1021 = vadd.f32 %v1020, %v958
  %v1022 = vadd.f32 %v1021, %v959
  %v1023 = vadd.f32 %v1022, %v960
  %v1024 = vadd.f32 %v1023, %v961
  %v1025 = vadd.f32 %v1024, %v962
  %v1026 = vadd.f32 %v1025, %v963
  %v1027 = vadd.f32 %v1026, %v964
  %v1028 = vadd.f32 %v1027, %v965
  %v1029 = vadd.f32 %v1028, %v966
  %v1030 = vadd.f32 %v1029, %v967
  %v1031 = vadd.f32 %v1030, %v968
  %v1032 = vadd.f32 %v1031, %v969
  %v1033 = vadd.f32 %v1032, %v970
  %v1034 = vadd.f32 %v1033, %v971
  %v1035 = vadd.f32 %v1034, %v972
  %v1036 = vadd.f32 %v1035, %v973
  %v1037 = vadd.f32 %v1036, %v974
  %v1038 = vadd.f32 %v1037, %v975
  %v1039 = vadd.f32 %v1038, %v976
  %v1040 = vadd.f32 %v1039, %v977
  %v1041 = vadd.f32 %v1040, %v978
  %v1042 = vadd.f32 %v1041, %v979
  %v1043 = vadd.f32 %v1042, %v980
  %v1044 = vadd.f32 %v1043, %v981
  %v1045 = vadd.f32 %v1044, %v982
  %v1046 = vadd.f32 %v1045, %v983
  %v1047 = vadd.f32 %v1046, %v984
  %v1048 = vadd.f32 %v1047, %v985
  %v1049 = vadd.f32 %v1048, %v986
  %v1050 = vadd.f32 %v1049, %v987
  %v1051 = vadd.f32 %v1050, %v988
  %v1052 = vadd.f32 %v1051, %v989
  %v1053 = vadd.f32 %v1052, %v990
  %v1054 = vadd.f32 %v1053, %v991
  %v1055 = vadd.f32 %v1054, %v992
  %v1056 = vadd.f32 %v1055, %v993
  %v1057 = vadd.f32 %v1056, %v994
  %v1058 = vadd.f32 %v1057, %v995
  %v1059 = vadd.f32 %v1058, %v996
  %v1060 = vadd.f32 %v1059, %v997
  %v1061 = vadd.f32 %v1060, %v998
  %v1062 = vadd.f32 %v1061, %v999
  %v1063 = vadd.f32 %v1062, %v1000
  %v1064 = vadd.f32 %v1063, %v1001
  %v1065 = vadd.f32 %v1064, %v1002
  %v1066 = vadd.f32 %v1065, %v1003
  %v1067 = vadd.f32 %v1066, %v1004
  %v1068 = vadd.f32 %v1067, %v1005
  %v1069 = vadd.f32 %v1068, %v1006
  %v1070 = vadd.f32 %v1069, %v1007
  %v1071 = vadd.f32 %v1070, %v1008
  %v1072 = vadd.f32 %v1071, %v1009
  %v1073 = vadd.f32 %v1072, %v1010
  %v1074 = vadd.f32 %v1073, %v1011
  %v1075 = vrot.slane %v1074, 4
  %v1076 = vadd.f32 %v1074, %v1075
  %v1077 = vrot.slane %v1076, 2
  %v1078 = vadd.f32 %v1076, %v1077
  %v1079 = vrot.slane %v1078, 1
  %v1080 = vadd.f32 %v1078, %v1079
  %vm1081 = vcmask 1040384
  %v1082 = vsel %vm1081, %v947, %v1080
  %1083 = vst [vmem:[%s3] sm:$0x3] %v1082
  // Predicated region
  $region10: #{pose_encoder_forward.17} parent=0 // pred_check
    _
  $region11: #{pose_encoder_forward.17} parent=0 // pred_check_branch
    %1085 = sbr.rel (0) target = $region13
  $region12: #{pose_encoder_forward.17} parent=0 // pred_region
    _
  $region13: #{pose_encoder_forward.17} parent=0 // pred_fallthru
    _
  // Predicated region
  $region14: #{pose_encoder_forward.17} parent=0 // pred_check
    _
  $region15: #{pose_encoder_forward.17} parent=0 // pred_check_branch
    %1087 = sbr.rel (0) target = $region17
  $region16: #{pose_encoder_forward.17} parent=0 // pred_region
    _
  $region17: #{pose_encoder_forward.17} parent=0 // pred_fallthru
    _
  // Predicated region
  $region18: #{pose_encoder_forward.17} parent=0 // pred_check
    _
  $region19: #{pose_encoder_forward.17} parent=0 // pred_check_branch
    %1089 = sbr.rel (0) target = $region21
  $region20: #{pose_encoder_forward.17} parent=0 // pred_region
    _
  $region21: #{pose_encoder_forward.17} parent=0 // pred_fallthru
    _
  // Predicated region
  $region22: #{pose_encoder_forward.17} parent=0 // pred_check
    _
  $region23: #{pose_encoder_forward.17} parent=0 // pred_check_branch
    %1091 = sbr.rel (0) target = $region25
  $region24: #{pose_encoder_forward.17} parent=0 // pred_region
    _
  $region25: #{pose_encoder_forward.17} parent=0 // pred_fallthru
    _

// kernel: pose_encoder_forward.19
$region0: #{pose_encoder_forward.19}
  #allocation0 [shape = 'u32[]', space=smem, size = 0x4, offset = 0x4, fixed_abs, tag = 'smem constant byte address 0x4 - core index']
  #allocation1 [shape = 'u32[144,128]{1,0:T(1,128)}', space=vmem, size = 0x12000, scoped, tag = 'internal scratch']
  %s0 = inlined_call_operand.vmem [shape: bf16[512,128], index: 0, kind: input, shape index: {}]
  %s1 = inlined_call_operand.vmem [shape: bf16[128,128], index: 1, kind: input, shape index: {}]
  %s2 = inlined_call_operand.vmem [shape: f32[512,128], index: 2, kind: output, shape index: {0}]
  %s3 = inlined_call_operand.vmem [shape: f32[1,2,128], index: 3, kind: output, shape index: {1}]
  %4 = xla_tuple %s2, %s3
  %s5 = sld [smem:[#allocation0]]
  $region26: #{pose_encoder_forward.19} parent=0
    _
  %s7 = ssub.s32 1, %s5
  %s8 = scalar_select 0, %s7, %s5
  // Predicated region
  $region2: #{pose_encoder_forward.19} parent=0 // pred_check
    _
  $region3: #{pose_encoder_forward.19} parent=0 // pred_check_branch
    %10 = sbr.rel (0) target = $region5
  $region4: #{pose_encoder_forward.19} parent=0 // pred_region
    _
  $region5: #{pose_encoder_forward.19} parent=0 // pred_fallthru
    _
  // Predicated region
  $region6: #{pose_encoder_forward.19} parent=0 // pred_check
    _
  $region7: #{pose_encoder_forward.19} parent=0 // pred_check_branch
    %12 = sbr.rel (0) target = $region9
  $region8: #{pose_encoder_forward.19} parent=0 // pred_region
    _
  $region9: #{pose_encoder_forward.19} parent=0 // pred_fallthru
    _
  %v14 = vld [vmem:[%s0] sm:$0xf]
  %v15 = vld [vmem:[%s0 + $0x4] sm:$0xf]
  %v16 = vld [vmem:[%s0 + $0x8] sm:$0xf]
  %v17 = vld [vmem:[%s0 + $0xc] sm:$0xf]
  %v18 = vld [vmem:[%s0 + $0x10] sm:$0xf]
  %v19 = vld [vmem:[%s0 + $0x14] sm:$0xf]
  %v20 = vld [vmem:[%s0 + $0x18] sm:$0xf]
  %v21 = vld [vmem:[%s0 + $0x1c] sm:$0xf]
  %v22 = vld [vmem:[%s0 + $0x20] sm:$0xf]
  %v23 = vld [vmem:[%s0 + $0x24] sm:$0xf]
  %v24 = vld [vmem:[%s0 + $0x28] sm:$0xf]
  %v25 = vld [vmem:[%s0 + $0x2c] sm:$0xf]
  %v26 = vld [vmem:[%s0 + $0x30] sm:$0xf]
  %v27 = vld [vmem:[%s0 + $0x34] sm:$0xf]
  %v28 = vld [vmem:[%s0 + $0x38] sm:$0xf]
  %v29 = vld [vmem:[%s0 + $0x3c] sm:$0xf]
  %v30 = vld [vmem:[%s0 + $0x40] sm:$0xf]
  %v31 = vld [vmem:[%s0 + $0x44] sm:$0xf]
  %v32 = vld [vmem:[%s0 + $0x48] sm:$0xf]
  %v33 = vld [vmem:[%s0 + $0x4c] sm:$0xf]
  %v34 = vld [vmem:[%s0 + $0x50] sm:$0xf]
  %v35 = vld [vmem:[%s0 + $0x54] sm:$0xf]
  %v36 = vld [vmem:[%s0 + $0x58] sm:$0xf]
  %v37 = vld [vmem:[%s0 + $0x5c] sm:$0xf]
  %v38 = vld [vmem:[%s0 + $0x60] sm:$0xf]
  %v39 = vld [vmem:[%s0 + $0x64] sm:$0xf]
  %v40 = vld [vmem:[%s0 + $0x68] sm:$0xf]
  %v41 = vld [vmem:[%s0 + $0x6c] sm:$0xf]
  %v42 = vld [vmem:[%s0 + $0x70] sm:$0xf]
  %v43 = vld [vmem:[%s0 + $0x74] sm:$0xf]
  %v44 = vld [vmem:[%s0 + $0x78] sm:$0xf]
  %v45 = vld [vmem:[%s0 + $0x7c] sm:$0xf]
  %v46 = vld [vmem:[%s0 + $0x80] sm:$0xf]
  %v47 = vld [vmem:[%s0 + $0x84] sm:$0xf]
  %v48 = vld [vmem:[%s0 + $0x88] sm:$0xf]
  %v49 = vld [vmem:[%s0 + $0x8c] sm:$0xf]
  %v50 = vld [vmem:[%s0 + $0x90] sm:$0xf]
  %v51 = vld [vmem:[%s0 + $0x94] sm:$0xf]
  %v52 = vld [vmem:[%s0 + $0x98] sm:$0xf]
  %v53 = vld [vmem:[%s0 + $0x9c] sm:$0xf]
  %v54 = vld [vmem:[%s0 + $0xa0] sm:$0xf]
  %v55 = vld [vmem:[%s0 + $0xa4] sm:$0xf]
  %v56 = vld [vmem:[%s0 + $0xa8] sm:$0xf]
  %v57 = vld [vmem:[%s0 + $0xac] sm:$0xf]
  %v58 = vld [vmem:[%s0 + $0xb0] sm:$0xf]
  %v59 = vld [vmem:[%s0 + $0xb4] sm:$0xf]
  %v60 = vld [vmem:[%s0 + $0xb8] sm:$0xf]
  %v61 = vld [vmem:[%s0 + $0xbc] sm:$0xf]
  %v62 = vld [vmem:[%s0 + $0xc0] sm:$0xf]
  %v63 = vld [vmem:[%s0 + $0xc4] sm:$0xf]
  %v64 = vld [vmem:[%s0 + $0xc8] sm:$0xf]
  %v65 = vld [vmem:[%s0 + $0xcc] sm:$0xf]
  %v66 = vld [vmem:[%s0 + $0xd0] sm:$0xf]
  %v67 = vld [vmem:[%s0 + $0xd4] sm:$0xf]
  %v68 = vld [vmem:[%s0 + $0xd8] sm:$0xf]
  %v69 = vld [vmem:[%s0 + $0xdc] sm:$0xf]
  %v70 = vld [vmem:[%s0 + $0xe0] sm:$0xf]
  %v71 = vld [vmem:[%s0 + $0xe4] sm:$0xf]
  %v72 = vld [vmem:[%s0 + $0xe8] sm:$0xf]
  %v73 = vld [vmem:[%s0 + $0xec] sm:$0xf]
  %v74 = vld [vmem:[%s0 + $0xf0] sm:$0xf]
  %v75 = vld [vmem:[%s0 + $0xf4] sm:$0xf]
  %v76 = vld [vmem:[%s0 + $0xf8] sm:$0xf]
  %v77 = vld [vmem:[%s0 + $0xfc] sm:$0xf]
  %v78 = vld [vmem:[%s1] sm:$0xf]
  %v79 = vld [vmem:[%s1 + $0x4] sm:$0xf]
  %v80 = vld [vmem:[%s1 + $0x8] sm:$0xf]
  %v81 = vld [vmem:[%s1 + $0xc] sm:$0xf]
  %v82 = vld [vmem:[%s1 + $0x10] sm:$0xf]
  %v83 = vld [vmem:[%s1 + $0x14] sm:$0xf]
  %v84 = vld [vmem:[%s1 + $0x18] sm:$0xf]
  %v85 = vld [vmem:[%s1 + $0x1c] sm:$0xf]
  %v86 = vld [vmem:[%s1 + $0x20] sm:$0xf]
  %v87 = vld [vmem:[%s1 + $0x24] sm:$0xf]
  %v88 = vld [vmem:[%s1 + $0x28] sm:$0xf]
  %v89 = vld [vmem:[%s1 + $0x2c] sm:$0xf]
  %v90 = vld [vmem:[%s1 + $0x30] sm:$0xf]
  %v91 = vld [vmem:[%s1 + $0x34] sm:$0xf]
  %v92 = vld [vmem:[%s1 + $0x38] sm:$0xf]
  %v93 = vld [vmem:[%s1 + $0x3c] sm:$0xf]
  %v158 = vunpack.c.l.b16 %v14
  %v159 = vunpack.c.l.b16 %v15
  %v160 = vunpack.c.l.b16 %v16
  %v161 = vunpack.c.l.b16 %v17
  %v162 = vunpack.c.l.b16 %v18
  %v163 = vunpack.c.l.b16 %v19
  %v164 = vunpack.c.l.b16 %v20
  %v165 = vunpack.c.l.b16 %v21
  %v166 = vunpack.c.l.b16 %v22
  %v167 = vunpack.c.l.b16 %v23
  %v168 = vunpack.c.l.b16 %v24
  %v169 = vunpack.c.l.b16 %v25
  %v170 = vunpack.c.l.b16 %v26
  %v171 = vunpack.c.l.b16 %v27
  %v172 = vunpack.c.l.b16 %v28
  %v173 = vunpack.c.l.b16 %v29
  %v174 = vunpack.c.l.b16 %v30
  %v175 = vunpack.c.l.b16 %v31
  %v176 = vunpack.c.l.b16 %v32
  %v177 = vunpack.c.l.b16 %v33
  %v178 = vunpack.c.l.b16 %v34
  %v179 = vunpack.c.l.b16 %v35
  %v180 = vunpack.c.l.b16 %v36
  %v181 = vunpack.c.l.b16 %v37
  %v182 = vunpack.c.l.b16 %v38
  %v183 = vunpack.c.l.b16 %v39
  %v184 = vunpack.c.l.b16 %v40
  %v185 = vunpack.c.l.b16 %v41
  %v186 = vunpack.c.l.b16 %v42
  %v187 = vunpack.c.l.b16 %v43
  %v188 = vunpack.c.l.b16 %v44
  %v189 = vunpack.c.l.b16 %v45
  %v190 = vunpack.c.l.b16 %v46
  %v191 = vunpack.c.l.b16 %v47
  %v192 = vunpack.c.l.b16 %v48
  %v193 = vunpack.c.l.b16 %v49
  %v194 = vunpack.c.l.b16 %v50
  %v195 = vunpack.c.l.b16 %v51
  %v196 = vunpack.c.l.b16 %v52
  %v197 = vunpack.c.l.b16 %v53
  %v198 = vunpack.c.l.b16 %v54
  %v199 = vunpack.c.l.b16 %v55
  %v200 = vunpack.c.l.b16 %v56
  %v201 = vunpack.c.l.b16 %v57
  %v202 = vunpack.c.l.b16 %v58
  %v203 = vunpack.c.l.b16 %v59
  %v204 = vunpack.c.l.b16 %v60
  %v205 = vunpack.c.l.b16 %v61
  %v206 = vunpack.c.l.b16 %v62
  %v207 = vunpack.c.l.b16 %v63
  %v208 = vunpack.c.l.b16 %v64
  %v209 = vunpack.c.l.b16 %v65
  %v210 = vunpack.c.l.b16 %v66
  %v211 = vunpack.c.l.b16 %v67
  %v212 = vunpack.c.l.b16 %v68
  %v213 = vunpack.c.l.b16 %v69
  %v214 = vunpack.c.l.b16 %v70
  %v215 = vunpack.c.l.b16 %v71
  %v216 = vunpack.c.l.b16 %v72
  %v217 = vunpack.c.l.b16 %v73
  %v218 = vunpack.c.l.b16 %v74
  %v219 = vunpack.c.l.b16 %v75
  %v220 = vunpack.c.l.b16 %v76
  %v221 = vunpack.c.l.b16 %v77
  %v222 = vpack.c.b16 %v159, %v158
  %v223 = vpack.c.b16 %v161, %v160
  %v224 = vpack.c.b16 %v163, %v162
  %v225 = vpack.c.b16 %v165, %v164
  %v226 = vpack.c.b16 %v167, %v166
  %v227 = vpack.c.b16 %v169, %v168
  %v228 = vpack.c.b16 %v171, %v170
  %v229 = vpack.c.b16 %v173, %v172
  %v230 = vpack.c.b16 %v175, %v174
  %v231 = vpack.c.b16 %v177, %v176
  %v232 = vpack.c.b16 %v179, %v178
  %v233 = vpack.c.b16 %v181, %v180
  %v234 = vpack.c.b16 %v183, %v182
  %v235 = vpack.c.b16 %v185, %v184
  %v236 = vpack.c.b16 %v187, %v186
  %v237 = vpack.c.b16 %v189, %v188
  %v238 = vpack.c.b16 %v191, %v190
  %v239 = vpack.c.b16 %v193, %v192
  %v240 = vpack.c.b16 %v195, %v194
  %v241 = vpack.c.b16 %v197, %v196
  %v242 = vpack.c.b16 %v199, %v198
  %v243 = vpack.c.b16 %v201, %v200
  %v244 = vpack.c.b16 %v203, %v202
  %v245 = vpack.c.b16 %v205, %v204
  %v246 = vpack.c.b16 %v207, %v206
  %v247 = vpack.c.b16 %v209, %v208
  %v248 = vpack.c.b16 %v211, %v210
  %v249 = vpack.c.b16 %v213, %v212
  %v250 = vpack.c.b16 %v215, %v214
  %v251 = vpack.c.b16 %v217, %v216
  %v252 = vpack.c.b16 %v219, %v218
  %v253 = vpack.c.b16 %v221, %v220
  %v302 = vunpack.c.l.b16 %v78
  %v303 = vunpack.c.l.b16 %v79
  %v304 = vunpack.c.l.b16 %v80
  %v305 = vunpack.c.l.b16 %v81
  %v306 = vunpack.c.l.b16 %v82
  %v307 = vunpack.c.l.b16 %v83
  %v308 = vunpack.c.l.b16 %v84
  %v309 = vunpack.c.l.b16 %v85
  %v310 = vunpack.c.l.b16 %v86
  %v311 = vunpack.c.l.b16 %v87
  %v312 = vunpack.c.l.b16 %v88
  %v313 = vunpack.c.l.b16 %v89
  %v314 = vunpack.c.l.b16 %v90
  %v315 = vunpack.c.l.b16 %v91
  %v316 = vunpack.c.l.b16 %v92
  %v317 = vunpack.c.l.b16 %v93
  %v318 = vpack.c.b16 %v303, %v302
  %v319 = vpack.c.b16 %v305, %v304
  %v320 = vpack.c.b16 %v307, %v306
  %v321 = vpack.c.b16 %v309, %v308
  %v322 = vpack.c.b16 %v311, %v310
  %v323 = vpack.c.b16 %v313, %v312
  %v324 = vpack.c.b16 %v315, %v314
  %v325 = vpack.c.b16 %v317, %v316
  %334 = vmatprep.subr.bf16.mxu0 0
  %335 = vmatpush1.bf16.msra.mxu0 %v318
  %336 = vmatprep.subr.bf16.mxu0 0
  %337 = vmatpush1.bf16.msra.mxu0 %v319
  %338 = vmatprep.subr.bf16.mxu0 0
  %339 = vmatpush1.bf16.msra.mxu0 %v320
  %340 = vmatprep.subr.bf16.mxu0 0
  %341 = vmatpush1.bf16.msra.mxu0 %v321
  %342 = vmatprep.subr.bf16.mxu0 0
  %343 = vmatpush1.bf16.msra.mxu0 %v322
  %344 = vmatprep.subr.bf16.mxu0 0
  %345 = vmatpush1.bf16.msra.mxu0 %v323
  %346 = vmatprep.subr.bf16.mxu0 0
  %347 = vmatpush1.bf16.msra.mxu0 %v324
  %348 = vmatprep.subr.bf16.mxu0 0
  %349 = vmatpush1.bf16.msra.mxu0 %v325
  %350 = vmatprep.subr.bf16.mxu0 0
  %351 = vmatpush1.bf16.msra.mxu0 0
  %352 = vmatprep.subr.bf16.mxu0 0
  %353 = vmatpush1.bf16.msra.mxu0 0
  %354 = vmatprep.subr.bf16.mxu0 0
  %355 = vmatpush1.bf16.msra.mxu0 0
  %356 = vmatprep.subr.bf16.mxu0 0
  %357 = vmatpush1.bf16.msra.mxu0 0
  %358 = vmatprep.subr.bf16.mxu0 0
  %359 = vmatpush1.bf16.msra.mxu0 0
  %360 = vmatprep.subr.bf16.mxu0 0
  %361 = vmatpush1.bf16.msra.mxu0 0
  %362 = vmatprep.subr.bf16.mxu0 0
  %363 = vmatpush1.bf16.msra.mxu0 0
  %364 = vmatprep.subr.bf16.mxu0 0
  %365 = vmatpush1.bf16.msra.mxu0 0
  %366 = vmatprep.mubr.bf16.mxu0 0
  %367 = vmatmul.mubr.bf16.gmra.mrb[0].mxu0 %v222
  %v368 = vpop.f32.mrb[0].mxu0
  %v369 = vadd.f32 0.0, %v368
  %v370 = vpop.f32.mrb[0].mxu0
  %v371 = vpop.f32.mrb[0].mxu0
  %v372 = vadd.f32 0.0, %v371
  %v373 = vpop.f32.mrb[0].mxu0
  %374 = vmatprep.mubr.bf16.mxu0 0
  %375 = vmatmul.mubr.bf16.gmra.mrb[0].mxu0 %v223
  %v376 = vpop.f32.mrb[0].mxu0
  %v377 = vadd.f32 0.0, %v376
  %v378 = vpop.f32.mrb[0].mxu0
  %v379 = vpop.f32.mrb[0].mxu0
  %v380 = vadd.f32 0.0, %v379
  %v381 = vpop.f32.mrb[0].mxu0
  %382 = vmatprep.mubr.bf16.mxu0 0
  %383 = vmatmul.mubr.bf16.gmra.mrb[0].mxu0 %v224
  %v384 = vpop.f32.mrb[0].mxu0
  %v385 = vadd.f32 0.0, %v384
  %v386 = vpop.f32.mrb[0].mxu0
  %v387 = vpop.f32.mrb[0].mxu0
  %v388 = vadd.f32 0.0, %v387
  %v389 = vpop.f32.mrb[0].mxu0
  %390 = vmatprep.mubr.bf16.mxu0 0
  %391 = vmatmul.mubr.bf16.gmra.mrb[0].mxu0 %v225
  %v392 = vpop.f32.mrb[0].mxu0
  %v393 = vadd.f32 0.0, %v392
  %v394 = vpop.f32.mrb[0].mxu0
  %v395 = vpop.f32.mrb[0].mxu0
  %v396 = vadd.f32 0.0, %v395
  %v397 = vpop.f32.mrb[0].mxu0
  %398 = vmatprep.mubr.bf16.mxu0 0
  %399 = vmatmul.mubr.bf16.gmra.mrb[0].mxu0 %v226
  %v400 = vpop.f32.mrb[0].mxu0
  %v401 = vadd.f32 0.0, %v400
  %v402 = vpop.f32.mrb[0].mxu0
  %v403 = vpop.f32.mrb[0].mxu0
  %v404 = vadd.f32 0.0, %v403
  %v405 = vpop.f32.mrb[0].mxu0
  %406 = vmatprep.mubr.bf16.mxu0 0
  %407 = vmatmul.mubr.bf16.gmra.mrb[0].mxu0 %v227
  %v408 = vpop.f32.mrb[0].mxu0
  %v409 = vadd.f32 0.0, %v408
  %v410 = vpop.f32.mrb[0].mxu0
  %v411 = vpop.f32.mrb[0].mxu0
  %v412 = vadd.f32 0.0, %v411
  %v413 = vpop.f32.mrb[0].mxu0
  %414 = vmatprep.mubr.bf16.mxu0 0
  %415 = vmatmul.mubr.bf16.gmra.mrb[0].mxu0 %v228
  %v416 = vpop.f32.mrb[0].mxu0
  %v417 = vadd.f32 0.0, %v416
  %v418 = vpop.f32.mrb[0].mxu0
  %v419 = vpop.f32.mrb[0].mxu0
  %v420 = vadd.f32 0.0, %v419
  %v421 = vpop.f32.mrb[0].mxu0
  %422 = vmatprep.mubr.bf16.mxu0 0
  %423 = vmatmul.mubr.bf16.gmra.mrb[0].mxu0 %v229
  %v424 = vpop.f32.mrb[0].mxu0
  %v425 = vadd.f32 0.0, %v424
  %v426 = vpop.f32.mrb[0].mxu0
  %v427 = vpop.f32.mrb[0].mxu0
  %v428 = vadd.f32 0.0, %v427
  %v429 = vpop.f32.mrb[0].mxu0
  %430 = vmatprep.mubr.bf16.mxu0 0
  %431 = vmatmul.mubr.bf16.gmra.mrb[0].mxu0 %v230
  %v432 = vpop.f32.mrb[0].mxu0
  %v433 = vadd.f32 0.0, %v432
  %v434 = vpop.f32.mrb[0].mxu0
  %v435 = vpop.f32.mrb[0].mxu0
  %v436 = vadd.f32 0.0, %v435
  %v437 = vpop.f32.mrb[0].mxu0
  %438 = vmatprep.mubr.bf16.mxu0 0
  %439 = vmatmul.mubr.bf16.gmra.mrb[0].mxu0 %v231
  %v440 = vpop.f32.mrb[0].mxu0
  %v441 = vadd.f32 0.0, %v440
  %v442 = vpop.f32.mrb[0].mxu0
  %v443 = vpop.f32.mrb[0].mxu0
  %v444 = vadd.f32 0.0, %v443
  %v445 = vpop.f32.mrb[0].mxu0
  %446 = vmatprep.mubr.bf16.mxu0 0
  %447 = vmatmul.mubr.bf16.gmra.mrb[0].mxu0 %v232
  %v448 = vpop.f32.mrb[0].mxu0
  %v449 = vadd.f32 0.0, %v448
  %v450 = vpop.f32.mrb[0].mxu0
  %v451 = vpop.f32.mrb[0].mxu0
  %v452 = vadd.f32 0.0, %v451
  %v453 = vpop.f32.mrb[0].mxu0
  %454 = vmatprep.mubr.bf16.mxu0 0
  %455 = vmatmul.mubr.bf16.gmra.mrb[0].mxu0 %v233
  %v456 = vpop.f32.mrb[0].mxu0
  %v457 = vadd.f32 0.0, %v456
  %v458 = vpop.f32.mrb[0].mxu0
  %v459 = vpop.f32.mrb[0].mxu0
  %v460 = vadd.f32 0.0, %v459
  %v461 = vpop.f32.mrb[0].mxu0
  %462 = vmatprep.mubr.bf16.mxu0 0
  %463 = vmatmul.mubr.bf16.gmra.mrb[0].mxu0 %v234
  %v464 = vpop.f32.mrb[0].mxu0
  %v465 = vadd.f32 0.0, %v464
  %v466 = vpop.f32.mrb[0].mxu0
  %v467 = vpop.f32.mrb[0].mxu0
  %v468 = vadd.f32 0.0, %v467
  %v469 = vpop.f32.mrb[0].mxu0
  %470 = vmatprep.mubr.bf16.mxu0 0
  %471 = vmatmul.mubr.bf16.gmra.mrb[0].mxu0 %v235
  %v472 = vpop.f32.mrb[0].mxu0
  %v473 = vadd.f32 0.0, %v472
  %v474 = vpop.f32.mrb[0].mxu0
  %v475 = vpop.f32.mrb[0].mxu0
  %v476 = vadd.f32 0.0, %v475
  %v477 = vpop.f32.mrb[0].mxu0
  %478 = vmatprep.mubr.bf16.mxu0 0
  %479 = vmatmul.mubr.bf16.gmra.mrb[0].mxu0 %v236
  %v480 = vpop.f32.mrb[0].mxu0
  %v481 = vadd.f32 0.0, %v480
  %v482 = vpop.f32.mrb[0].mxu0
  %v483 = vpop.f32.mrb[0].mxu0
  %v484 = vadd.f32 0.0, %v483
  %v485 = vpop.f32.mrb[0].mxu0
  %486 = vmatprep.mubr.bf16.mxu0 0
  %487 = vmatmul.mubr.bf16.gmra.mrb[0].mxu0 %v237
  %v488 = vpop.f32.mrb[0].mxu0
  %v489 = vadd.f32 0.0, %v488
  %v490 = vpop.f32.mrb[0].mxu0
  %v491 = vpop.f32.mrb[0].mxu0
  %v492 = vadd.f32 0.0, %v491
  %v493 = vpop.f32.mrb[0].mxu0
  %494 = vmatprep.mubr.bf16.mxu0 0
  %495 = vmatmul.mubr.bf16.gmra.mrb[0].mxu0 %v238
  %v496 = vpop.f32.mrb[0].mxu0
  %v497 = vadd.f32 0.0, %v496
  %v498 = vpop.f32.mrb[0].mxu0
  %v499 = vpop.f32.mrb[0].mxu0
  %v500 = vadd.f32 0.0, %v499
  %v501 = vpop.f32.mrb[0].mxu0
  %502 = vmatprep.mubr.bf16.mxu0 0
  %503 = vmatmul.mubr.bf16.gmra.mrb[0].mxu0 %v239
  %v504 = vpop.f32.mrb[0].mxu0
  %v505 = vadd.f32 0.0, %v504
  %v506 = vpop.f32.mrb[0].mxu0
  %v507 = vpop.f32.mrb[0].mxu0
  %v508 = vadd.f32 0.0, %v507
  %v509 = vpop.f32.mrb[0].mxu0
  %510 = vmatprep.mubr.bf16.mxu0 0
  %511 = vmatmul.mubr.bf16.gmra.mrb[0].mxu0 %v240
  %v512 = vpop.f32.mrb[0].mxu0
  %v513 = vadd.f32 0.0, %v512
  %v514 = vpop.f32.mrb[0].mxu0
  %v515 = vpop.f32.mrb[0].mxu0
  %v516 = vadd.f32 0.0, %v515
  %v517 = vpop.f32.mrb[0].mxu0
  %518 = vmatprep.mubr.bf16.mxu0 0
  %519 = vmatmul.mubr.bf16.gmra.mrb[0].mxu0 %v241
  %v520 = vpop.f32.mrb[0].mxu0
  %v521 = vadd.f32 0.0, %v520
  %v522 = vpop.f32.mrb[0].mxu0
  %v523 = vpop.f32.mrb[0].mxu0
  %v524 = vadd.f32 0.0, %v523
  %v525 = vpop.f32.mrb[0].mxu0
  %526 = vmatprep.mubr.bf16.mxu0 0
  %527 = vmatmul.mubr.bf16.gmra.mrb[0].mxu0 %v242
  %v528 = vpop.f32.mrb[0].mxu0
  %v529 = vadd.f32 0.0, %v528
  %v530 = vpop.f32.mrb[0].mxu0
  %v531 = vpop.f32.mrb[0].mxu0
  %v532 = vadd.f32 0.0, %v531
  %v533 = vpop.f32.mrb[0].mxu0
  %534 = vmatprep.mubr.bf16.mxu0 0
  %535 = vmatmul.mubr.bf16.gmra.mrb[0].mxu0 %v243
  %v536 = vpop.f32.mrb[0].mxu0
  %v537 = vadd.f32 0.0, %v536
  %v538 = vpop.f32.mrb[0].mxu0
  %v539 = vpop.f32.mrb[0].mxu0
  %v540 = vadd.f32 0.0, %v539
  %v541 = vpop.f32.mrb[0].mxu0
  %542 = vmatprep.mubr.bf16.mxu0 0
  %543 = vmatmul.mubr.bf16.gmra.mrb[0].mxu0 %v244
  %v544 = vpop.f32.mrb[0].mxu0
  %v545 = vadd.f32 0.0, %v544
  %v546 = vpop.f32.mrb[0].mxu0
  %v547 = vpop.f32.mrb[0].mxu0
  %v548 = vadd.f32 0.0, %v547
  %v549 = vpop.f32.mrb[0].mxu0
  %550 = vmatprep.mubr.bf16.mxu0 0
  %551 = vmatmul.mubr.bf16.gmra.mrb[0].mxu0 %v245
  %v552 = vpop.f32.mrb[0].mxu0
  %v553 = vadd.f32 0.0, %v552
  %v554 = vpop.f32.mrb[0].mxu0
  %v555 = vpop.f32.mrb[0].mxu0
  %v556 = vadd.f32 0.0, %v555
  %v557 = vpop.f32.mrb[0].mxu0
  %558 = vmatprep.mubr.bf16.mxu0 0
  %559 = vmatmul.mubr.bf16.gmra.mrb[0].mxu0 %v246
  %v560 = vpop.f32.mrb[0].mxu0
  %v561 = vadd.f32 0.0, %v560
  %v562 = vpop.f32.mrb[0].mxu0
  %v563 = vpop.f32.mrb[0].mxu0
  %v564 = vadd.f32 0.0, %v563
  %v565 = vpop.f32.mrb[0].mxu0
  %566 = vmatprep.mubr.bf16.mxu0 0
  %567 = vmatmul.mubr.bf16.gmra.mrb[0].mxu0 %v247
  %v568 = vpop.f32.mrb[0].mxu0
  %v569 = vadd.f32 0.0, %v568
  %v570 = vpop.f32.mrb[0].mxu0
  %v571 = vpop.f32.mrb[0].mxu0
  %v572 = vadd.f32 0.0, %v571
  %v573 = vpop.f32.mrb[0].mxu0
  %574 = vmatprep.mubr.bf16.mxu0 0
  %575 = vmatmul.mubr.bf16.gmra.mrb[0].mxu0 %v248
  %v576 = vpop.f32.mrb[0].mxu0
  %v577 = vadd.f32 0.0, %v576
  %v578 = vpop.f32.mrb[0].mxu0
  %v579 = vpop.f32.mrb[0].mxu0
  %v580 = vadd.f32 0.0, %v579
  %v581 = vpop.f32.mrb[0].mxu0
  %582 = vmatprep.mubr.bf16.mxu0 0
  %583 = vmatmul.mubr.bf16.gmra.mrb[0].mxu0 %v249
  %v584 = vpop.f32.mrb[0].mxu0
  %v585 = vadd.f32 0.0, %v584
  %v586 = vpop.f32.mrb[0].mxu0
  %v587 = vpop.f32.mrb[0].mxu0
  %v588 = vadd.f32 0.0, %v587
  %v589 = vpop.f32.mrb[0].mxu0
  %590 = vmatprep.mubr.bf16.mxu0 0
  %591 = vmatmul.mubr.bf16.gmra.mrb[0].mxu0 %v250
  %v592 = vpop.f32.mrb[0].mxu0
  %v593 = vadd.f32 0.0, %v592
  %v594 = vpop.f32.mrb[0].mxu0
  %v595 = vpop.f32.mrb[0].mxu0
  %v596 = vadd.f32 0.0, %v595
  %v597 = vpop.f32.mrb[0].mxu0
  %598 = vmatprep.mubr.bf16.mxu0 0
  %599 = vmatmul.mubr.bf16.gmra.mrb[0].mxu0 %v251
  %v600 = vpop.f32.mrb[0].mxu0
  %v601 = vadd.f32 0.0, %v600
  %v602 = vpop.f32.mrb[0].mxu0
  %v603 = vpop.f32.mrb[0].mxu0
  %v604 = vadd.f32 0.0, %v603
  %v605 = vpop.f32.mrb[0].mxu0
  %606 = vmatprep.mubr.bf16.mxu0 0
  %607 = vmatmul.mubr.bf16.gmra.mrb[0].mxu0 %v252
  %v608 = vpop.f32.mrb[0].mxu0
  %v609 = vadd.f32 0.0, %v608
  %v610 = vpop.f32.mrb[0].mxu0
  %v611 = vpop.f32.mrb[0].mxu0
  %v612 = vadd.f32 0.0, %v611
  %v613 = vpop.f32.mrb[0].mxu0
  %614 = vmatprep.mubr.bf16.mxu0 0
  %615 = vmatmul.mubr.bf16.gmra.mrb[0].mxu0 %v253
  %v616 = vpop.f32.mrb[0].mxu0
  %v617 = vadd.f32 0.0, %v616
  %v618 = vpop.f32.mrb[0].mxu0
  %v619 = vpop.f32.mrb[0].mxu0
  %v620 = vadd.f32 0.0, %v619
  %v621 = vpop.f32.mrb[0].mxu0
  %622 = vdwg.mxu0
  %623 = vst [vmem:[%s2] sm:$0xff] %v369
  %624 = vst [vmem:[%s2 + $0x8] sm:$0xff] %v372
  %625 = vst [vmem:[%s2 + $0x10] sm:$0xff] %v377
  %626 = vst [vmem:[%s2 + $0x18] sm:$0xff] %v380
  %627 = vst [vmem:[%s2 + $0x20] sm:$0xff] %v385
  %628 = vst [vmem:[%s2 + $0x28] sm:$0xff] %v388
  %629 = vst [vmem:[%s2 + $0x30] sm:$0xff] %v393
  %630 = vst [vmem:[%s2 + $0x38] sm:$0xff] %v396
  %631 = vst [vmem:[%s2 + $0x40] sm:$0xff] %v401
  %632 = vst [vmem:[%s2 + $0x48] sm:$0xff] %v404
  %633 = vst [vmem:[%s2 + $0x50] sm:$0xff] %v409
  %634 = vst [vmem:[%s2 + $0x58] sm:$0xff] %v412
  %635 = vst [vmem:[%s2 + $0x60] sm:$0xff] %v417
  %636 = vst [vmem:[%s2 + $0x68] sm:$0xff] %v420
  %637 = vst [vmem:[%s2 + $0x70] sm:$0xff] %v425
  %638 = vst [vmem:[%s2 + $0x78] sm:$0xff] %v428
  %639 = vst [vmem:[%s2 + $0x80] sm:$0xff] %v433
  %640 = vst [vmem:[%s2 + $0x88] sm:$0xff] %v436
  %641 = vst [vmem:[%s2 + $0x90] sm:$0xff] %v441
  %642 = vst [vmem:[%s2 + $0x98] sm:$0xff] %v444
  %643 = vst [vmem:[%s2 + $0xa0] sm:$0xff] %v449
  %644 = vst [vmem:[%s2 + $0xa8] sm:$0xff] %v452
  %645 = vst [vmem:[%s2 + $0xb0] sm:$0xff] %v457
  %646 = vst [vmem:[%s2 + $0xb8] sm:$0xff] %v460
  %647 = vst [vmem:[%s2 + $0xc0] sm:$0xff] %v465
  %648 = vst [vmem:[%s2 + $0xc8] sm:$0xff] %v468
  %649 = vst [vmem:[%s2 + $0xd0] sm:$0xff] %v473
  %650 = vst [vmem:[%s2 + $0xd8] sm:$0xff] %v476
  %651 = vst [vmem:[%s2 + $0xe0] sm:$0xff] %v481
  %652 = vst [vmem:[%s2 + $0xe8] sm:$0xff] %v484
  %653 = vst [vmem:[%s2 + $0xf0] sm:$0xff] %v489
  %654 = vst [vmem:[%s2 + $0xf8] sm:$0xff] %v492
  %655 = vst [vmem:[%s2 + $0x100] sm:$0xff] %v497
  %656 = vst [vmem:[%s2 + $0x108] sm:$0xff] %v500
  %657 = vst [vmem:[%s2 + $0x110] sm:$0xff] %v505
  %658 = vst [vmem:[%s2 + $0x118] sm:$0xff] %v508
  %659 = vst [vmem:[%s2 + $0x120] sm:$0xff] %v513
  %660 = vst [vmem:[%s2 + $0x128] sm:$0xff] %v516
  %661 = vst [vmem:[%s2 + $0x130] sm:$0xff] %v521
  %662 = vst [vmem:[%s2 + $0x138] sm:$0xff] %v524
  %663 = vst [vmem:[%s2 + $0x140] sm:$0xff] %v529
  %664 = vst [vmem:[%s2 + $0x148] sm:$0xff] %v532
  %665 = vst [vmem:[%s2 + $0x150] sm:$0xff] %v537
  %666 = vst [vmem:[%s2 + $0x158] sm:$0xff] %v540
  %667 = vst [vmem:[%s2 + $0x160] sm:$0xff] %v545
  %668 = vst [vmem:[%s2 + $0x168] sm:$0xff] %v548
  %669 = vst [vmem:[%s2 + $0x170] sm:$0xff] %v553
  %670 = vst [vmem:[%s2 + $0x178] sm:$0xff] %v556
  %671 = vst [vmem:[%s2 + $0x180] sm:$0xff] %v561
  %672 = vst [vmem:[%s2 + $0x188] sm:$0xff] %v564
  %673 = vst [vmem:[%s2 + $0x190] sm:$0xff] %v569
  %674 = vst [vmem:[%s2 + $0x198] sm:$0xff] %v572
  %675 = vst [vmem:[%s2 + $0x1a0] sm:$0xff] %v577
  %676 = vst [vmem:[%s2 + $0x1a8] sm:$0xff] %v580
  %677 = vst [vmem:[%s2 + $0x1b0] sm:$0xff] %v585
  %678 = vst [vmem:[%s2 + $0x1b8] sm:$0xff] %v588
  %679 = vst [vmem:[%s2 + $0x1c0] sm:$0xff] %v593
  %680 = vst [vmem:[%s2 + $0x1c8] sm:$0xff] %v596
  %681 = vst [vmem:[%s2 + $0x1d0] sm:$0xff] %v601
  %682 = vst [vmem:[%s2 + $0x1d8] sm:$0xff] %v604
  %683 = vst [vmem:[%s2 + $0x1e0] sm:$0xff] %v609
  %684 = vst [vmem:[%s2 + $0x1e8] sm:$0xff] %v612
  %685 = vst [vmem:[%s2 + $0x1f0] sm:$0xff] %v617
  %686 = vst [vmem:[%s2 + $0x1f8] sm:$0xff] %v620
  %v687 = vadd.f32 %v369, %v372
  %v688 = vadd.f32 %v687, %v377
  %v689 = vadd.f32 %v688, %v380
  %v690 = vadd.f32 %v689, %v385
  %v691 = vadd.f32 %v690, %v388
  %v692 = vadd.f32 %v691, %v393
  %v693 = vadd.f32 %v692, %v396
  %v694 = vadd.f32 %v693, %v401
  %v695 = vadd.f32 %v694, %v404
  %v696 = vadd.f32 %v695, %v409
  %v697 = vadd.f32 %v696, %v412
  %v698 = vadd.f32 %v697, %v417
  %v699 = vadd.f32 %v698, %v420
  %v700 = vadd.f32 %v699, %v425
  %v701 = vadd.f32 %v700, %v428
  %v702 = vadd.f32 %v701, %v433
  %v703 = vadd.f32 %v702, %v436
  %v704 = vadd.f32 %v703, %v441
  %v705 = vadd.f32 %v704, %v444
  %v706 = vadd.f32 %v705, %v449
  %v707 = vadd.f32 %v706, %v452
  %v708 = vadd.f32 %v707, %v457
  %v709 = vadd.f32 %v708, %v460
  %v710 = vadd.f32 %v709, %v465
  %v711 = vadd.f32 %v710, %v468
  %v712 = vadd.f32 %v711, %v473
  %v713 = vadd.f32 %v712, %v476
  %v714 = vadd.f32 %v713, %v481
  %v715 = vadd.f32 %v714, %v484
  %v716 = vadd.f32 %v715, %v489
  %v717 = vadd.f32 %v716, %v492
  %v718 = vadd.f32 %v717, %v497
  %v719 = vadd.f32 %v718, %v500
  %v720 = vadd.f32 %v719, %v505
  %v721 = vadd.f32 %v720, %v508
  %v722 = vadd.f32 %v721, %v513
  %v723 = vadd.f32 %v722, %v516
  %v724 = vadd.f32 %v723, %v521
  %v725 = vadd.f32 %v724, %v524
  %v726 = vadd.f32 %v725, %v529
  %v727 = vadd.f32 %v726, %v532
  %v728 = vadd.f32 %v727, %v537
  %v729 = vadd.f32 %v728, %v540
  %v730 = vadd.f32 %v729, %v545
  %v731 = vadd.f32 %v730, %v548
  %v732 = vadd.f32 %v731, %v553
  %v733 = vadd.f32 %v732, %v556
  %v734 = vadd.f32 %v733, %v561
  %v735 = vadd.f32 %v734, %v564
  %v736 = vadd.f32 %v735, %v569
  %v737 = vadd.f32 %v736, %v572
  %v738 = vadd.f32 %v737, %v577
  %v739 = vadd.f32 %v738, %v580
  %v740 = vadd.f32 %v739, %v585
  %v741 = vadd.f32 %v740, %v588
  %v742 = vadd.f32 %v741, %v593
  %v743 = vadd.f32 %v742, %v596
  %v744 = vadd.f32 %v743, %v601
  %v745 = vadd.f32 %v744, %v604
  %v746 = vadd.f32 %v745, %v609
  %v747 = vadd.f32 %v746, %v612
  %v748 = vadd.f32 %v747, %v617
  %v749 = vadd.f32 %v748, %v620
  %v750 = vrot.slane %v749, 4
  %v751 = vadd.f32 %v749, %v750
  %v752 = vrot.slane %v751, 2
  %v753 = vadd.f32 %v751, %v752
  %v754 = vrot.slane %v753, 1
  %v755 = vadd.f32 %v753, %v754
  %v756 = vmul.f32 %v369, %v369
  %v757 = vmul.f32 %v372, %v372
  %v758 = vmul.f32 %v377, %v377
  %v759 = vmul.f32 %v380, %v380
  %v760 = vmul.f32 %v385, %v385
  %v761 = vmul.f32 %v388, %v388
  %v762 = vmul.f32 %v393, %v393
  %v763 = vmul.f32 %v396, %v396
  %v764 = vmul.f32 %v401, %v401
  %v765 = vmul.f32 %v404, %v404
  %v766 = vmul.f32 %v409, %v409
  %v767 = vmul.f32 %v412, %v412
  %v768 = vmul.f32 %v417, %v417
  %v769 = vmul.f32 %v420, %v420
  %v770 = vmul.f32 %v425, %v425
  %v771 = vmul.f32 %v428, %v428
  %v772 = vmul.f32 %v433, %v433
  %v773 = vmul.f32 %v436, %v436
  %v774 = vmul.f32 %v441, %v441
  %v775 = vmul.f32 %v444, %v444
  %v776 = vmul.f32 %v449, %v449
  %v777 = vmul.f32 %v452, %v452
  %v778 = vmul.f32 %v457, %v457
  %v779 = vmul.f32 %v460, %v460
  %v780 = vmul.f32 %v465, %v465
  %v781 = vmul.f32 %v468, %v468
  %v782 = vmul.f32 %v473, %v473
  %v783 = vmul.f32 %v476, %v476
  %v784 = vmul.f32 %v481, %v481
  %v785 = vmul.f32 %v484, %v484
  %v786 = vmul.f32 %v489, %v489
  %v787 = vmul.f32 %v492, %v492
  %v788 = vmul.f32 %v497, %v497
  %v789 = vmul.f32 %v500, %v500
  %v790 = vmul.f32 %v505, %v505
  %v791 = vmul.f32 %v508, %v508
  %v792 = vmul.f32 %v513, %v513
  %v793 = vmul.f32 %v516, %v516
  %v794 = vmul.f32 %v521, %v521
  %v795 = vmul.f32 %v524, %v524
  %v796 = vmul.f32 %v529, %v529
  %v797 = vmul.f32 %v532, %v532
  %v798 = vmul.f32 %v537, %v537
  %v799 = vmul.f32 %v540, %v540
  %v800 = vmul.f32 %v545, %v545
  %v801 = vmul.f32 %v548, %v548
  %v802 = vmul.f32 %v553, %v553
  %v803 = vmul.f32 %v556, %v556
  %v804 = vmul.f32 %v561, %v561
  %v805 = vmul.f32 %v564, %v564
  %v806 = vmul.f32 %v569, %v569
  %v807 = vmul.f32 %v572, %v572
  %v808 = vmul.f32 %v577, %v577
  %v809 = vmul.f32 %v580, %v580
  %v810 = vmul.f32 %v585, %v585
  %v811 = vmul.f32 %v588, %v588
  %v812 = vmul.f32 %v593, %v593
  %v813 = vmul.f32 %v596, %v596
  %v814 = vmul.f32 %v601, %v601
  %v815 = vmul.f32 %v604, %v604
  %v816 = vmul.f32 %v609, %v609
  %v817 = vmul.f32 %v612, %v612
  %v818 = vmul.f32 %v617, %v617
  %v819 = vmul.f32 %v620, %v620
  %v820 = vadd.f32 %v756, %v757
  %v821 = vadd.f32 %v820, %v758
  %v822 = vadd.f32 %v821, %v759
  %v823 = vadd.f32 %v822, %v760
  %v824 = vadd.f32 %v823, %v761
  %v825 = vadd.f32 %v824, %v762
  %v826 = vadd.f32 %v825, %v763
  %v827 = vadd.f32 %v826, %v764
  %v828 = vadd.f32 %v827, %v765
  %v829 = vadd.f32 %v828, %v766
  %v830 = vadd.f32 %v829, %v767
  %v831 = vadd.f32 %v830, %v768
  %v832 = vadd.f32 %v831, %v769
  %v833 = vadd.f32 %v832, %v770
  %v834 = vadd.f32 %v833, %v771
  %v835 = vadd.f32 %v834, %v772
  %v836 = vadd.f32 %v835, %v773
  %v837 = vadd.f32 %v836, %v774
  %v838 = vadd.f32 %v837, %v775
  %v839 = vadd.f32 %v838, %v776
  %v840 = vadd.f32 %v839, %v777
  %v841 = vadd.f32 %v840, %v778
  %v842 = vadd.f32 %v841, %v779
  %v843 = vadd.f32 %v842, %v780
  %v844 = vadd.f32 %v843, %v781
  %v845 = vadd.f32 %v844, %v782
  %v846 = vadd.f32 %v845, %v783
  %v847 = vadd.f32 %v846, %v784
  %v848 = vadd.f32 %v847, %v785
  %v849 = vadd.f32 %v848, %v786
  %v850 = vadd.f32 %v849, %v787
  %v851 = vadd.f32 %v850, %v788
  %v852 = vadd.f32 %v851, %v789
  %v853 = vadd.f32 %v852, %v790
  %v854 = vadd.f32 %v853, %v791
  %v855 = vadd.f32 %v854, %v792
  %v856 = vadd.f32 %v855, %v793
  %v857 = vadd.f32 %v856, %v794
  %v858 = vadd.f32 %v857, %v795
  %v859 = vadd.f32 %v858, %v796
  %v860 = vadd.f32 %v859, %v797
  %v861 = vadd.f32 %v860, %v798
  %v862 = vadd.f32 %v861, %v799
  %v863 = vadd.f32 %v862, %v800
  %v864 = vadd.f32 %v863, %v801
  %v865 = vadd.f32 %v864, %v802
  %v866 = vadd.f32 %v865, %v803
  %v867 = vadd.f32 %v866, %v804
  %v868 = vadd.f32 %v867, %v805
  %v869 = vadd.f32 %v868, %v806
  %v870 = vadd.f32 %v869, %v807
  %v871 = vadd.f32 %v870, %v808
  %v872 = vadd.f32 %v871, %v809
  %v873 = vadd.f32 %v872, %v810
  %v874 = vadd.f32 %v873, %v811
  %v875 = vadd.f32 %v874, %v812
  %v876 = vadd.f32 %v875, %v813
  %v877 = vadd.f32 %v876, %v814
  %v878 = vadd.f32 %v877, %v815
  %v879 = vadd.f32 %v878, %v816
  %v880 = vadd.f32 %v879, %v817
  %v881 = vadd.f32 %v880, %v818
  %v882 = vadd.f32 %v881, %v819
  %v883 = vrot.slane %v882, 4
  %v884 = vadd.f32 %v882, %v883
  %v885 = vrot.slane %v884, 2
  %v886 = vadd.f32 %v884, %v885
  %v887 = vrot.slane %v886, 1
  %v888 = vadd.f32 %v886, %v887
  %vm889 = vcmask 1040384
  %v890 = vsel %vm889, %v755, %v888
  %891 = vst [vmem:[%s3] sm:$0x3] %v890
  // Predicated region
  $region10: #{pose_encoder_forward.19} parent=0 // pred_check
    _
  $region11: #{pose_encoder_forward.19} parent=0 // pred_check_branch
    %893 = sbr.rel (0) target = $region13
  $region12: #{pose_encoder_forward.19} parent=0 // pred_region
    _
  $region13: #{pose_encoder_forward.19} parent=0 // pred_fallthru
    _
  // Predicated region
  $region14: #{pose_encoder_forward.19} parent=0 // pred_check
    _
  $region15: #{pose_encoder_forward.19} parent=0 // pred_check_branch
    %895 = sbr.rel (0) target = $region17
  $region16: #{pose_encoder_forward.19} parent=0 // pred_region
    _
  $region17: #{pose_encoder_forward.19} parent=0 // pred_fallthru
    _
  // Predicated region
  $region18: #{pose_encoder_forward.19} parent=0 // pred_check
    _
  $region19: #{pose_encoder_forward.19} parent=0 // pred_check_branch
    %897 = sbr.rel (0) target = $region21
  $region20: #{pose_encoder_forward.19} parent=0 // pred_region
    _
  $region21: #{pose_encoder_forward.19} parent=0 // pred_fallthru
    _
  // Predicated region
  $region22: #{pose_encoder_forward.19} parent=0 // pred_check
    _
  $region23: #{pose_encoder_forward.19} parent=0 // pred_check_branch
    %899 = sbr.rel (0) target = $region25
  $region24: #{pose_encoder_forward.19} parent=0 // pred_region
    _
  $region25: #{pose_encoder_forward.19} parent=0 // pred_fallthru
    _

// kernel: pose_encoder_forward.21
$region0: #{pose_encoder_forward.21}
  #allocation0 [shape = 'u32[]', space=smem, size = 0x4, offset = 0x4, fixed_abs, tag = 'smem constant byte address 0x4 - core index']
  #allocation1 [shape = 'u32[144,128]{1,0:T(1,128)}', space=vmem, size = 0x12000, scoped, tag = 'internal scratch']
  %s0 = inlined_call_operand.vmem [shape: bf16[128,128], index: 0, kind: input, shape index: {}]
  %s1 = inlined_call_operand.vmem [shape: bf16[128,128], index: 1, kind: input, shape index: {}]
  %s2 = inlined_call_operand.vmem [shape: f32[128,128], index: 2, kind: output, shape index: {0}]
  %s3 = inlined_call_operand.vmem [shape: f32[1,2,128], index: 3, kind: output, shape index: {1}]
  %4 = xla_tuple %s2, %s3
  %s5 = sld [smem:[#allocation0]]
  $region26: #{pose_encoder_forward.21} parent=0
    _
  %s7 = ssub.s32 1, %s5
  %s8 = scalar_select 0, %s7, %s5
  // Predicated region
  $region2: #{pose_encoder_forward.21} parent=0 // pred_check
    _
  $region3: #{pose_encoder_forward.21} parent=0 // pred_check_branch
    %10 = sbr.rel (0) target = $region5
  $region4: #{pose_encoder_forward.21} parent=0 // pred_region
    _
  $region5: #{pose_encoder_forward.21} parent=0 // pred_fallthru
    _
  // Predicated region
  $region6: #{pose_encoder_forward.21} parent=0 // pred_check
    _
  $region7: #{pose_encoder_forward.21} parent=0 // pred_check_branch
    %12 = sbr.rel (0) target = $region9
  $region8: #{pose_encoder_forward.21} parent=0 // pred_region
    _
  $region9: #{pose_encoder_forward.21} parent=0 // pred_fallthru
    _
  %v14 = vld [vmem:[%s0] sm:$0xf]
  %v15 = vld [vmem:[%s0 + $0x4] sm:$0xf]
  %v16 = vld [vmem:[%s0 + $0x8] sm:$0xf]
  %v17 = vld [vmem:[%s0 + $0xc] sm:$0xf]
  %v18 = vld [vmem:[%s0 + $0x10] sm:$0xf]
  %v19 = vld [vmem:[%s0 + $0x14] sm:$0xf]
  %v20 = vld [vmem:[%s0 + $0x18] sm:$0xf]
  %v21 = vld [vmem:[%s0 + $0x1c] sm:$0xf]
  %v22 = vld [vmem:[%s0 + $0x20] sm:$0xf]
  %v23 = vld [vmem:[%s0 + $0x24] sm:$0xf]
  %v24 = vld [vmem:[%s0 + $0x28] sm:$0xf]
  %v25 = vld [vmem:[%s0 + $0x2c] sm:$0xf]
  %v26 = vld [vmem:[%s0 + $0x30] sm:$0xf]
  %v27 = vld [vmem:[%s0 + $0x34] sm:$0xf]
  %v28 = vld [vmem:[%s0 + $0x38] sm:$0xf]
  %v29 = vld [vmem:[%s0 + $0x3c] sm:$0xf]
  %v30 = vld [vmem:[%s1] sm:$0xf]
  %v31 = vld [vmem:[%s1 + $0x4] sm:$0xf]
  %v32 = vld [vmem:[%s1 + $0x8] sm:$0xf]
  %v33 = vld [vmem:[%s1 + $0xc] sm:$0xf]
  %v34 = vld [vmem:[%s1 + $0x10] sm:$0xf]
  %v35 = vld [vmem:[%s1 + $0x14] sm:$0xf]
  %v36 = vld [vmem:[%s1 + $0x18] sm:$0xf]
  %v37 = vld [vmem:[%s1 + $0x1c] sm:$0xf]
  %v38 = vld [vmem:[%s1 + $0x20] sm:$0xf]
  %v39 = vld [vmem:[%s1 + $0x24] sm:$0xf]
  %v40 = vld [vmem:[%s1 + $0x28] sm:$0xf]
  %v41 = vld [vmem:[%s1 + $0x2c] sm:$0xf]
  %v42 = vld [vmem:[%s1 + $0x30] sm:$0xf]
  %v43 = vld [vmem:[%s1 + $0x34] sm:$0xf]
  %v44 = vld [vmem:[%s1 + $0x38] sm:$0xf]
  %v45 = vld [vmem:[%s1 + $0x3c] sm:$0xf]
  %v62 = vunpack.c.l.b16 %v14
  %v63 = vunpack.c.l.b16 %v15
  %v64 = vunpack.c.l.b16 %v16
  %v65 = vunpack.c.l.b16 %v17
  %v66 = vunpack.c.l.b16 %v18
  %v67 = vunpack.c.l.b16 %v19
  %v68 = vunpack.c.l.b16 %v20
  %v69 = vunpack.c.l.b16 %v21
  %v70 = vunpack.c.l.b16 %v22
  %v71 = vunpack.c.l.b16 %v23
  %v72 = vunpack.c.l.b16 %v24
  %v73 = vunpack.c.l.b16 %v25
  %v74 = vunpack.c.l.b16 %v26
  %v75 = vunpack.c.l.b16 %v27
  %v76 = vunpack.c.l.b16 %v28
  %v77 = vunpack.c.l.b16 %v29
  %v78 = vpack.c.b16 %v63, %v62
  %v79 = vpack.c.b16 %v65, %v64
  %v80 = vpack.c.b16 %v67, %v66
  %v81 = vpack.c.b16 %v69, %v68
  %v82 = vpack.c.b16 %v71, %v70
  %v83 = vpack.c.b16 %v73, %v72
  %v84 = vpack.c.b16 %v75, %v74
  %v85 = vpack.c.b16 %v77, %v76
  %v110 = vunpack.c.l.b16 %v30
  %v111 = vunpack.c.l.b16 %v31
  %v112 = vunpack.c.l.b16 %v32
  %v113 = vunpack.c.l.b16 %v33
  %v114 = vunpack.c.l.b16 %v34
  %v115 = vunpack.c.l.b16 %v35
  %v116 = vunpack.c.l.b16 %v36
  %v117 = vunpack.c.l.b16 %v37
  %v118 = vunpack.c.l.b16 %v38
  %v119 = vunpack.c.l.b16 %v39
  %v120 = vunpack.c.l.b16 %v40
  %v121 = vunpack.c.l.b16 %v41
  %v122 = vunpack.c.l.b16 %v42
  %v123 = vunpack.c.l.b16 %v43
  %v124 = vunpack.c.l.b16 %v44
  %v125 = vunpack.c.l.b16 %v45
  %v126 = vpack.c.b16 %v111, %v110
  %v127 = vpack.c.b16 %v113, %v112
  %v128 = vpack.c.b16 %v115, %v114
  %v129 = vpack.c.b16 %v117, %v116
  %v130 = vpack.c.b16 %v119, %v118
  %v131 = vpack.c.b16 %v121, %v120
  %v132 = vpack.c.b16 %v123, %v122
  %v133 = vpack.c.b16 %v125, %v124
  %142 = vmatprep.subr.bf16.mxu0 0
  %143 = vmatpush1.bf16.msra.mxu0 %v126
  %144 = vmatprep.subr.bf16.mxu0 0
  %145 = vmatpush1.bf16.msra.mxu0 %v127
  %146 = vmatprep.subr.bf16.mxu0 0
  %147 = vmatpush1.bf16.msra.mxu0 %v128
  %148 = vmatprep.subr.bf16.mxu0 0
  %149 = vmatpush1.bf16.msra.mxu0 %v129
  %150 = vmatprep.subr.bf16.mxu0 0
  %151 = vmatpush1.bf16.msra.mxu0 %v130
  %152 = vmatprep.subr.bf16.mxu0 0
  %153 = vmatpush1.bf16.msra.mxu0 %v131
  %154 = vmatprep.subr.bf16.mxu0 0
  %155 = vmatpush1.bf16.msra.mxu0 %v132
  %156 = vmatprep.subr.bf16.mxu0 0
  %157 = vmatpush1.bf16.msra.mxu0 %v133
  %158 = vmatprep.subr.bf16.mxu0 0
  %159 = vmatpush1.bf16.msra.mxu0 0
  %160 = vmatprep.subr.bf16.mxu0 0
  %161 = vmatpush1.bf16.msra.mxu0 0
  %162 = vmatprep.subr.bf16.mxu0 0
  %163 = vmatpush1.bf16.msra.mxu0 0
  %164 = vmatprep.subr.bf16.mxu0 0
  %165 = vmatpush1.bf16.msra.mxu0 0
  %166 = vmatprep.subr.bf16.mxu0 0
  %167 = vmatpush1.bf16.msra.mxu0 0
  %168 = vmatprep.subr.bf16.mxu0 0
  %169 = vmatpush1.bf16.msra.mxu0 0
  %170 = vmatprep.subr.bf16.mxu0 0
  %171 = vmatpush1.bf16.msra.mxu0 0
  %172 = vmatprep.subr.bf16.mxu0 0
  %173 = vmatpush1.bf16.msra.mxu0 0
  %174 = vmatprep.mubr.bf16.mxu0 0
  %175 = vmatmul.mubr.bf16.gmra.mrb[0].mxu0 %v78
  %v176 = vpop.f32.mrb[0].mxu0
  %v177 = vadd.f32 0.0, %v176
  %v178 = vpop.f32.mrb[0].mxu0
  %v179 = vpop.f32.mrb[0].mxu0
  %v180 = vadd.f32 0.0, %v179
  %v181 = vpop.f32.mrb[0].mxu0
  %182 = vmatprep.mubr.bf16.mxu0 0
  %183 = vmatmul.mubr.bf16.gmra.mrb[0].mxu0 %v79
  %v184 = vpop.f32.mrb[0].mxu0
  %v185 = vadd.f32 0.0, %v184
  %v186 = vpop.f32.mrb[0].mxu0
  %v187 = vpop.f32.mrb[0].mxu0
  %v188 = vadd.f32 0.0, %v187
  %v189 = vpop.f32.mrb[0].mxu0
  %190 = vmatprep.mubr.bf16.mxu0 0
  %191 = vmatmul.mubr.bf16.gmra.mrb[0].mxu0 %v80
  %v192 = vpop.f32.mrb[0].mxu0
  %v193 = vadd.f32 0.0, %v192
  %v194 = vpop.f32.mrb[0].mxu0
  %v195 = vpop.f32.mrb[0].mxu0
  %v196 = vadd.f32 0.0, %v195
  %v197 = vpop.f32.mrb[0].mxu0
  %198 = vmatprep.mubr.bf16.mxu0 0
  %199 = vmatmul.mubr.bf16.gmra.mrb[0].mxu0 %v81
  %v200 = vpop.f32.mrb[0].mxu0
  %v201 = vadd.f32 0.0, %v200
  %v202 = vpop.f32.mrb[0].mxu0
  %v203 = vpop.f32.mrb[0].mxu0
  %v204 = vadd.f32 0.0, %v203
  %v205 = vpop.f32.mrb[0].mxu0
  %206 = vmatprep.mubr.bf16.mxu0 0
  %207 = vmatmul.mubr.bf16.gmra.mrb[0].mxu0 %v82
  %v208 = vpop.f32.mrb[0].mxu0
  %v209 = vadd.f32 0.0, %v208
  %v210 = vpop.f32.mrb[0].mxu0
  %v211 = vpop.f32.mrb[0].mxu0
  %v212 = vadd.f32 0.0, %v211
  %v213 = vpop.f32.mrb[0].mxu0
  %214 = vmatprep.mubr.bf16.mxu0 0
  %215 = vmatmul.mubr.bf16.gmra.mrb[0].mxu0 %v83
  %v216 = vpop.f32.mrb[0].mxu0
  %v217 = vadd.f32 0.0, %v216
  %v218 = vpop.f32.mrb[0].mxu0
  %v219 = vpop.f32.mrb[0].mxu0
  %v220 = vadd.f32 0.0, %v219
  %v221 = vpop.f32.mrb[0].mxu0
  %222 = vmatprep.mubr.bf16.mxu0 0
  %223 = vmatmul.mubr.bf16.gmra.mrb[0].mxu0 %v84
  %v224 = vpop.f32.mrb[0].mxu0
  %v225 = vadd.f32 0.0, %v224
  %v226 = vpop.f32.mrb[0].mxu0
  %v227 = vpop.f32.mrb[0].mxu0
  %v228 = vadd.f32 0.0, %v227
  %v229 = vpop.f32.mrb[0].mxu0
  %230 = vmatprep.mubr.bf16.mxu0 0
  %231 = vmatmul.mubr.bf16.gmra.mrb[0].mxu0 %v85
  %v232 = vpop.f32.mrb[0].mxu0
  %v233 = vadd.f32 0.0, %v232
  %v234 = vpop.f32.mrb[0].mxu0
  %v235 = vpop.f32.mrb[0].mxu0
  %v236 = vadd.f32 0.0, %v235
  %v237 = vpop.f32.mrb[0].mxu0
  %238 = vdwg.mxu0
  %239 = vst [vmem:[%s2] sm:$0xff] %v177
  %240 = vst [vmem:[%s2 + $0x8] sm:$0xff] %v180
  %241 = vst [vmem:[%s2 + $0x10] sm:$0xff] %v185
  %242 = vst [vmem:[%s2 + $0x18] sm:$0xff] %v188
  %243 = vst [vmem:[%s2 + $0x20] sm:$0xff] %v193
  %244 = vst [vmem:[%s2 + $0x28] sm:$0xff] %v196
  %245 = vst [vmem:[%s2 + $0x30] sm:$0xff] %v201
  %246 = vst [vmem:[%s2 + $0x38] sm:$0xff] %v204
  %247 = vst [vmem:[%s2 + $0x40] sm:$0xff] %v209
  %248 = vst [vmem:[%s2 + $0x48] sm:$0xff] %v212
  %249 = vst [vmem:[%s2 + $0x50] sm:$0xff] %v217
  %250 = vst [vmem:[%s2 + $0x58] sm:$0xff] %v220
  %251 = vst [vmem:[%s2 + $0x60] sm:$0xff] %v225
  %252 = vst [vmem:[%s2 + $0x68] sm:$0xff] %v228
  %253 = vst [vmem:[%s2 + $0x70] sm:$0xff] %v233
  %254 = vst [vmem:[%s2 + $0x78] sm:$0xff] %v236
  %v255 = vadd.f32 %v177, %v180
  %v256 = vadd.f32 %v255, %v185
  %v257 = vadd.f32 %v256, %v188
  %v258 = vadd.f32 %v257, %v193
  %v259 = vadd.f32 %v258, %v196
  %v260 = vadd.f32 %v259, %v201
  %v261 = vadd.f32 %v260, %v204
  %v262 = vadd.f32 %v261, %v209
  %v263 = vadd.f32 %v262, %v212
  %v264 = vadd.f32 %v263, %v217
  %v265 = vadd.f32 %v264, %v220
  %v266 = vadd.f32 %v265, %v225
  %v267 = vadd.f32 %v266, %v228
  %v268 = vadd.f32 %v267, %v233
  %v269 = vadd.f32 %v268, %v236
  %v270 = vrot.slane %v269, 4
  %v271 = vadd.f32 %v269, %v270
  %v272 = vrot.slane %v271, 2
  %v273 = vadd.f32 %v271, %v272
  %v274 = vrot.slane %v273, 1
  %v275 = vadd.f32 %v273, %v274
  %v276 = vmul.f32 %v177, %v177
  %v277 = vmul.f32 %v180, %v180
  %v278 = vmul.f32 %v185, %v185
  %v279 = vmul.f32 %v188, %v188
  %v280 = vmul.f32 %v193, %v193
  %v281 = vmul.f32 %v196, %v196
  %v282 = vmul.f32 %v201, %v201
  %v283 = vmul.f32 %v204, %v204
  %v284 = vmul.f32 %v209, %v209
  %v285 = vmul.f32 %v212, %v212
  %v286 = vmul.f32 %v217, %v217
  %v287 = vmul.f32 %v220, %v220
  %v288 = vmul.f32 %v225, %v225
  %v289 = vmul.f32 %v228, %v228
  %v290 = vmul.f32 %v233, %v233
  %v291 = vmul.f32 %v236, %v236
  %v292 = vadd.f32 %v276, %v277
  %v293 = vadd.f32 %v292, %v278
  %v294 = vadd.f32 %v293, %v279
  %v295 = vadd.f32 %v294, %v280
  %v296 = vadd.f32 %v295, %v281
  %v297 = vadd.f32 %v296, %v282
  %v298 = vadd.f32 %v297, %v283
  %v299 = vadd.f32 %v298, %v284
  %v300 = vadd.f32 %v299, %v285
  %v301 = vadd.f32 %v300, %v286
  %v302 = vadd.f32 %v301, %v287
  %v303 = vadd.f32 %v302, %v288
  %v304 = vadd.f32 %v303, %v289
  %v305 = vadd.f32 %v304, %v290
  %v306 = vadd.f32 %v305, %v291
  %v307 = vrot.slane %v306, 4
  %v308 = vadd.f32 %v306, %v307
  %v309 = vrot.slane %v308, 2
  %v310 = vadd.f32 %v308, %v309
  %v311 = vrot.slane %v310, 1
  %v312 = vadd.f32 %v310, %v311
  %vm313 = vcmask 1040384
  %v314 = vsel %vm313, %v275, %v312
  %315 = vst [vmem:[%s3] sm:$0x3] %v314
  // Predicated region
  $region10: #{pose_encoder_forward.21} parent=0 // pred_check
    _
  $region11: #{pose_encoder_forward.21} parent=0 // pred_check_branch
    %317 = sbr.rel (0) target = $region13
  $region12: #{pose_encoder_forward.21} parent=0 // pred_region
    _
  $region13: #{pose_encoder_forward.21} parent=0 // pred_fallthru
    _
  // Predicated region
  $region14: #{pose_encoder_forward.21} parent=0 // pred_check
    _
  $region15: #{pose_encoder_forward.21} parent=0 // pred_check_branch
    %319 = sbr.rel (0) target = $region17
  $region16: #{pose_encoder_forward.21} parent=0 // pred_region
    _
  $region17: #{pose_encoder_forward.21} parent=0 // pred_fallthru
    _
  // Predicated region
  $region18: #{pose_encoder_forward.21} parent=0 // pred_check
    _
  $region19: #{pose_encoder_forward.21} parent=0 // pred_check_branch
    %321 = sbr.rel (0) target = $region21
  $region20: #{pose_encoder_forward.21} parent=0 // pred_region
    _
  $region21: #{pose_encoder_forward.21} parent=0 // pred_fallthru
    _
  // Predicated region
  $region22: #{pose_encoder_forward.21} parent=0 // pred_check
    _
  $region23: #{pose_encoder_forward.21} parent=0 // pred_check_branch
    %323 = sbr.rel (0) target = $region25
  $region24: #{pose_encoder_forward.21} parent=0 // pred_region
    _
  $region25: #{pose_encoder_forward.21} parent=0 // pred_fallthru
    _

// kernel: pose_encoder_forward.22
$region0: #{pose_encoder_forward.22}
  #allocation0 [shape = 'u32[]', space=smem, size = 0x4, offset = 0x4, fixed_abs, tag = 'smem constant byte address 0x4 - core index']
  #allocation1 [shape = 'u32[144,128]{1,0:T(1,128)}', space=vmem, size = 0x12000, scoped, tag = 'internal scratch']
  %s0 = inlined_call_operand.vmem [shape: f32[128,128], index: 0, kind: input, shape index: {}]
  %s1 = inlined_call_operand.vmem [shape: f32[1,128], index: 1, kind: input, shape index: {}]
  %s2 = inlined_call_operand.vmem [shape: f32[1,128], index: 2, kind: input, shape index: {}]
  %s3 = inlined_call_operand.vmem [shape: bf16[128,128], index: 3, kind: output, shape index: {}]
  %s4 = sld [smem:[#allocation0]]
  $region22: #{pose_encoder_forward.22} parent=0
    _
  %s6 = ssub.s32 1, %s4
  %s7 = scalar_select 0, %s6, %s4
  // Predicated region
  $region2: #{pose_encoder_forward.22} parent=0 // pred_check
    _
  $region3: #{pose_encoder_forward.22} parent=0 // pred_check_branch
    %9 = sbr.rel (0) target = $region5
  $region4: #{pose_encoder_forward.22} parent=0 // pred_region
    _
  $region5: #{pose_encoder_forward.22} parent=0 // pred_fallthru
    _
  // Predicated region
  $region6: #{pose_encoder_forward.22} parent=0 // pred_check
    _
  $region7: #{pose_encoder_forward.22} parent=0 // pred_check_branch
    %11 = sbr.rel (0) target = $region9
  $region8: #{pose_encoder_forward.22} parent=0 // pred_region
    _
  $region9: #{pose_encoder_forward.22} parent=0 // pred_fallthru
    _
  // Predicated region
  $region10: #{pose_encoder_forward.22} parent=0 // pred_check
    _
  $region11: #{pose_encoder_forward.22} parent=0 // pred_check_branch
    %13 = sbr.rel (0) target = $region13
  $region12: #{pose_encoder_forward.22} parent=0 // pred_region
    _
  $region13: #{pose_encoder_forward.22} parent=0 // pred_fallthru
    _
  %v14 = vld [vmem:[%s0] sm:$0xff]
  %v15 = vld [vmem:[%s0 + $0x8] sm:$0xff]
  %v16 = vld [vmem:[%s0 + $0x10] sm:$0xff]
  %v17 = vld [vmem:[%s0 + $0x18] sm:$0xff]
  %v18 = vld [vmem:[%s0 + $0x20] sm:$0xff]
  %v19 = vld [vmem:[%s0 + $0x28] sm:$0xff]
  %v20 = vld [vmem:[%s0 + $0x30] sm:$0xff]
  %v21 = vld [vmem:[%s0 + $0x38] sm:$0xff]
  %v22 = vld [vmem:[%s0 + $0x40] sm:$0xff]
  %v23 = vld [vmem:[%s0 + $0x48] sm:$0xff]
  %v24 = vld [vmem:[%s0 + $0x50] sm:$0xff]
  %v25 = vld [vmem:[%s0 + $0x58] sm:$0xff]
  %v26 = vld [vmem:[%s0 + $0x60] sm:$0xff]
  %v27 = vld [vmem:[%s0 + $0x68] sm:$0xff]
  %v28 = vld [vmem:[%s0 + $0x70] sm:$0xff]
  %v29 = vld [vmem:[%s0 + $0x78] sm:$0xff]
  %v30 = vld [vmem:[%s1] sm:$0x1]
  %v32 = vlaneseq
  %v33 = vshrl.u32 %v32, 7
  %v34 = vsub.s32 0, %v33
  %v35 = vrot.slane %v30, %v34
  %v37 = vmul.f32 %v14, %v35
  %v38 = vmul.f32 %v15, %v35
  %v39 = vmul.f32 %v16, %v35
  %v40 = vmul.f32 %v17, %v35
  %v41 = vmul.f32 %v18, %v35
  %v42 = vmul.f32 %v19, %v35
  %v43 = vmul.f32 %v20, %v35
  %v44 = vmul.f32 %v21, %v35
  %v45 = vmul.f32 %v22, %v35
  %v46 = vmul.f32 %v23, %v35
  %v47 = vmul.f32 %v24, %v35
  %v48 = vmul.f32 %v25, %v35
  %v49 = vmul.f32 %v26, %v35
  %v50 = vmul.f32 %v27, %v35
  %v51 = vmul.f32 %v28, %v35
  %v52 = vmul.f32 %v29, %v35
  %v53 = vld [vmem:[%s2] sm:$0x1]
  %v55 = vlaneseq
  %v56 = vshrl.u32 %v55, 7
  %v57 = vsub.s32 0, %v56
  %v58 = vrot.slane %v53, %v57
  %v60 = vadd.f32 %v37, %v58
  %v61 = vadd.f32 %v38, %v58
  %v62 = vadd.f32 %v39, %v58
  %v63 = vadd.f32 %v40, %v58
  %v64 = vadd.f32 %v41, %v58
  %v65 = vadd.f32 %v42, %v58
  %v66 = vadd.f32 %v43, %v58
  %v67 = vadd.f32 %v44, %v58
  %v68 = vadd.f32 %v45, %v58
  %v69 = vadd.f32 %v46, %v58
  %v70 = vadd.f32 %v47, %v58
  %v71 = vadd.f32 %v48, %v58
  %v72 = vadd.f32 %v49, %v58
  %v73 = vadd.f32 %v50, %v58
  %v74 = vadd.f32 %v51, %v58
  %v75 = vadd.f32 %v52, %v58
  %v76 = vmax.f32 %v60, 0.0
  %v77 = vmax.f32 %v61, 0.0
  %v78 = vmax.f32 %v62, 0.0
  %v79 = vmax.f32 %v63, 0.0
  %v80 = vmax.f32 %v64, 0.0
  %v81 = vmax.f32 %v65, 0.0
  %v82 = vmax.f32 %v66, 0.0
  %v83 = vmax.f32 %v67, 0.0
  %v84 = vmax.f32 %v68, 0.0
  %v85 = vmax.f32 %v69, 0.0
  %v86 = vmax.f32 %v70, 0.0
  %v87 = vmax.f32 %v71, 0.0
  %v88 = vmax.f32 %v72, 0.0
  %v89 = vmax.f32 %v73, 0.0
  %v90 = vmax.f32 %v74, 0.0
  %v91 = vmax.f32 %v75, 0.0
  %v92 = vpack.c.bf16 %v77, %v76
  %v93 = vpack.c.bf16 %v79, %v78
  %v94 = vpack.c.bf16 %v81, %v80
  %v95 = vpack.c.bf16 %v83, %v82
  %v96 = vpack.c.bf16 %v85, %v84
  %v97 = vpack.c.bf16 %v87, %v86
  %v98 = vpack.c.bf16 %v89, %v88
  %v99 = vpack.c.bf16 %v91, %v90
  %v108 = vunpack.c.l.b16 %v92
  %v109 = vunpack.c.h.b16 %v92
  %v110 = vunpack.c.l.b16 %v93
  %v111 = vunpack.c.h.b16 %v93
  %v112 = vunpack.c.l.b16 %v94
  %v113 = vunpack.c.h.b16 %v94
  %v114 = vunpack.c.l.b16 %v95
  %v115 = vunpack.c.h.b16 %v95
  %v116 = vunpack.c.l.b16 %v96
  %v117 = vunpack.c.h.b16 %v96
  %v118 = vunpack.c.l.b16 %v97
  %v119 = vunpack.c.h.b16 %v97
  %v120 = vunpack.c.l.b16 %v98
  %v121 = vunpack.c.h.b16 %v98
  %v122 = vunpack.c.l.b16 %v99
  %v123 = vunpack.c.h.b16 %v99
  %v124 = vpack.c.b16 %v108, %v108
  %v125 = vpack.c.b16 %v109, %v109
  %v126 = vpack.c.b16 %v110, %v110
  %v127 = vpack.c.b16 %v111, %v111
  %v128 = vpack.c.b16 %v112, %v112
  %v129 = vpack.c.b16 %v113, %v113
  %v130 = vpack.c.b16 %v114, %v114
  %v131 = vpack.c.b16 %v115, %v115
  %v132 = vpack.c.b16 %v116, %v116
  %v133 = vpack.c.b16 %v117, %v117
  %v134 = vpack.c.b16 %v118, %v118
  %v135 = vpack.c.b16 %v119, %v119
  %v136 = vpack.c.b16 %v120, %v120
  %v137 = vpack.c.b16 %v121, %v121
  %v138 = vpack.c.b16 %v122, %v122
  %v139 = vpack.c.b16 %v123, %v123
  %156 = vst [vmem:[%s3] sm:$0xf] %v124
  %157 = vst [vmem:[%s3 + $0x4] sm:$0xf] %v125
  %158 = vst [vmem:[%s3 + $0x8] sm:$0xf] %v126
  %159 = vst [vmem:[%s3 + $0xc] sm:$0xf] %v127
  %160 = vst [vmem:[%s3 + $0x10] sm:$0xf] %v128
  %161 = vst [vmem:[%s3 + $0x14] sm:$0xf] %v129
  %162 = vst [vmem:[%s3 + $0x18] sm:$0xf] %v130
  %163 = vst [vmem:[%s3 + $0x1c] sm:$0xf] %v131
  %164 = vst [vmem:[%s3 + $0x20] sm:$0xf] %v132
  %165 = vst [vmem:[%s3 + $0x24] sm:$0xf] %v133
  %166 = vst [vmem:[%s3 + $0x28] sm:$0xf] %v134
  %167 = vst [vmem:[%s3 + $0x2c] sm:$0xf] %v135
  %168 = vst [vmem:[%s3 + $0x30] sm:$0xf] %v136
  %169 = vst [vmem:[%s3 + $0x34] sm:$0xf] %v137
  %170 = vst [vmem:[%s3 + $0x38] sm:$0xf] %v138
  %171 = vst [vmem:[%s3 + $0x3c] sm:$0xf] %v139
  // Predicated region
  $region14: #{pose_encoder_forward.22} parent=0 // pred_check
    _
  $region15: #{pose_encoder_forward.22} parent=0 // pred_check_branch
    %173 = sbr.rel (0) target = $region17
  $region16: #{pose_encoder_forward.22} parent=0 // pred_region
    _
  $region17: #{pose_encoder_forward.22} parent=0 // pred_fallthru
    _
  // Predicated region
  $region18: #{pose_encoder_forward.22} parent=0 // pred_check
    _
  $region19: #{pose_encoder_forward.22} parent=0 // pred_check_branch
    %175 = sbr.rel (0) target = $region21
  $region20: #{pose_encoder_forward.22} parent=0 // pred_region
    _
  $region21: #{pose_encoder_forward.22} parent=0 // pred_fallthru
    _

// kernel: pose_encoder_forward.25
$region0: #{pose_encoder_forward.25}
  #allocation0 [shape = 'u32[]', space=smem, size = 0x4, offset = 0x4, fixed_abs, tag = 'smem constant byte address 0x4 - core index']
  #allocation1 [shape = 'u32[144,128]{1,0:T(1,128)}', space=vmem, size = 0x12000, scoped, tag = 'internal scratch']
  %s0 = inlined_call_operand.vmem [shape: bf16[32,128], index: 0, kind: input, shape index: {}]
  %s1 = inlined_call_operand.vmem [shape: bf16[128,128], index: 1, kind: input, shape index: {}]
  %s2 = inlined_call_operand.vmem [shape: f32[32,128], index: 2, kind: output, shape index: {0}]
  %s3 = inlined_call_operand.vmem [shape: f32[1,2,128], index: 3, kind: output, shape index: {1}]
  %4 = xla_tuple %s2, %s3
  %s5 = sld [smem:[#allocation0]]
  $region26: #{pose_encoder_forward.25} parent=0
    _
  %s7 = ssub.s32 1, %s5
  %s8 = scalar_select 0, %s7, %s5
  // Predicated region
  $region2: #{pose_encoder_forward.25} parent=0 // pred_check
    _
  $region3: #{pose_encoder_forward.25} parent=0 // pred_check_branch
    %10 = sbr.rel (0) target = $region5
  $region4: #{pose_encoder_forward.25} parent=0 // pred_region
    _
  $region5: #{pose_encoder_forward.25} parent=0 // pred_fallthru
    _
  // Predicated region
  $region6: #{pose_encoder_forward.25} parent=0 // pred_check
    _
  $region7: #{pose_encoder_forward.25} parent=0 // pred_check_branch
    %12 = sbr.rel (0) target = $region9
  $region8: #{pose_encoder_forward.25} parent=0 // pred_region
    _
  $region9: #{pose_encoder_forward.25} parent=0 // pred_fallthru
    _
  %v14 = vld [vmem:[%s0] sm:$0xf]
  %v15 = vld [vmem:[%s0 + $0x4] sm:$0xf]
  %v16 = vld [vmem:[%s0 + $0x8] sm:$0xf]
  %v17 = vld [vmem:[%s0 + $0xc] sm:$0xf]
  %v18 = vld [vmem:[%s1] sm:$0xf]
  %v19 = vld [vmem:[%s1 + $0x4] sm:$0xf]
  %v20 = vld [vmem:[%s1 + $0x8] sm:$0xf]
  %v21 = vld [vmem:[%s1 + $0xc] sm:$0xf]
  %v22 = vld [vmem:[%s1 + $0x10] sm:$0xf]
  %v23 = vld [vmem:[%s1 + $0x14] sm:$0xf]
  %v24 = vld [vmem:[%s1 + $0x18] sm:$0xf]
  %v25 = vld [vmem:[%s1 + $0x1c] sm:$0xf]
  %v26 = vld [vmem:[%s1 + $0x20] sm:$0xf]
  %v27 = vld [vmem:[%s1 + $0x24] sm:$0xf]
  %v28 = vld [vmem:[%s1 + $0x28] sm:$0xf]
  %v29 = vld [vmem:[%s1 + $0x2c] sm:$0xf]
  %v30 = vld [vmem:[%s1 + $0x30] sm:$0xf]
  %v31 = vld [vmem:[%s1 + $0x34] sm:$0xf]
  %v32 = vld [vmem:[%s1 + $0x38] sm:$0xf]
  %v33 = vld [vmem:[%s1 + $0x3c] sm:$0xf]
  %v38 = vunpack.c.l.b16 %v14
  %v39 = vunpack.c.l.b16 %v15
  %v40 = vunpack.c.l.b16 %v16
  %v41 = vunpack.c.l.b16 %v17
  %v42 = vpack.c.b16 %v39, %v38
  %v43 = vpack.c.b16 %v41, %v40
  %v62 = vunpack.c.l.b16 %v18
  %v63 = vunpack.c.l.b16 %v19
  %v64 = vunpack.c.l.b16 %v20
  %v65 = vunpack.c.l.b16 %v21
  %v66 = vunpack.c.l.b16 %v22
  %v67 = vunpack.c.l.b16 %v23
  %v68 = vunpack.c.l.b16 %v24
  %v69 = vunpack.c.l.b16 %v25
  %v70 = vunpack.c.l.b16 %v26
  %v71 = vunpack.c.l.b16 %v27
  %v72 = vunpack.c.l.b16 %v28
  %v73 = vunpack.c.l.b16 %v29
  %v74 = vunpack.c.l.b16 %v30
  %v75 = vunpack.c.l.b16 %v31
  %v76 = vunpack.c.l.b16 %v32
  %v77 = vunpack.c.l.b16 %v33
  %v78 = vpack.c.b16 %v63, %v62
  %v79 = vpack.c.b16 %v65, %v64
  %v80 = vpack.c.b16 %v67, %v66
  %v81 = vpack.c.b16 %v69, %v68
  %v82 = vpack.c.b16 %v71, %v70
  %v83 = vpack.c.b16 %v73, %v72
  %v84 = vpack.c.b16 %v75, %v74
  %v85 = vpack.c.b16 %v77, %v76
  %94 = vmatprep.subr.bf16.mxu0 0
  %95 = vmatpush1.bf16.msra.mxu0 %v78
  %96 = vmatprep.subr.bf16.mxu0 0
  %97 = vmatpush1.bf16.msra.mxu0 %v79
  %98 = vmatprep.subr.bf16.mxu0 0
  %99 = vmatpush1.bf16.msra.mxu0 %v80
  %100 = vmatprep.subr.bf16.mxu0 0
  %101 = vmatpush1.bf16.msra.mxu0 %v81
  %102 = vmatprep.subr.bf16.mxu0 0
  %103 = vmatpush1.bf16.msra.mxu0 %v82
  %104 = vmatprep.subr.bf16.mxu0 0
  %105 = vmatpush1.bf16.msra.mxu0 %v83
  %106 = vmatprep.subr.bf16.mxu0 0
  %107 = vmatpush1.bf16.msra.mxu0 %v84
  %108 = vmatprep.subr.bf16.mxu0 0
  %109 = vmatpush1.bf16.msra.mxu0 %v85
  %110 = vmatprep.subr.bf16.mxu0 0
  %111 = vmatpush1.bf16.msra.mxu0 0
  %112 = vmatprep.subr.bf16.mxu0 0
  %113 = vmatpush1.bf16.msra.mxu0 0
  %114 = vmatprep.subr.bf16.mxu0 0
  %115 = vmatpush1.bf16.msra.mxu0 0
  %116 = vmatprep.subr.bf16.mxu0 0
  %117 = vmatpush1.bf16.msra.mxu0 0
  %118 = vmatprep.subr.bf16.mxu0 0
  %119 = vmatpush1.bf16.msra.mxu0 0
  %120 = vmatprep.subr.bf16.mxu0 0
  %121 = vmatpush1.bf16.msra.mxu0 0
  %122 = vmatprep.subr.bf16.mxu0 0
  %123 = vmatpush1.bf16.msra.mxu0 0
  %124 = vmatprep.subr.bf16.mxu0 0
  %125 = vmatpush1.bf16.msra.mxu0 0
  %126 = vmatprep.mubr.bf16.mxu0 0
  %127 = vmatmul.mubr.bf16.gmra.mrb[0].mxu0 %v42
  %v128 = vpop.f32.mrb[0].mxu0
  %v129 = vadd.f32 0.0, %v128
  %v130 = vpop.f32.mrb[0].mxu0
  %v131 = vpop.f32.mrb[0].mxu0
  %v132 = vadd.f32 0.0, %v131
  %v133 = vpop.f32.mrb[0].mxu0
  %134 = vmatprep.mubr.bf16.mxu0 0
  %135 = vmatmul.mubr.bf16.gmra.mrb[0].mxu0 %v43
  %v136 = vpop.f32.mrb[0].mxu0
  %v137 = vadd.f32 0.0, %v136
  %v138 = vpop.f32.mrb[0].mxu0
  %v139 = vpop.f32.mrb[0].mxu0
  %v140 = vadd.f32 0.0, %v139
  %v141 = vpop.f32.mrb[0].mxu0
  %142 = vdwg.mxu0
  %143 = vst [vmem:[%s2] sm:$0xff] %v129
  %144 = vst [vmem:[%s2 + $0x8] sm:$0xff] %v132
  %145 = vst [vmem:[%s2 + $0x10] sm:$0xff] %v137
  %146 = vst [vmem:[%s2 + $0x18] sm:$0xff] %v140
  %v147 = vadd.f32 %v129, %v132
  %v148 = vadd.f32 %v147, %v137
  %v149 = vadd.f32 %v148, %v140
  %v150 = vrot.slane %v149, 4
  %v151 = vadd.f32 %v149, %v150
  %v152 = vrot.slane %v151, 2
  %v153 = vadd.f32 %v151, %v152
  %v154 = vrot.slane %v153, 1
  %v155 = vadd.f32 %v153, %v154
  %v156 = vmul.f32 %v129, %v129
  %v157 = vmul.f32 %v132, %v132
  %v158 = vmul.f32 %v137, %v137
  %v159 = vmul.f32 %v140, %v140
  %v160 = vadd.f32 %v156, %v157
  %v161 = vadd.f32 %v160, %v158
  %v162 = vadd.f32 %v161, %v159
  %v163 = vrot.slane %v162, 4
  %v164 = vadd.f32 %v162, %v163
  %v165 = vrot.slane %v164, 2
  %v166 = vadd.f32 %v164, %v165
  %v167 = vrot.slane %v166, 1
  %v168 = vadd.f32 %v166, %v167
  %vm169 = vcmask 1040384
  %v170 = vsel %vm169, %v155, %v168
  %171 = vst [vmem:[%s3] sm:$0x3] %v170
  // Predicated region
  $region10: #{pose_encoder_forward.25} parent=0 // pred_check
    _
  $region11: #{pose_encoder_forward.25} parent=0 // pred_check_branch
    %173 = sbr.rel (0) target = $region13
  $region12: #{pose_encoder_forward.25} parent=0 // pred_region
    _
  $region13: #{pose_encoder_forward.25} parent=0 // pred_fallthru
    _
  // Predicated region
  $region14: #{pose_encoder_forward.25} parent=0 // pred_check
    _
  $region15: #{pose_encoder_forward.25} parent=0 // pred_check_branch
    %175 = sbr.rel (0) target = $region17
  $region16: #{pose_encoder_forward.25} parent=0 // pred_region
    _
  $region17: #{pose_encoder_forward.25} parent=0 // pred_fallthru
    _
  // Predicated region
  $region18: #{pose_encoder_forward.25} parent=0 // pred_check
    _
  $region19: #{pose_encoder_forward.25} parent=0 // pred_check_branch
    %177 = sbr.rel (0) target = $region21
  $region20: #{pose_encoder_forward.25} parent=0 // pred_region
    _
  $region21: #{pose_encoder_forward.25} parent=0 // pred_fallthru
    _
  // Predicated region
  $region22: #{pose_encoder_forward.25} parent=0 // pred_check
    _
  $region23: #{pose_encoder_forward.25} parent=0 // pred_check_branch
    %179 = sbr.rel (0) target = $region25
  $region24: #{pose_encoder_forward.25} parent=0 // pred_region
    _
  $region25: #{pose_encoder_forward.25} parent=0 // pred_fallthru
    _

// kernel: pose_encoder_forward.26
$region0: #{pose_encoder_forward.26}
  #allocation0 [shape = 'u32[]', space=smem, size = 0x4, offset = 0x4, fixed_abs, tag = 'smem constant byte address 0x4 - core index']
  #allocation1 [shape = 'u32[144,128]{1,0:T(1,128)}', space=vmem, size = 0x12000, scoped, tag = 'internal scratch']
  %s0 = inlined_call_operand.vmem [shape: f32[32,128], index: 0, kind: input, shape index: {}]
  %s1 = inlined_call_operand.vmem [shape: f32[1,128], index: 1, kind: input, shape index: {}]
  %s2 = inlined_call_operand.vmem [shape: f32[1,128], index: 2, kind: input, shape index: {}]
  %s3 = inlined_call_operand.vmem [shape: bf16[32,128], index: 3, kind: output, shape index: {}]
  %s4 = sld [smem:[#allocation0]]
  $region22: #{pose_encoder_forward.26} parent=0
    _
  %s6 = ssub.s32 1, %s4
  %s7 = scalar_select 0, %s6, %s4
  // Predicated region
  $region2: #{pose_encoder_forward.26} parent=0 // pred_check
    _
  $region3: #{pose_encoder_forward.26} parent=0 // pred_check_branch
    %9 = sbr.rel (0) target = $region5
  $region4: #{pose_encoder_forward.26} parent=0 // pred_region
    _
  $region5: #{pose_encoder_forward.26} parent=0 // pred_fallthru
    _
  // Predicated region
  $region6: #{pose_encoder_forward.26} parent=0 // pred_check
    _
  $region7: #{pose_encoder_forward.26} parent=0 // pred_check_branch
    %11 = sbr.rel (0) target = $region9
  $region8: #{pose_encoder_forward.26} parent=0 // pred_region
    _
  $region9: #{pose_encoder_forward.26} parent=0 // pred_fallthru
    _
  // Predicated region
  $region10: #{pose_encoder_forward.26} parent=0 // pred_check
    _
  $region11: #{pose_encoder_forward.26} parent=0 // pred_check_branch
    %13 = sbr.rel (0) target = $region13
  $region12: #{pose_encoder_forward.26} parent=0 // pred_region
    _
  $region13: #{pose_encoder_forward.26} parent=0 // pred_fallthru
    _
  %v14 = vld [vmem:[%s0] sm:$0xff]
  %v15 = vld [vmem:[%s0 + $0x8] sm:$0xff]
  %v16 = vld [vmem:[%s0 + $0x10] sm:$0xff]
  %v17 = vld [vmem:[%s0 + $0x18] sm:$0xff]
  %v18 = vld [vmem:[%s1] sm:$0x1]
  %v20 = vlaneseq
  %v21 = vshrl.u32 %v20, 7
  %v22 = vsub.s32 0, %v21
  %v23 = vrot.slane %v18, %v22
  %v25 = vmul.f32 %v14, %v23
  %v26 = vmul.f32 %v15, %v23
  %v27 = vmul.f32 %v16, %v23
  %v28 = vmul.f32 %v17, %v23
  %v29 = vld [vmem:[%s2] sm:$0x1]
  %v31 = vlaneseq
  %v32 = vshrl.u32 %v31, 7
  %v33 = vsub.s32 0, %v32
  %v34 = vrot.slane %v29, %v33
  %v36 = vadd.f32 %v25, %v34
  %v37 = vadd.f32 %v26, %v34
  %v38 = vadd.f32 %v27, %v34
  %v39 = vadd.f32 %v28, %v34
  %v40 = vmax.f32 %v36, 0.0
  %v41 = vmax.f32 %v37, 0.0
  %v42 = vmax.f32 %v38, 0.0
  %v43 = vmax.f32 %v39, 0.0
  %v44 = vpack.c.bf16 %v41, %v40
  %v45 = vpack.c.bf16 %v43, %v42
  %v48 = vunpack.c.l.b16 %v44
  %v49 = vunpack.c.h.b16 %v44
  %v50 = vunpack.c.l.b16 %v45
  %v51 = vunpack.c.h.b16 %v45
  %v52 = vpack.c.b16 %v48, %v48
  %v53 = vpack.c.b16 %v49, %v49
  %v54 = vpack.c.b16 %v50, %v50
  %v55 = vpack.c.b16 %v51, %v51
  %60 = vst [vmem:[%s3] sm:$0xf] %v52
  %61 = vst [vmem:[%s3 + $0x4] sm:$0xf] %v53
  %62 = vst [vmem:[%s3 + $0x8] sm:$0xf] %v54
  %63 = vst [vmem:[%s3 + $0xc] sm:$0xf] %v55
  // Predicated region
  $region14: #{pose_encoder_forward.26} parent=0 // pred_check
    _
  $region15: #{pose_encoder_forward.26} parent=0 // pred_check_branch
    %65 = sbr.rel (0) target = $region17
  $region16: #{pose_encoder_forward.26} parent=0 // pred_region
    _
  $region17: #{pose_encoder_forward.26} parent=0 // pred_fallthru
    _
  // Predicated region
  $region18: #{pose_encoder_forward.26} parent=0 // pred_check
    _
  $region19: #{pose_encoder_forward.26} parent=0 // pred_check_branch
    %67 = sbr.rel (0) target = $region21
  $region20: #{pose_encoder_forward.26} parent=0 // pred_region
    _
  $region21: #{pose_encoder_forward.26} parent=0 // pred_fallthru
    _

// kernel: pose_encoder_forward.27
$region0: #{pose_encoder_forward.27}
  #allocation0 [shape = 'u32[]', space=smem, size = 0x4, offset = 0x4, fixed_abs, tag = 'smem constant byte address 0x4 - core index']
  #allocation1 [shape = 'u32[144,128]{1,0:T(1,128)}', space=vmem, size = 0x12000, scoped, tag = 'internal scratch']
  %s0 = inlined_call_operand.vmem [shape: bf16[32,256], index: 0, kind: input, shape index: {}]
  %s1 = inlined_call_operand.vmem [shape: bf16[256,128], index: 1, kind: input, shape index: {}]
  %s2 = inlined_call_operand.vmem [shape: f32[32,128], index: 2, kind: output, shape index: {0}]
  %s3 = inlined_call_operand.vmem [shape: f32[1,2,128], index: 3, kind: output, shape index: {1}]
  %4 = xla_tuple %s2, %s3
  %s5 = sld [smem:[#allocation0]]
  $region26: #{pose_encoder_forward.27} parent=0
    _
  %s7 = ssub.s32 1, %s5
  %s8 = scalar_select 0, %s7, %s5
  // Predicated region
  $region2: #{pose_encoder_forward.27} parent=0 // pred_check
    _
  $region3: #{pose_encoder_forward.27} parent=0 // pred_check_branch
    %10 = sbr.rel (0) target = $region5
  $region4: #{pose_encoder_forward.27} parent=0 // pred_region
    _
  $region5: #{pose_encoder_forward.27} parent=0 // pred_fallthru
    _
  // Predicated region
  $region6: #{pose_encoder_forward.27} parent=0 // pred_check
    _
  $region7: #{pose_encoder_forward.27} parent=0 // pred_check_branch
    %12 = sbr.rel (0) target = $region9
  $region8: #{pose_encoder_forward.27} parent=0 // pred_region
    _
  $region9: #{pose_encoder_forward.27} parent=0 // pred_fallthru
    _
  %v14 = vld [vmem:[%s0] sm:$0xff]
  %v15 = vld [vmem:[%s0 + $0x8] sm:$0xff]
  %v16 = vld [vmem:[%s0 + $0x10] sm:$0xff]
  %v17 = vld [vmem:[%s0 + $0x18] sm:$0xff]
  %v18 = vld [vmem:[%s1] sm:$0xf]
  %v19 = vld [vmem:[%s1 + $0x4] sm:$0xf]
  %v20 = vld [vmem:[%s1 + $0x8] sm:$0xf]
  %v21 = vld [vmem:[%s1 + $0xc] sm:$0xf]
  %v22 = vld [vmem:[%s1 + $0x10] sm:$0xf]
  %v23 = vld [vmem:[%s1 + $0x14] sm:$0xf]
  %v24 = vld [vmem:[%s1 + $0x18] sm:$0xf]
  %v25 = vld [vmem:[%s1 + $0x1c] sm:$0xf]
  %v26 = vld [vmem:[%s1 + $0x20] sm:$0xf]
  %v27 = vld [vmem:[%s1 + $0x24] sm:$0xf]
  %v28 = vld [vmem:[%s1 + $0x28] sm:$0xf]
  %v29 = vld [vmem:[%s1 + $0x2c] sm:$0xf]
  %v30 = vld [vmem:[%s1 + $0x30] sm:$0xf]
  %v31 = vld [vmem:[%s1 + $0x34] sm:$0xf]
  %v32 = vld [vmem:[%s1 + $0x38] sm:$0xf]
  %v33 = vld [vmem:[%s1 + $0x3c] sm:$0xf]
  %v34 = vld [vmem:[%s1 + $0x40] sm:$0xf]
  %v35 = vld [vmem:[%s1 + $0x44] sm:$0xf]
  %v36 = vld [vmem:[%s1 + $0x48] sm:$0xf]
  %v37 = vld [vmem:[%s1 + $0x4c] sm:$0xf]
  %v38 = vld [vmem:[%s1 + $0x50] sm:$0xf]
  %v39 = vld [vmem:[%s1 + $0x54] sm:$0xf]
  %v40 = vld [vmem:[%s1 + $0x58] sm:$0xf]
  %v41 = vld [vmem:[%s1 + $0x5c] sm:$0xf]
  %v42 = vld [vmem:[%s1 + $0x60] sm:$0xf]
  %v43 = vld [vmem:[%s1 + $0x64] sm:$0xf]
  %v44 = vld [vmem:[%s1 + $0x68] sm:$0xf]
  %v45 = vld [vmem:[%s1 + $0x6c] sm:$0xf]
  %v46 = vld [vmem:[%s1 + $0x70] sm:$0xf]
  %v47 = vld [vmem:[%s1 + $0x74] sm:$0xf]
  %v48 = vld [vmem:[%s1 + $0x78] sm:$0xf]
  %v49 = vld [vmem:[%s1 + $0x7c] sm:$0xf]
  %v54 = vunpack.c.l.b16 %v14
  %v55 = vunpack.c.h.b16 %v14
  %v56 = vunpack.c.l.b16 %v15
  %v57 = vunpack.c.h.b16 %v15
  %v58 = vunpack.c.l.b16 %v16
  %v59 = vunpack.c.h.b16 %v16
  %v60 = vunpack.c.l.b16 %v17
  %v61 = vunpack.c.h.b16 %v17
  %v62 = vpack.c.b16 %v56, %v54
  %v63 = vpack.c.b16 %v57, %v55
  %v64 = vpack.c.b16 %v60, %v58
  %v65 = vpack.c.b16 %v61, %v59
  %v102 = vunpack.c.l.b16 %v18
  %v103 = vunpack.c.l.b16 %v19
  %v104 = vunpack.c.l.b16 %v20
  %v105 = vunpack.c.l.b16 %v21
  %v106 = vunpack.c.l.b16 %v22
  %v107 = vunpack.c.l.b16 %v23
  %v108 = vunpack.c.l.b16 %v24
  %v109 = vunpack.c.l.b16 %v25
  %v110 = vunpack.c.l.b16 %v26
  %v111 = vunpack.c.l.b16 %v27
  %v112 = vunpack.c.l.b16 %v28
  %v113 = vunpack.c.l.b16 %v29
  %v114 = vunpack.c.l.b16 %v30
  %v115 = vunpack.c.l.b16 %v31
  %v116 = vunpack.c.l.b16 %v32
  %v117 = vunpack.c.l.b16 %v33
  %v118 = vunpack.c.l.b16 %v34
  %v119 = vunpack.c.l.b16 %v35
  %v120 = vunpack.c.l.b16 %v36
  %v121 = vunpack.c.l.b16 %v37
  %v122 = vunpack.c.l.b16 %v38
  %v123 = vunpack.c.l.b16 %v39
  %v124 = vunpack.c.l.b16 %v40
  %v125 = vunpack.c.l.b16 %v41
  %v126 = vunpack.c.l.b16 %v42
  %v127 = vunpack.c.l.b16 %v43
  %v128 = vunpack.c.l.b16 %v44
  %v129 = vunpack.c.l.b16 %v45
  %v130 = vunpack.c.l.b16 %v46
  %v131 = vunpack.c.l.b16 %v47
  %v132 = vunpack.c.l.b16 %v48
  %v133 = vunpack.c.l.b16 %v49
  %v134 = vpack.c.b16 %v103, %v102
  %v135 = vpack.c.b16 %v105, %v104
  %v136 = vpack.c.b16 %v107, %v106
  %v137 = vpack.c.b16 %v109, %v108
  %v138 = vpack.c.b16 %v111, %v110
  %v139 = vpack.c.b16 %v113, %v112
  %v140 = vpack.c.b16 %v115, %v114
  %v141 = vpack.c.b16 %v117, %v116
  %v142 = vpack.c.b16 %v119, %v118
  %v143 = vpack.c.b16 %v121, %v120
  %v144 = vpack.c.b16 %v123, %v122
  %v145 = vpack.c.b16 %v125, %v124
  %v146 = vpack.c.b16 %v127, %v126
  %v147 = vpack.c.b16 %v129, %v128
  %v148 = vpack.c.b16 %v131, %v130
  %v149 = vpack.c.b16 %v133, %v132
  %166 = vmatprep.subr.bf16.mxu0 0
  %167 = vmatpush1.bf16.msra.mxu0 %v134
  %168 = vmatprep.subr.bf16.mxu0 0
  %169 = vmatpush1.bf16.msra.mxu0 %v135
  %170 = vmatprep.subr.bf16.mxu0 0
  %171 = vmatpush1.bf16.msra.mxu0 %v136
  %172 = vmatprep.subr.bf16.mxu0 0
  %173 = vmatpush1.bf16.msra.mxu0 %v137
  %174 = vmatprep.subr.bf16.mxu0 0
  %175 = vmatpush1.bf16.msra.mxu0 %v138
  %176 = vmatprep.subr.bf16.mxu0 0
  %177 = vmatpush1.bf16.msra.mxu0 %v139
  %178 = vmatprep.subr.bf16.mxu0 0
  %179 = vmatpush1.bf16.msra.mxu0 %v140
  %180 = vmatprep.subr.bf16.mxu0 0
  %181 = vmatpush1.bf16.msra.mxu0 %v141
  %182 = vmatprep.subr.bf16.mxu0 0
  %183 = vmatpush1.bf16.msra.mxu0 %v142
  %184 = vmatprep.subr.bf16.mxu0 0
  %185 = vmatpush1.bf16.msra.mxu0 %v143
  %186 = vmatprep.subr.bf16.mxu0 0
  %187 = vmatpush1.bf16.msra.mxu0 %v144
  %188 = vmatprep.subr.bf16.mxu0 0
  %189 = vmatpush1.bf16.msra.mxu0 %v145
  %190 = vmatprep.subr.bf16.mxu0 0
  %191 = vmatpush1.bf16.msra.mxu0 %v146
  %192 = vmatprep.subr.bf16.mxu0 0
  %193 = vmatpush1.bf16.msra.mxu0 %v147
  %194 = vmatprep.subr.bf16.mxu0 0
  %195 = vmatpush1.bf16.msra.mxu0 %v148
  %196 = vmatprep.subr.bf16.mxu0 0
  %197 = vmatpush1.bf16.msra.mxu0 %v149
  %198 = vmatprep.mubr.bf16.mxu0 %v63
  %199 = vmatmul.mubr.bf16.gmra.mrb[0].mxu0 %v62
  %v200 = vpop.f32.mrb[0].mxu0
  %v201 = vadd.f32 0.0, %v200
  %v202 = vpop.f32.mrb[0].mxu0
  %v203 = vpop.f32.mrb[0].mxu0
  %v204 = vadd.f32 0.0, %v203
  %v205 = vpop.f32.mrb[0].mxu0
  %206 = vmatprep.mubr.bf16.mxu0 %v65
  %207 = vmatmul.mubr.bf16.gmra.mrb[0].mxu0 %v64
  %v208 = vpop.f32.mrb[0].mxu0
  %v209 = vadd.f32 0.0, %v208
  %v210 = vpop.f32.mrb[0].mxu0
  %v211 = vpop.f32.mrb[0].mxu0
  %v212 = vadd.f32 0.0, %v211
  %v213 = vpop.f32.mrb[0].mxu0
  %214 = vdwg.mxu0
  %215 = vst [vmem:[%s2] sm:$0xff] %v201
  %216 = vst [vmem:[%s2 + $0x8] sm:$0xff] %v204
  %217 = vst [vmem:[%s2 + $0x10] sm:$0xff] %v209
  %218 = vst [vmem:[%s2 + $0x18] sm:$0xff] %v212
  %v219 = vadd.f32 %v201, %v204
  %v220 = vadd.f32 %v219, %v209
  %v221 = vadd.f32 %v220, %v212
  %v222 = vrot.slane %v221, 4
  %v223 = vadd.f32 %v221, %v222
  %v224 = vrot.slane %v223, 2
  %v225 = vadd.f32 %v223, %v224
  %v226 = vrot.slane %v225, 1
  %v227 = vadd.f32 %v225, %v226
  %v228 = vmul.f32 %v201, %v201
  %v229 = vmul.f32 %v204, %v204
  %v230 = vmul.f32 %v209, %v209
  %v231 = vmul.f32 %v212, %v212
  %v232 = vadd.f32 %v228, %v229
  %v233 = vadd.f32 %v232, %v230
  %v234 = vadd.f32 %v233, %v231
  %v235 = vrot.slane %v234, 4
  %v236 = vadd.f32 %v234, %v235
  %v237 = vrot.slane %v236, 2
  %v238 = vadd.f32 %v236, %v237
  %v239 = vrot.slane %v238, 1
  %v240 = vadd.f32 %v238, %v239
  %vm241 = vcmask 1040384
  %v242 = vsel %vm241, %v227, %v240
  %243 = vst [vmem:[%s3] sm:$0x3] %v242
  // Predicated region
  $region10: #{pose_encoder_forward.27} parent=0 // pred_check
    _
  $region11: #{pose_encoder_forward.27} parent=0 // pred_check_branch
    %245 = sbr.rel (0) target = $region13
  $region12: #{pose_encoder_forward.27} parent=0 // pred_region
    _
  $region13: #{pose_encoder_forward.27} parent=0 // pred_fallthru
    _
  // Predicated region
  $region14: #{pose_encoder_forward.27} parent=0 // pred_check
    _
  $region15: #{pose_encoder_forward.27} parent=0 // pred_check_branch
    %247 = sbr.rel (0) target = $region17
  $region16: #{pose_encoder_forward.27} parent=0 // pred_region
    _
  $region17: #{pose_encoder_forward.27} parent=0 // pred_fallthru
    _
  // Predicated region
  $region18: #{pose_encoder_forward.27} parent=0 // pred_check
    _
  $region19: #{pose_encoder_forward.27} parent=0 // pred_check_branch
    %249 = sbr.rel (0) target = $region21
  $region20: #{pose_encoder_forward.27} parent=0 // pred_region
    _
  $region21: #{pose_encoder_forward.27} parent=0 // pred_fallthru
    _
  // Predicated region
  $region22: #{pose_encoder_forward.27} parent=0 // pred_check
    _
  $region23: #{pose_encoder_forward.27} parent=0 // pred_check_branch
    %251 = sbr.rel (0) target = $region25
  $region24: #{pose_encoder_forward.27} parent=0 // pred_region
    _
  $region25: #{pose_encoder_forward.27} parent=0 // pred_fallthru
    _

// kernel: pose_encoder_forward.29
$region0: #{pose_encoder_forward.29}
  #allocation0 [shape = 'u32[]', space=smem, size = 0x4, offset = 0x4, fixed_abs, tag = 'smem constant byte address 0x4 - core index']
  #allocation1 [shape = 'u32[144,128]{1,0:T(1,128)}', space=vmem, size = 0x12000, scoped, tag = 'internal scratch']
  %s0 = inlined_call_operand.vmem [shape: bf16[16,256], index: 0, kind: input, shape index: {}]
  %s1 = inlined_call_operand.vmem [shape: bf16[256,128], index: 1, kind: input, shape index: {}]
  %s2 = inlined_call_operand.vmem [shape: f32[16,128], index: 2, kind: output, shape index: {0}]
  %s3 = inlined_call_operand.vmem [shape: f32[1,2,128], index: 3, kind: output, shape index: {1}]
  %4 = xla_tuple %s2, %s3
  %s5 = sld [smem:[#allocation0]]
  $region26: #{pose_encoder_forward.29} parent=0
    _
  %s7 = ssub.s32 1, %s5
  %s8 = scalar_select 0, %s7, %s5
  // Predicated region
  $region2: #{pose_encoder_forward.29} parent=0 // pred_check
    _
  $region3: #{pose_encoder_forward.29} parent=0 // pred_check_branch
    %10 = sbr.rel (0) target = $region5
  $region4: #{pose_encoder_forward.29} parent=0 // pred_region
    _
  $region5: #{pose_encoder_forward.29} parent=0 // pred_fallthru
    _
  // Predicated region
  $region6: #{pose_encoder_forward.29} parent=0 // pred_check
    _
  $region7: #{pose_encoder_forward.29} parent=0 // pred_check_branch
    %12 = sbr.rel (0) target = $region9
  $region8: #{pose_encoder_forward.29} parent=0 // pred_region
    _
  $region9: #{pose_encoder_forward.29} parent=0 // pred_fallthru
    _
  %v14 = vld [vmem:[%s0] sm:$0xff]
  %v15 = vld [vmem:[%s0 + $0x8] sm:$0xff]
  %v16 = vld [vmem:[%s1] sm:$0xf]
  %v17 = vld [vmem:[%s1 + $0x4] sm:$0xf]
  %v18 = vld [vmem:[%s1 + $0x8] sm:$0xf]
  %v19 = vld [vmem:[%s1 + $0xc] sm:$0xf]
  %v20 = vld [vmem:[%s1 + $0x10] sm:$0xf]
  %v21 = vld [vmem:[%s1 + $0x14] sm:$0xf]
  %v22 = vld [vmem:[%s1 + $0x18] sm:$0xf]
  %v23 = vld [vmem:[%s1 + $0x1c] sm:$0xf]
  %v24 = vld [vmem:[%s1 + $0x20] sm:$0xf]
  %v25 = vld [vmem:[%s1 + $0x24] sm:$0xf]
  %v26 = vld [vmem:[%s1 + $0x28] sm:$0xf]
  %v27 = vld [vmem:[%s1 + $0x2c] sm:$0xf]
  %v28 = vld [vmem:[%s1 + $0x30] sm:$0xf]
  %v29 = vld [vmem:[%s1 + $0x34] sm:$0xf]
  %v30 = vld [vmem:[%s1 + $0x38] sm:$0xf]
  %v31 = vld [vmem:[%s1 + $0x3c] sm:$0xf]
  %v32 = vld [vmem:[%s1 + $0x40] sm:$0xf]
  %v33 = vld [vmem:[%s1 + $0x44] sm:$0xf]
  %v34 = vld [vmem:[%s1 + $0x48] sm:$0xf]
  %v35 = vld [vmem:[%s1 + $0x4c] sm:$0xf]
  %v36 = vld [vmem:[%s1 + $0x50] sm:$0xf]
  %v37 = vld [vmem:[%s1 + $0x54] sm:$0xf]
  %v38 = vld [vmem:[%s1 + $0x58] sm:$0xf]
  %v39 = vld [vmem:[%s1 + $0x5c] sm:$0xf]
  %v40 = vld [vmem:[%s1 + $0x60] sm:$0xf]
  %v41 = vld [vmem:[%s1 + $0x64] sm:$0xf]
  %v42 = vld [vmem:[%s1 + $0x68] sm:$0xf]
  %v43 = vld [vmem:[%s1 + $0x6c] sm:$0xf]
  %v44 = vld [vmem:[%s1 + $0x70] sm:$0xf]
  %v45 = vld [vmem:[%s1 + $0x74] sm:$0xf]
  %v46 = vld [vmem:[%s1 + $0x78] sm:$0xf]
  %v47 = vld [vmem:[%s1 + $0x7c] sm:$0xf]
  %v50 = vunpack.c.l.b16 %v14
  %v51 = vunpack.c.h.b16 %v14
  %v52 = vunpack.c.l.b16 %v15
  %v53 = vunpack.c.h.b16 %v15
  %v54 = vpack.c.b16 %v52, %v50
  %v55 = vpack.c.b16 %v53, %v51
  %v90 = vunpack.c.l.b16 %v16
  %v91 = vunpack.c.l.b16 %v17
  %v92 = vunpack.c.l.b16 %v18
  %v93 = vunpack.c.l.b16 %v19
  %v94 = vunpack.c.l.b16 %v20
  %v95 = vunpack.c.l.b16 %v21
  %v96 = vunpack.c.l.b16 %v22
  %v97 = vunpack.c.l.b16 %v23
  %v98 = vunpack.c.l.b16 %v24
  %v99 = vunpack.c.l.b16 %v25
  %v100 = vunpack.c.l.b16 %v26
  %v101 = vunpack.c.l.b16 %v27
  %v102 = vunpack.c.l.b16 %v28
  %v103 = vunpack.c.l.b16 %v29
  %v104 = vunpack.c.l.b16 %v30
  %v105 = vunpack.c.l.b16 %v31
  %v106 = vunpack.c.l.b16 %v32
  %v107 = vunpack.c.l.b16 %v33
  %v108 = vunpack.c.l.b16 %v34
  %v109 = vunpack.c.l.b16 %v35
  %v110 = vunpack.c.l.b16 %v36
  %v111 = vunpack.c.l.b16 %v37
  %v112 = vunpack.c.l.b16 %v38
  %v113 = vunpack.c.l.b16 %v39
  %v114 = vunpack.c.l.b16 %v40
  %v115 = vunpack.c.l.b16 %v41
  %v116 = vunpack.c.l.b16 %v42
  %v117 = vunpack.c.l.b16 %v43
  %v118 = vunpack.c.l.b16 %v44
  %v119 = vunpack.c.l.b16 %v45
  %v120 = vunpack.c.l.b16 %v46
  %v121 = vunpack.c.l.b16 %v47
  %v122 = vpack.c.b16 %v91, %v90
  %v123 = vpack.c.b16 %v93, %v92
  %v124 = vpack.c.b16 %v95, %v94
  %v125 = vpack.c.b16 %v97, %v96
  %v126 = vpack.c.b16 %v99, %v98
  %v127 = vpack.c.b16 %v101, %v100
  %v128 = vpack.c.b16 %v103, %v102
  %v129 = vpack.c.b16 %v105, %v104
  %v130 = vpack.c.b16 %v107, %v106
  %v131 = vpack.c.b16 %v109, %v108
  %v132 = vpack.c.b16 %v111, %v110
  %v133 = vpack.c.b16 %v113, %v112
  %v134 = vpack.c.b16 %v115, %v114
  %v135 = vpack.c.b16 %v117, %v116
  %v136 = vpack.c.b16 %v119, %v118
  %v137 = vpack.c.b16 %v121, %v120
  %154 = vmatprep.subr.bf16.mxu0 0
  %155 = vmatpush1.bf16.msra.mxu0 %v122
  %156 = vmatprep.subr.bf16.mxu0 0
  %157 = vmatpush1.bf16.msra.mxu0 %v123
  %158 = vmatprep.subr.bf16.mxu0 0
  %159 = vmatpush1.bf16.msra.mxu0 %v124
  %160 = vmatprep.subr.bf16.mxu0 0
  %161 = vmatpush1.bf16.msra.mxu0 %v125
  %162 = vmatprep.subr.bf16.mxu0 0
  %163 = vmatpush1.bf16.msra.mxu0 %v126
  %164 = vmatprep.subr.bf16.mxu0 0
  %165 = vmatpush1.bf16.msra.mxu0 %v127
  %166 = vmatprep.subr.bf16.mxu0 0
  %167 = vmatpush1.bf16.msra.mxu0 %v128
  %168 = vmatprep.subr.bf16.mxu0 0
  %169 = vmatpush1.bf16.msra.mxu0 %v129
  %170 = vmatprep.subr.bf16.mxu0 0
  %171 = vmatpush1.bf16.msra.mxu0 %v130
  %172 = vmatprep.subr.bf16.mxu0 0
  %173 = vmatpush1.bf16.msra.mxu0 %v131
  %174 = vmatprep.subr.bf16.mxu0 0
  %175 = vmatpush1.bf16.msra.mxu0 %v132
  %176 = vmatprep.subr.bf16.mxu0 0
  %177 = vmatpush1.bf16.msra.mxu0 %v133
  %178 = vmatprep.subr.bf16.mxu0 0
  %179 = vmatpush1.bf16.msra.mxu0 %v134
  %180 = vmatprep.subr.bf16.mxu0 0
  %181 = vmatpush1.bf16.msra.mxu0 %v135
  %182 = vmatprep.subr.bf16.mxu0 0
  %183 = vmatpush1.bf16.msra.mxu0 %v136
  %184 = vmatprep.subr.bf16.mxu0 0
  %185 = vmatpush1.bf16.msra.mxu0 %v137
  %186 = vmatprep.mubr.bf16.mxu0 %v55
  %187 = vmatmul.mubr.bf16.gmra.mrb[0].mxu0 %v54
  %v188 = vpop.f32.mrb[0].mxu0
  %v189 = vadd.f32 0.0, %v188
  %v190 = vpop.f32.mrb[0].mxu0
  %v191 = vpop.f32.mrb[0].mxu0
  %v192 = vadd.f32 0.0, %v191
  %v193 = vpop.f32.mrb[0].mxu0
  %194 = vdwg.mxu0
  %195 = vst [vmem:[%s2] sm:$0xff] %v189
  %196 = vst [vmem:[%s2 + $0x8] sm:$0xff] %v192
  %v197 = vadd.f32 %v189, %v192
  %v198 = vrot.slane %v197, 4
  %v199 = vadd.f32 %v197, %v198
  %v200 = vrot.slane %v199, 2
  %v201 = vadd.f32 %v199, %v200
  %v202 = vrot.slane %v201, 1
  %v203 = vadd.f32 %v201, %v202
  %v204 = vmul.f32 %v189, %v189
  %v205 = vmul.f32 %v192, %v192
  %v206 = vadd.f32 %v204, %v205
  %v207 = vrot.slane %v206, 4
  %v208 = vadd.f32 %v206, %v207
  %v209 = vrot.slane %v208, 2
  %v210 = vadd.f32 %v208, %v209
  %v211 = vrot.slane %v210, 1
  %v212 = vadd.f32 %v210, %v211
  %vm213 = vcmask 1040384
  %v214 = vsel %vm213, %v203, %v212
  %215 = vst [vmem:[%s3] sm:$0x3] %v214
  // Predicated region
  $region10: #{pose_encoder_forward.29} parent=0 // pred_check
    _
  $region11: #{pose_encoder_forward.29} parent=0 // pred_check_branch
    %217 = sbr.rel (0) target = $region13
  $region12: #{pose_encoder_forward.29} parent=0 // pred_region
    _
  $region13: #{pose_encoder_forward.29} parent=0 // pred_fallthru
    _
  // Predicated region
  $region14: #{pose_encoder_forward.29} parent=0 // pred_check
    _
  $region15: #{pose_encoder_forward.29} parent=0 // pred_check_branch
    %219 = sbr.rel (0) target = $region17
  $region16: #{pose_encoder_forward.29} parent=0 // pred_region
    _
  $region17: #{pose_encoder_forward.29} parent=0 // pred_fallthru
    _
  // Predicated region
  $region18: #{pose_encoder_forward.29} parent=0 // pred_check
    _
  $region19: #{pose_encoder_forward.29} parent=0 // pred_check_branch
    %221 = sbr.rel (0) target = $region21
  $region20: #{pose_encoder_forward.29} parent=0 // pred_region
    _
  $region21: #{pose_encoder_forward.29} parent=0 // pred_fallthru
    _
  // Predicated region
  $region22: #{pose_encoder_forward.29} parent=0 // pred_check
    _
  $region23: #{pose_encoder_forward.29} parent=0 // pred_check_branch
    %223 = sbr.rel (0) target = $region25
  $region24: #{pose_encoder_forward.29} parent=0 // pred_region
    _
  $region25: #{pose_encoder_forward.29} parent=0 // pred_fallthru
    _

// kernel: pose_encoder_forward.30
$region0: #{pose_encoder_forward.30}
  #allocation0 [shape = 'u32[]', space=smem, size = 0x4, offset = 0x4, fixed_abs, tag = 'smem constant byte address 0x4 - core index']
  #allocation1 [shape = 'u32[144,128]{1,0:T(1,128)}', space=vmem, size = 0x12000, scoped, tag = 'internal scratch']
  %s0 = inlined_call_operand.vmem [shape: f32[16,128], index: 0, kind: input, shape index: {}]
  %s1 = inlined_call_operand.vmem [shape: f32[1,128], index: 1, kind: input, shape index: {}]
  %s2 = inlined_call_operand.vmem [shape: f32[1,128], index: 2, kind: input, shape index: {}]
  %s3 = inlined_call_operand.vmem [shape: bf16[16,128], index: 3, kind: output, shape index: {}]
  %s4 = sld [smem:[#allocation0]]
  $region22: #{pose_encoder_forward.30} parent=0
    _
  %s6 = ssub.s32 1, %s4
  %s7 = scalar_select 0, %s6, %s4
  // Predicated region
  $region2: #{pose_encoder_forward.30} parent=0 // pred_check
    _
  $region3: #{pose_encoder_forward.30} parent=0 // pred_check_branch
    %9 = sbr.rel (0) target = $region5
  $region4: #{pose_encoder_forward.30} parent=0 // pred_region
    _
  $region5: #{pose_encoder_forward.30} parent=0 // pred_fallthru
    _
  // Predicated region
  $region6: #{pose_encoder_forward.30} parent=0 // pred_check
    _
  $region7: #{pose_encoder_forward.30} parent=0 // pred_check_branch
    %11 = sbr.rel (0) target = $region9
  $region8: #{pose_encoder_forward.30} parent=0 // pred_region
    _
  $region9: #{pose_encoder_forward.30} parent=0 // pred_fallthru
    _
  // Predicated region
  $region10: #{pose_encoder_forward.30} parent=0 // pred_check
    _
  $region11: #{pose_encoder_forward.30} parent=0 // pred_check_branch
    %13 = sbr.rel (0) target = $region13
  $region12: #{pose_encoder_forward.30} parent=0 // pred_region
    _
  $region13: #{pose_encoder_forward.30} parent=0 // pred_fallthru
    _
  %v14 = vld [vmem:[%s0] sm:$0xff]
  %v15 = vld [vmem:[%s0 + $0x8] sm:$0xff]
  %v16 = vld [vmem:[%s1] sm:$0x1]
  %v18 = vlaneseq
  %v19 = vshrl.u32 %v18, 7
  %v20 = vsub.s32 0, %v19
  %v21 = vrot.slane %v16, %v20
  %v23 = vmul.f32 %v14, %v21
  %v24 = vmul.f32 %v15, %v21
  %v25 = vld [vmem:[%s2] sm:$0x1]
  %v27 = vlaneseq
  %v28 = vshrl.u32 %v27, 7
  %v29 = vsub.s32 0, %v28
  %v30 = vrot.slane %v25, %v29
  %v32 = vadd.f32 %v23, %v30
  %v33 = vadd.f32 %v24, %v30
  %v34 = vmax.f32 %v32, 0.0
  %v35 = vmax.f32 %v33, 0.0
  %v36 = vpack.c.bf16 %v35, %v34
  %v38 = vunpack.c.l.b16 %v36
  %v39 = vunpack.c.h.b16 %v36
  %v40 = vpack.c.b16 %v38, %v38
  %v41 = vpack.c.b16 %v39, %v39
  %44 = vst [vmem:[%s3] sm:$0xf] %v40
  %45 = vst [vmem:[%s3 + $0x4] sm:$0xf] %v41
  // Predicated region
  $region14: #{pose_encoder_forward.30} parent=0 // pred_check
    _
  $region15: #{pose_encoder_forward.30} parent=0 // pred_check_branch
    %47 = sbr.rel (0) target = $region17
  $region16: #{pose_encoder_forward.30} parent=0 // pred_region
    _
  $region17: #{pose_encoder_forward.30} parent=0 // pred_fallthru
    _
  // Predicated region
  $region18: #{pose_encoder_forward.30} parent=0 // pred_check
    _
  $region19: #{pose_encoder_forward.30} parent=0 // pred_check_branch
    %49 = sbr.rel (0) target = $region21
  $region20: #{pose_encoder_forward.30} parent=0 // pred_region
    _
  $region21: #{pose_encoder_forward.30} parent=0 // pred_fallthru
    _

// kernel: pose_encoder_forward.31
$region0: #{pose_encoder_forward.31}
  #allocation0 [shape = 'u32[]', space=smem, size = 0x4, offset = 0x4, fixed_abs, tag = 'smem constant byte address 0x4 - core index']
  #allocation1 [shape = 'u32[144,128]{1,0:T(1,128)}', space=vmem, size = 0x12000, scoped, tag = 'internal scratch']
  %s0 = inlined_call_operand.vmem [shape: bf16[16,384], index: 0, kind: input, shape index: {}]
  %s1 = inlined_call_operand.vmem [shape: bf16[384,128], index: 1, kind: input, shape index: {}]
  %s2 = inlined_call_operand.vmem [shape: f32[16,128], index: 2, kind: output, shape index: {0}]
  %s3 = inlined_call_operand.vmem [shape: f32[1,2,128], index: 3, kind: output, shape index: {1}]
  %4 = xla_tuple %s2, %s3
  %s5 = sld [smem:[#allocation0]]
  $region26: #{pose_encoder_forward.31} parent=0
    _
  %s7 = ssub.s32 1, %s5
  %s8 = scalar_select 0, %s7, %s5
  // Predicated region
  $region2: #{pose_encoder_forward.31} parent=0 // pred_check
    _
  $region3: #{pose_encoder_forward.31} parent=0 // pred_check_branch
    %10 = sbr.rel (0) target = $region5
  $region4: #{pose_encoder_forward.31} parent=0 // pred_region
    _
  $region5: #{pose_encoder_forward.31} parent=0 // pred_fallthru
    _
  // Predicated region
  $region6: #{pose_encoder_forward.31} parent=0 // pred_check
    _
  $region7: #{pose_encoder_forward.31} parent=0 // pred_check_branch
    %12 = sbr.rel (0) target = $region9
  $region8: #{pose_encoder_forward.31} parent=0 // pred_region
    _
  $region9: #{pose_encoder_forward.31} parent=0 // pred_fallthru
    _
  %v14 = vld [vmem:[%s0] sm:$0xff]
  %v15 = vld [vmem:[%s0 + $0x8] sm:$0xf]
  %v16 = vld [vmem:[%s0 + $0xc] sm:$0xff]
  %v17 = vld [vmem:[%s0 + $0x14] sm:$0xf]
  %v18 = vld [vmem:[%s1] sm:$0xf]
  %v19 = vld [vmem:[%s1 + $0x4] sm:$0xf]
  %v20 = vld [vmem:[%s1 + $0x8] sm:$0xf]
  %v21 = vld [vmem:[%s1 + $0xc] sm:$0xf]
  %v22 = vld [vmem:[%s1 + $0x10] sm:$0xf]
  %v23 = vld [vmem:[%s1 + $0x14] sm:$0xf]
  %v24 = vld [vmem:[%s1 + $0x18] sm:$0xf]
  %v25 = vld [vmem:[%s1 + $0x1c] sm:$0xf]
  %v26 = vld [vmem:[%s1 + $0x20] sm:$0xf]
  %v27 = vld [vmem:[%s1 + $0x24] sm:$0xf]
  %v28 = vld [vmem:[%s1 + $0x28] sm:$0xf]
  %v29 = vld [vmem:[%s1 + $0x2c] sm:$0xf]
  %v30 = vld [vmem:[%s1 + $0x30] sm:$0xf]
  %v31 = vld [vmem:[%s1 + $0x34] sm:$0xf]
  %v32 = vld [vmem:[%s1 + $0x38] sm:$0xf]
  %v33 = vld [vmem:[%s1 + $0x3c] sm:$0xf]
  %v34 = vld [vmem:[%s1 + $0x40] sm:$0xf]
  %v35 = vld [vmem:[%s1 + $0x44] sm:$0xf]
  %v36 = vld [vmem:[%s1 + $0x48] sm:$0xf]
  %v37 = vld [vmem:[%s1 + $0x4c] sm:$0xf]
  %v38 = vld [vmem:[%s1 + $0x50] sm:$0xf]
  %v39 = vld [vmem:[%s1 + $0x54] sm:$0xf]
  %v40 = vld [vmem:[%s1 + $0x58] sm:$0xf]
  %v41 = vld [vmem:[%s1 + $0x5c] sm:$0xf]
  %v42 = vld [vmem:[%s1 + $0x60] sm:$0xf]
  %v43 = vld [vmem:[%s1 + $0x64] sm:$0xf]
  %v44 = vld [vmem:[%s1 + $0x68] sm:$0xf]
  %v45 = vld [vmem:[%s1 + $0x6c] sm:$0xf]
  %v46 = vld [vmem:[%s1 + $0x70] sm:$0xf]
  %v47 = vld [vmem:[%s1 + $0x74] sm:$0xf]
  %v48 = vld [vmem:[%s1 + $0x78] sm:$0xf]
  %v49 = vld [vmem:[%s1 + $0x7c] sm:$0xf]
  %v50 = vld [vmem:[%s1 + $0x80] sm:$0xf]
  %v51 = vld [vmem:[%s1 + $0x84] sm:$0xf]
  %v52 = vld [vmem:[%s1 + $0x88] sm:$0xf]
  %v53 = vld [vmem:[%s1 + $0x8c] sm:$0xf]
  %v54 = vld [vmem:[%s1 + $0x90] sm:$0xf]
  %v55 = vld [vmem:[%s1 + $0x94] sm:$0xf]
  %v56 = vld [vmem:[%s1 + $0x98] sm:$0xf]
  %v57 = vld [vmem:[%s1 + $0x9c] sm:$0xf]
  %v58 = vld [vmem:[%s1 + $0xa0] sm:$0xf]
  %v59 = vld [vmem:[%s1 + $0xa4] sm:$0xf]
  %v60 = vld [vmem:[%s1 + $0xa8] sm:$0xf]
  %v61 = vld [vmem:[%s1 + $0xac] sm:$0xf]
  %v62 = vld [vmem:[%s1 + $0xb0] sm:$0xf]
  %v63 = vld [vmem:[%s1 + $0xb4] sm:$0xf]
  %v64 = vld [vmem:[%s1 + $0xb8] sm:$0xf]
  %v65 = vld [vmem:[%s1 + $0xbc] sm:$0xf]
  %v70 = vunpack.c.l.b16 %v14
  %v71 = vunpack.c.h.b16 %v14
  %v72 = vunpack.c.l.b16 %v15
  %v73 = vunpack.c.l.b16 %v16
  %v74 = vunpack.c.h.b16 %v16
  %v75 = vunpack.c.l.b16 %v17
  %v76 = vpack.c.b16 %v73, %v70
  %v77 = vpack.c.b16 %v74, %v71
  %v78 = vpack.c.b16 %v75, %v72
  %v130 = vunpack.c.l.b16 %v18
  %v131 = vunpack.c.l.b16 %v19
  %v132 = vunpack.c.l.b16 %v20
  %v133 = vunpack.c.l.b16 %v21
  %v134 = vunpack.c.l.b16 %v22
  %v135 = vunpack.c.l.b16 %v23
  %v136 = vunpack.c.l.b16 %v24
  %v137 = vunpack.c.l.b16 %v25
  %v138 = vunpack.c.l.b16 %v26
  %v139 = vunpack.c.l.b16 %v27
  %v140 = vunpack.c.l.b16 %v28
  %v141 = vunpack.c.l.b16 %v29
  %v142 = vunpack.c.l.b16 %v30
  %v143 = vunpack.c.l.b16 %v31
  %v144 = vunpack.c.l.b16 %v32
  %v145 = vunpack.c.l.b16 %v33
  %v146 = vunpack.c.l.b16 %v34
  %v147 = vunpack.c.l.b16 %v35
  %v148 = vunpack.c.l.b16 %v36
  %v149 = vunpack.c.l.b16 %v37
  %v150 = vunpack.c.l.b16 %v38
  %v151 = vunpack.c.l.b16 %v39
  %v152 = vunpack.c.l.b16 %v40
  %v153 = vunpack.c.l.b16 %v41
  %v154 = vunpack.c.l.b16 %v42
  %v155 = vunpack.c.l.b16 %v43
  %v156 = vunpack.c.l.b16 %v44
  %v157 = vunpack.c.l.b16 %v45
  %v158 = vunpack.c.l.b16 %v46
  %v159 = vunpack.c.l.b16 %v47
  %v160 = vunpack.c.l.b16 %v48
  %v161 = vunpack.c.l.b16 %v49
  %v162 = vunpack.c.l.b16 %v50
  %v163 = vunpack.c.l.b16 %v51
  %v164 = vunpack.c.l.b16 %v52
  %v165 = vunpack.c.l.b16 %v53
  %v166 = vunpack.c.l.b16 %v54
  %v167 = vunpack.c.l.b16 %v55
  %v168 = vunpack.c.l.b16 %v56
  %v169 = vunpack.c.l.b16 %v57
  %v170 = vunpack.c.l.b16 %v58
  %v171 = vunpack.c.l.b16 %v59
  %v172 = vunpack.c.l.b16 %v60
  %v173 = vunpack.c.l.b16 %v61
  %v174 = vunpack.c.l.b16 %v62
  %v175 = vunpack.c.l.b16 %v63
  %v176 = vunpack.c.l.b16 %v64
  %v177 = vunpack.c.l.b16 %v65
  %v178 = vpack.c.b16 %v131, %v130
  %v179 = vpack.c.b16 %v133, %v132
  %v180 = vpack.c.b16 %v135, %v134
  %v181 = vpack.c.b16 %v137, %v136
  %v182 = vpack.c.b16 %v139, %v138
  %v183 = vpack.c.b16 %v141, %v140
  %v184 = vpack.c.b16 %v143, %v142
  %v185 = vpack.c.b16 %v145, %v144
  %v186 = vpack.c.b16 %v147, %v146
  %v187 = vpack.c.b16 %v149, %v148
  %v188 = vpack.c.b16 %v151, %v150
  %v189 = vpack.c.b16 %v153, %v152
  %v190 = vpack.c.b16 %v155, %v154
  %v191 = vpack.c.b16 %v157, %v156
  %v192 = vpack.c.b16 %v159, %v158
  %v193 = vpack.c.b16 %v161, %v160
  %v194 = vpack.c.b16 %v163, %v162
  %v195 = vpack.c.b16 %v165, %v164
  %v196 = vpack.c.b16 %v167, %v166
  %v197 = vpack.c.b16 %v169, %v168
  %v198 = vpack.c.b16 %v171, %v170
  %v199 = vpack.c.b16 %v173, %v172
  %v200 = vpack.c.b16 %v175, %v174
  %v201 = vpack.c.b16 %v177, %v176
  %226 = vmatprep.subr.bf16.mxu0 0
  %227 = vmatpush1.bf16.msra.mxu0 %v178
  %228 = vmatprep.subr.bf16.mxu0 0
  %229 = vmatpush1.bf16.msra.mxu0 %v179
  %230 = vmatprep.subr.bf16.mxu0 0
  %231 = vmatpush1.bf16.msra.mxu0 %v180
  %232 = vmatprep.subr.bf16.mxu0 0
  %233 = vmatpush1.bf16.msra.mxu0 %v181
  %234 = vmatprep.subr.bf16.mxu0 0
  %235 = vmatpush1.bf16.msra.mxu0 %v182
  %236 = vmatprep.subr.bf16.mxu0 0
  %237 = vmatpush1.bf16.msra.mxu0 %v183
  %238 = vmatprep.subr.bf16.mxu0 0
  %239 = vmatpush1.bf16.msra.mxu0 %v184
  %240 = vmatprep.subr.bf16.mxu0 0
  %241 = vmatpush1.bf16.msra.mxu0 %v185
  %242 = vmatprep.subr.bf16.mxu0 0
  %243 = vmatpush1.bf16.msra.mxu0 %v186
  %244 = vmatprep.subr.bf16.mxu0 0
  %245 = vmatpush1.bf16.msra.mxu0 %v187
  %246 = vmatprep.subr.bf16.mxu0 0
  %247 = vmatpush1.bf16.msra.mxu0 %v188
  %248 = vmatprep.subr.bf16.mxu0 0
  %249 = vmatpush1.bf16.msra.mxu0 %v189
  %250 = vmatprep.subr.bf16.mxu0 0
  %251 = vmatpush1.bf16.msra.mxu0 %v190
  %252 = vmatprep.subr.bf16.mxu0 0
  %253 = vmatpush1.bf16.msra.mxu0 %v191
  %254 = vmatprep.subr.bf16.mxu0 0
  %255 = vmatpush1.bf16.msra.mxu0 %v192
  %256 = vmatprep.subr.bf16.mxu0 0
  %257 = vmatpush1.bf16.msra.mxu0 %v193
  %258 = vmatprep.mubr.bf16.mxu0 %v77
  %259 = vmatmul.mubr.bf16.gmra.mrb[0].mxu0 %v76
  %v260 = vpop.f32.mrb[0].mxu0
  %v261 = vadd.f32 0.0, %v260
  %v262 = vpop.f32.mrb[0].mxu0
  %v263 = vpop.f32.mrb[0].mxu0
  %v264 = vadd.f32 0.0, %v263
  %v265 = vpop.f32.mrb[0].mxu0
  %266 = vdwg.mxu0
  %267 = vmatprep.subr.bf16.mxu0 0
  %268 = vmatpush1.bf16.msra.mxu0 %v194
  %269 = vmatprep.subr.bf16.mxu0 0
  %270 = vmatpush1.bf16.msra.mxu0 %v195
  %271 = vmatprep.subr.bf16.mxu0 0
  %272 = vmatpush1.bf16.msra.mxu0 %v196
  %273 = vmatprep.subr.bf16.mxu0 0
  %274 = vmatpush1.bf16.msra.mxu0 %v197
  %275 = vmatprep.subr.bf16.mxu0 0
  %276 = vmatpush1.bf16.msra.mxu0 %v198
  %277 = vmatprep.subr.bf16.mxu0 0
  %278 = vmatpush1.bf16.msra.mxu0 %v199
  %279 = vmatprep.subr.bf16.mxu0 0
  %280 = vmatpush1.bf16.msra.mxu0 %v200
  %281 = vmatprep.subr.bf16.mxu0 0
  %282 = vmatpush1.bf16.msra.mxu0 %v201
  %283 = vmatprep.subr.bf16.mxu0 0
  %284 = vmatpush1.bf16.msra.mxu0 0
  %285 = vmatprep.subr.bf16.mxu0 0
  %286 = vmatpush1.bf16.msra.mxu0 0
  %287 = vmatprep.subr.bf16.mxu0 0
  %288 = vmatpush1.bf16.msra.mxu0 0
  %289 = vmatprep.subr.bf16.mxu0 0
  %290 = vmatpush1.bf16.msra.mxu0 0
  %291 = vmatprep.subr.bf16.mxu0 0
  %292 = vmatpush1.bf16.msra.mxu0 0
  %293 = vmatprep.subr.bf16.mxu0 0
  %294 = vmatpush1.bf16.msra.mxu0 0
  %295 = vmatprep.subr.bf16.mxu0 0
  %296 = vmatpush1.bf16.msra.mxu0 0
  %297 = vmatprep.subr.bf16.mxu0 0
  %298 = vmatpush1.bf16.msra.mxu0 0
  %299 = vmatprep.mubr.bf16.mxu0 0
  %300 = vmatmul.mubr.bf16.gmra.mrb[0].mxu0 %v78
  %v301 = vpop.f32.mrb[0].mxu0
  %v302 = vadd.f32 %v261, %v301
  %v303 = vpop.f32.mrb[0].mxu0
  %v304 = vpop.f32.mrb[0].mxu0
  %v305 = vadd.f32 %v264, %v304
  %v306 = vpop.f32.mrb[0].mxu0
  %307 = vdwg.mxu0
  %308 = vst [vmem:[%s2] sm:$0xff] %v302
  %309 = vst [vmem:[%s2 + $0x8] sm:$0xff] %v305
  %v310 = vadd.f32 %v302, %v305
  %v311 = vrot.slane %v310, 4
  %v312 = vadd.f32 %v310, %v311
  %v313 = vrot.slane %v312, 2
  %v314 = vadd.f32 %v312, %v313
  %v315 = vrot.slane %v314, 1
  %v316 = vadd.f32 %v314, %v315
  %v317 = vmul.f32 %v302, %v302
  %v318 = vmul.f32 %v305, %v305
  %v319 = vadd.f32 %v317, %v318
  %v320 = vrot.slane %v319, 4
  %v321 = vadd.f32 %v319, %v320
  %v322 = vrot.slane %v321, 2
  %v323 = vadd.f32 %v321, %v322
  %v324 = vrot.slane %v323, 1
  %v325 = vadd.f32 %v323, %v324
  %vm326 = vcmask 1040384
  %v327 = vsel %vm326, %v316, %v325
  %328 = vst [vmem:[%s3] sm:$0x3] %v327
  // Predicated region
  $region10: #{pose_encoder_forward.31} parent=0 // pred_check
    _
  $region11: #{pose_encoder_forward.31} parent=0 // pred_check_branch
    %330 = sbr.rel (0) target = $region13
  $region12: #{pose_encoder_forward.31} parent=0 // pred_region
    _
  $region13: #{pose_encoder_forward.31} parent=0 // pred_fallthru
    _
  // Predicated region
  $region14: #{pose_encoder_forward.31} parent=0 // pred_check
    _
  $region15: #{pose_encoder_forward.31} parent=0 // pred_check_branch
    %332 = sbr.rel (0) target = $region17
  $region16: #{pose_encoder_forward.31} parent=0 // pred_region
    _
  $region17: #{pose_encoder_forward.31} parent=0 // pred_fallthru
    _
  // Predicated region
  $region18: #{pose_encoder_forward.31} parent=0 // pred_check
    _
  $region19: #{pose_encoder_forward.31} parent=0 // pred_check_branch
    %334 = sbr.rel (0) target = $region21
  $region20: #{pose_encoder_forward.31} parent=0 // pred_region
    _
  $region21: #{pose_encoder_forward.31} parent=0 // pred_fallthru
    _
  // Predicated region
  $region22: #{pose_encoder_forward.31} parent=0 // pred_check
    _
  $region23: #{pose_encoder_forward.31} parent=0 // pred_check_branch
    %336 = sbr.rel (0) target = $region25
  $region24: #{pose_encoder_forward.31} parent=0 // pred_region
    _
  $region25: #{pose_encoder_forward.31} parent=0 // pred_fallthru
    _

// kernel: pose_encoder_forward.33
$region0: #{pose_encoder_forward.33}
  #allocation0 [shape = 'u32[]', space=smem, size = 0x4, offset = 0x4, fixed_abs, tag = 'smem constant byte address 0x4 - core index']
  #allocation1 [shape = 'u32[144,128]{1,0:T(1,128)}', space=vmem, size = 0x12000, scoped, tag = 'internal scratch']
  %s0 = inlined_call_operand.vmem [shape: bf16[8,32], index: 0, kind: input, shape index: {}]
  %s1 = inlined_call_operand.vmem [shape: bf16[32,128], index: 1, kind: input, shape index: {}]
  %s2 = inlined_call_operand.vmem [shape: f32[1,128], index: 2, kind: input, shape index: {}]
  %s3 = inlined_call_operand.vmem [shape: f32[8,128], index: 3, kind: output, shape index: {}]
  %s4 = sld [smem:[#allocation0]]
  $region22: #{pose_encoder_forward.33} parent=0
    _
  %s6 = ssub.s32 1, %s4
  %s7 = scalar_select 0, %s6, %s4
  // Predicated region
  $region2: #{pose_encoder_forward.33} parent=0 // pred_check
    _
  $region3: #{pose_encoder_forward.33} parent=0 // pred_check_branch
    %9 = sbr.rel (0) target = $region5
  $region4: #{pose_encoder_forward.33} parent=0 // pred_region
    _
  $region5: #{pose_encoder_forward.33} parent=0 // pred_fallthru
    _
  // Predicated region
  $region6: #{pose_encoder_forward.33} parent=0 // pred_check
    _
  $region7: #{pose_encoder_forward.33} parent=0 // pred_check_branch
    %11 = sbr.rel (0) target = $region9
  $region8: #{pose_encoder_forward.33} parent=0 // pred_region
    _
  $region9: #{pose_encoder_forward.33} parent=0 // pred_fallthru
    _
  // Predicated region
  $region10: #{pose_encoder_forward.33} parent=0 // pred_check
    _
  $region11: #{pose_encoder_forward.33} parent=0 // pred_check_branch
    %13 = sbr.rel (0) target = $region13
  $region12: #{pose_encoder_forward.33} parent=0 // pred_region
    _
  $region13: #{pose_encoder_forward.33} parent=0 // pred_fallthru
    _
  %v15 = vld [vmem:[%s0] sm:$0xf]
  %v16 = vld [vmem:[%s1] sm:$0xf]
  %v17 = vld [vmem:[%s1 + $0x4] sm:$0xf]
  %v18 = vld [vmem:[%s1 + $0x8] sm:$0xf]
  %v19 = vld [vmem:[%s1 + $0xc] sm:$0xf]
  %v20 = vld [vmem:[%s2] sm:$0x1]
  %v22 = vlaneseq
  %v23 = vshrl.u32 %v22, 7
  %v24 = vsub.s32 0, %v23
  %v25 = vrot.slane %v20, %v24
  %v31 = vunpack.c.l.b16 %v16
  %v32 = vunpack.c.l.b16 %v17
  %v33 = vunpack.c.l.b16 %v18
  %v34 = vunpack.c.l.b16 %v19
  %v35 = vpack.c.b16 %v32, %v31
  %v36 = vpack.c.b16 %v34, %v33
  %vm39 = vcmask 261120
  %v41 = vsel %vm39, %v15, 0
  %43 = vmatprep.subr.bf16.mxu0 0
  %44 = vmatpush1.bf16.msra.mxu0 %v35
  %45 = vmatprep.subr.bf16.mxu0 0
  %46 = vmatpush1.bf16.msra.mxu0 %v36
  %47 = vmatprep.subr.bf16.mxu0 0
  %48 = vmatpush1.bf16.msra.mxu0 0
  %49 = vmatprep.subr.bf16.mxu0 0
  %50 = vmatpush1.bf16.msra.mxu0 0
  %51 = vmatprep.subr.bf16.mxu0 0
  %52 = vmatpush1.bf16.msra.mxu0 0
  %53 = vmatprep.subr.bf16.mxu0 0
  %54 = vmatpush1.bf16.msra.mxu0 0
  %55 = vmatprep.subr.bf16.mxu0 0
  %56 = vmatpush1.bf16.msra.mxu0 0
  %57 = vmatprep.subr.bf16.mxu0 0
  %58 = vmatpush1.bf16.msra.mxu0 0
  %59 = vmatprep.subr.bf16.mxu0 0
  %60 = vmatpush1.bf16.msra.mxu0 0
  %61 = vmatprep.subr.bf16.mxu0 0
  %62 = vmatpush1.bf16.msra.mxu0 0
  %63 = vmatprep.subr.bf16.mxu0 0
  %64 = vmatpush1.bf16.msra.mxu0 0
  %65 = vmatprep.subr.bf16.mxu0 0
  %66 = vmatpush1.bf16.msra.mxu0 0
  %67 = vmatprep.subr.bf16.mxu0 0
  %68 = vmatpush1.bf16.msra.mxu0 0
  %69 = vmatprep.subr.bf16.mxu0 0
  %70 = vmatpush1.bf16.msra.mxu0 0
  %71 = vmatprep.subr.bf16.mxu0 0
  %72 = vmatpush1.bf16.msra.mxu0 0
  %73 = vmatprep.subr.bf16.mxu0 0
  %74 = vmatpush1.bf16.msra.mxu0 0
  %75 = vmatprep.mubr.bf16.mxu0 0
  %76 = vmatmul.mubr.bf16.gmra.mrb[0].mxu0 %v41
  %v77 = vpop.f32.mrb[0].mxu0
  %v78 = vadd.f32 %v25, %v77
  %v79 = vpop.f32.mrb[0].mxu0
  %v80 = vpop.f32.mrb[0].mxu0
  %v81 = vpop.f32.mrb[0].mxu0
  %82 = vdwg.mxu0
  %83 = vst [vmem:[%s3] sm:$0xff] %v78
  // Predicated region
  $region14: #{pose_encoder_forward.33} parent=0 // pred_check
    _
  $region15: #{pose_encoder_forward.33} parent=0 // pred_check_branch
    %85 = sbr.rel (0) target = $region17
  $region16: #{pose_encoder_forward.33} parent=0 // pred_region
    _
  $region17: #{pose_encoder_forward.33} parent=0 // pred_fallthru
    _
  // Predicated region
  $region18: #{pose_encoder_forward.33} parent=0 // pred_check
    _
  $region19: #{pose_encoder_forward.33} parent=0 // pred_check_branch
    %87 = sbr.rel (0) target = $region21
  $region20: #{pose_encoder_forward.33} parent=0 // pred_region
    _
  $region21: #{pose_encoder_forward.33} parent=0 // pred_fallthru
    _

</llo_original>
